<compile_context>
chip_gen: v7x
topology: tpu7x:2x2x1
jax: 0.10.0
libtpu: 0.0.40
codegen_flags: <defaults>
</compile_context>

<pallas_src>
import numpy as np
import jax
import jax.numpy as jnp
from jax.experimental import pallas as pl
from jax.experimental.pallas import tpu as pltpu

C = 80            # true emb_dim / hidden width of the PyTorch module
CP = 128          # lane-padded channel width used inside the kernel
N_AGG = 4         # mean, min, max, std
N_SCAL = 3        # identity, amplification, attenuation
N_BLK = N_AGG * N_SCAL          # 12
N_LAYERS = 4
BIG = 1e30
STD_EPS = 1e-5    # PNA aggregate_std epsilon
BN_EPS = 1e-5     # BatchNorm1d epsilon

ATOM_FEATURE_DIMS = (119, 4, 12, 12, 10, 6, 6, 2, 2)   # OGB atom feature vocab sizes


# ----------------------------------------------------------------------------
# Single fused kernel, grid=(N_LAYERS,):
#   each grid step = one (PNAConvSimple + folded BatchNorm + ReLU + residual) layer,
#   last step also does global_mean_pool + 3-layer MLP head.
# ----------------------------------------------------------------------------
def fused_net_kernel(x0_ref, adj_ref, has_ref, invc_ref, amp_ref, att_ref,
                     w_ref, b_ref,                         # per-layer blocks
                     p_ref, w1_ref, b1_ref, w2_ref, b2_ref, w3_ref, b3_ref,
                     out_ref,                              # VMEM output
                     x_sc):                                # persistent VMEM scratch
    l = pl.program_id(0)

    @pl.when(l == 0)
    def _():
        x_sc[...] = x0_ref[...]

    x = x_sc[...]                       # [N, CP], resident across all 4 layers
    adj = adj_ref[...]                  # [N, N] edge-count matrix (dst x src)
    has = has_ref[...]                  # [N, 1] 1.0 where in-degree > 0
    inv_cnt = invc_ref[...]             # [N, 1] 1 / max(deg, 1)
    amp = amp_ref[...]                  # [N, 1] amplification scaler
    att = att_ref[...]                  # [N, 1] attenuation scaler

    # sum / sum-of-squares aggregation as adjacency matmuls (MXU).
    s_sum = jnp.dot(adj, x, preferred_element_type=jnp.float32)        # [N, CP]
    s_sq = jnp.dot(adj, x * x, preferred_element_type=jnp.float32)     # [N, CP]

    # min / max: vectorized masked reduce over source nodes (no per-edge loop).
    # Excluded (non-neighbor) entries are pushed to +/- BIG with pure f32 arithmetic.
    maskf = (adj > 0.0).astype(jnp.float32)                            # [N, N]
    pen = (1.0 - maskf) * BIG                                          # [N, N]
    xb = x[None, :, :]                                                 # [1, N, CP]
    mn = jnp.min(xb + pen[:, :, None], axis=1)                         # [N, CP]
    mx = jnp.max(xb - pen[:, :, None], axis=1)                         # [N, CP]
    mn = jnp.where(has > 0.0, mn, 0.0)                                 # empty segments -> 0
    mx = jnp.where(has > 0.0, mx, 0.0)

    mean = s_sum * inv_cnt
    var = jnp.maximum(s_sq * inv_cnt - mean * mean, 0.0)
    std = jnp.sqrt(var + STD_EPS)

    # post_nn (BatchNorm already folded into w/b): 12 accumulating K=128 matmuls.
    # Block order matches the reference concat: scaler-major (identity, amp, att),
    # aggregator-minor (mean, min, max, std).  Identity scaler uses the raw aggregate.
    aggs = (mean, mn, mx, std)
    feats = list(aggs) + [a * amp for a in aggs] + [a * att for a in aggs]
    h = jnp.dot(feats[0], w_ref[0, pl.ds(0, CP), :],
                preferred_element_type=jnp.float32)
    for kk in range(1, N_BLK):
        h = h + jnp.dot(feats[kk], w_ref[0, pl.ds(kk * CP, CP), :],
                        preferred_element_type=jnp.float32)
    h = h + b_ref[0]

    # ReLU + residual; dropout(p=0.3, training=False) is the identity.
    x_sc[...] = jnp.maximum(h, 0.0) + x

    @pl.when(l == N_LAYERS - 1)
    def _():
        xf = x_sc[...]
        # global_mean_pool as a dense averaging matmul, then the lane-padded MLP head.
        pooled = jnp.dot(p_ref[...], xf, preferred_element_type=jnp.float32)   # [B, CP]
        h1 = jnp.maximum(
            jnp.dot(pooled, w1_ref[...], preferred_element_type=jnp.float32)
            + b1_ref[...], 0.0)
        h2 = jnp.maximum(
            jnp.dot(h1, w2_ref[...], preferred_element_type=jnp.float32)
            + b2_ref[...], 0.0)
        out_ref[...] = jnp.dot(h2, w3_ref[...],
                               preferred_element_type=jnp.float32) + b3_ref[...]


def fused_net(x0, adj, has, inv_cnt, amp, att, w_all, b_all,
              pool_mat, w1, b1, w2, b2, w3, b3):
    n = x0.shape[0]
    bsz = pool_mat.shape[0]

    def const2(shape):
        # full-array block, constant across the layer grid (fetched once, kept in VMEM)
        return pl.BlockSpec(shape, lambda l: (0, 0))

    in_specs = [
        const2((n, CP)),                                           # x0
        const2((n, n)),                                            # adj
        const2((n, 1)),                                            # has
        const2((n, 1)),                                            # inv_cnt
        const2((n, 1)),                                            # amp
        const2((n, 1)),                                            # att
        pl.BlockSpec((1, N_BLK * CP, CP), lambda l: (l, 0, 0)),    # w_all (per layer)
        pl.BlockSpec((1, 1, CP), lambda l: (l, 0, 0)),             # b_all (per layer)
        const2((bsz, n)),                                          # pool_mat
        const2((CP, CP)), const2((1, CP)),                         # w1, b1
        const2((CP, CP)), const2((1, CP)),                         # w2, b2
        const2((CP, CP)), const2((1, CP)),                         # w3, b3
    ]
    return pl.pallas_call(
        fused_net_kernel,
        out_shape=jax.ShapeDtypeStruct((bsz, CP), jnp.float32),
        grid=(N_LAYERS,),
        in_specs=in_specs,
        out_specs=pl.BlockSpec((bsz, CP), lambda l: (0, 0)),
        scratch_shapes=[pltpu.VMEM((n, CP), jnp.float32)],          # resident x
        compiler_params=pltpu.CompilerParams(
            dimension_semantics=("arbitrary",)),
    )(x0, adj, has, inv_cnt, amp, att, w_all, b_all,
      pool_mat, w1, b1, w2, b2, w3, b3)


# ----------------------------------------------------------------------------
# Parameter init (deterministic, synthetic) + forward wrapper (glue).
# ----------------------------------------------------------------------------
def init_params(key):
    keys = iter(jax.random.split(key, 64))
    params = {}
    params["atom_emb"] = [
        0.1 * jax.random.normal(next(keys), (d, C), jnp.float32) for d in ATOM_FEATURE_DIMS
    ]
    layers = []
    for _ in range(N_LAYERS):
        w = jax.random.normal(next(keys), (N_BLK, C, C), jnp.float32) / np.sqrt(N_BLK * C)
        b = 0.01 * jax.random.normal(next(keys), (1, C), jnp.float32)
        gamma = 1.0 + 0.1 * jax.random.normal(next(keys), (1, C), jnp.float32)
        beta = 0.05 * jax.random.normal(next(keys), (1, C), jnp.float32)
        run_mean = 0.05 * jax.random.normal(next(keys), (1, C), jnp.float32)
        run_var = 1.0 + 0.1 * jax.random.uniform(next(keys), (1, C), jnp.float32)
        bn_scale = gamma / jnp.sqrt(run_var + BN_EPS)
        bn_shift = beta - run_mean * bn_scale
        layers.append(dict(w=w, b=b, bn_scale=bn_scale, bn_shift=bn_shift))
    params["layers"] = layers
    mlp = []
    for din, dout in ((C, 40), (40, 20), (20, 1)):
        w = jax.random.normal(next(keys), (din, dout), jnp.float32) / np.sqrt(din)
        bb = 0.01 * jax.random.normal(next(keys), (1, dout), jnp.float32)
        mlp.append((w, bb))
    params["mlp"] = mlp
    return params


def _pad_last(a, target):
    pad = target - a.shape[-1]
    if pad <= 0:
        return a
    return jnp.pad(a, [(0, 0)] * (a.ndim - 1) + [(0, pad)])


def net_forward(params, x_atom, edge_index, edge_attr, batch, num_graphs):
    del edge_attr  # PNAConvSimple's simple message uses x_j only (edge_attr carried, unused)
    n = x_atom.shape[0]

    # AtomEncoder: sum of per-feature embedding lookups (data-dependent gather -> glue).
    x = jnp.zeros((n, C), jnp.float32)
    for f, table in enumerate(params["atom_emb"]):
        x = x + jnp.take(table, x_atom[:, f], axis=0)
    x0 = _pad_last(x, CP)                                                  # [N, CP]

    # Dense adjacency (dst x src) with duplicate-edge counts; replaces the per-edge
    # gather/scatter matrices of the previous version.  sum/mean/std use the counts,
    # min/max use only the support (duplicates don't change min/max).
    src = edge_index[0].astype(jnp.int32)
    dst = edge_index[1].astype(jnp.int32)
    adj = jnp.zeros((n, n), jnp.float32).at[dst, src].add(1.0)             # [N, N]
    deg = adj.sum(axis=1, keepdims=True)                                   # [N, 1] in-degree

    has = (deg > 0.0).astype(jnp.float32)
    inv_cnt = 1.0 / jnp.maximum(deg, 1.0)
    logd = jnp.log(deg + 1.0)
    avg_log = jnp.mean(logd)
    avg_log = jnp.where(avg_log > 0.0, avg_log, 1.0)   # guard edge-less graph (no div by 0)
    amp = logd / avg_log                                                   # amplification
    att = jnp.where(deg > 0.0, avg_log / jnp.where(deg > 0.0, logd, 1.0),
                    1.0)                                                   # attenuation

    # post_nn weights: fold BatchNorm (eval) into W/b, lane-pad 80 -> 128, stack the
    # 12 blocks per layer into one [12*CP, CP] matrix, stack the 4 layers.
    ws, bs = [], []
    for lp in params["layers"]:
        s, t = lp["bn_scale"], lp["bn_shift"]          # [1, C] each
        w_fold = lp["w"] * s[None]                     # scale output channels
        b_fold = lp["b"] * s + t
        wp = jnp.zeros((N_BLK, CP, CP), jnp.float32).at[:, :C, :C].set(w_fold)
        ws.append(wp.reshape(N_BLK * CP, CP))
        bs.append(_pad_last(b_fold, CP))
    w_all = jnp.stack(ws)        # [4, 12*CP, CP]
    b_all = jnp.stack(bs)        # [4, 1, CP]

    # global_mean_pool as a dense [num_graphs, N] averaging matrix (num_graphs static).
    onehot = (batch[None, :] == jnp.arange(num_graphs, dtype=batch.dtype)[:, None]).astype(
        jnp.float32)
    pool_mat = onehot / jnp.maximum(onehot.sum(axis=1, keepdims=True), 1.0)

    # MLP head, lane-padded to 128x128 (zero-padded rows/cols keep the math exact).
    (w1, b1), (w2, b2), (w3, b3) = params["mlp"]
    w1p = jnp.zeros((CP, CP), jnp.float32).at[:C, :40].set(w1)
    b1p = _pad_last(b1, CP)
    w2p = jnp.zeros((CP, CP), jnp.float32).at[:40, :20].set(w2)
    b2p = _pad_last(b2, CP)
    w3p = jnp.zeros((CP, CP), jnp.float32).at[:20, :1].set(w3)
    b3p = _pad_last(b3, CP)

    out = fused_net(x0, adj, has, inv_cnt, amp, att, w_all, b_all,
                    pool_mat, w1p, b1p, w2p, b2p, w3p, b3p)
    return out[:, :1]                                                      # [B, 1]


if __name__ == "__main__":
    root = jax.random.PRNGKey(0)
    kx, ke1, ke2, kattr, kparams = jax.random.split(root, 5)

    N, E, B = 32, 64, 4

    # Synthetic graph inputs mirroring Net.forward(x, edge_index, edge_attr, batch).
    x_atom = jnp.stack(
        [jax.random.randint(jax.random.fold_in(kx, f), (N,), 0, d, dtype=jnp.int32)
         for f, d in enumerate(ATOM_FEATURE_DIMS)], axis=1)                # [N, 9] int
    src = jax.random.randint(ke1, (E,), 0, N, dtype=jnp.int32)
    dst = jax.random.randint(ke2, (E,), 0, N, dtype=jnp.int32)
    edge_index = jnp.stack([src, dst])                                      # [2, E]
    edge_attr = jax.random.randint(kattr, (E, 3), 0, 4, dtype=jnp.int32)    # carried, unused
    batch = jnp.repeat(jnp.arange(B, dtype=jnp.int32), N // B)              # [N]

    params = init_params(kparams)
    out = net_forward(params, x_atom, edge_index, edge_attr, batch, num_graphs=B)
    out = jax.block_until_ready(out)

    assert out.shape == (B, 1), out.shape
    assert bool(jnp.all(jnp.isfinite(out)))
    print("KERNEL_OK")
</pallas_src>

<mosaic_0001>
module attributes {stable_mosaic.version = 11 : i64} {
  func.func @fused_net_kernel(%arg0: i32, %arg1: memref<32x128xf32, #tpu.memory_space<vmem>>, %arg2: memref<32x32xf32, #tpu.memory_space<vmem>>, %arg3: memref<32x1xf32, #tpu.memory_space<vmem>>, %arg4: memref<32x1xf32, #tpu.memory_space<vmem>>, %arg5: memref<32x1xf32, #tpu.memory_space<vmem>>, %arg6: memref<32x1xf32, #tpu.memory_space<vmem>>, %arg7: memref<1x1536x128xf32, #tpu.memory_space<vmem>>, %arg8: memref<1x1x128xf32, #tpu.memory_space<vmem>>, %arg9: memref<4x32xf32, #tpu.memory_space<vmem>>, %arg10: memref<128x128xf32, #tpu.memory_space<vmem>>, %arg11: memref<1x128xf32, #tpu.memory_space<vmem>>, %arg12: memref<128x128xf32, #tpu.memory_space<vmem>>, %arg13: memref<1x128xf32, #tpu.memory_space<vmem>>, %arg14: memref<128x128xf32, #tpu.memory_space<vmem>>, %arg15: memref<1x128xf32, #tpu.memory_space<vmem>>, %arg16: memref<4x128xf32, #tpu.memory_space<vmem>>, %arg17: memref<32x128xf32, #tpu.memory_space<vmem>>) attributes {dimension_semantics = [#tpu.dimension_semantics<arbitrary>], iteration_bounds = array<i64: 4>, scalar_prefetch = 0 : i64, scratch_operands = 1 : i64, tpu.core_type = #tpu.core_type<tc>, window_params = [{pipeline_mode = #tpu.pipeline_mode<synchronous>, transform_indices = @transform_0, window_bounds = array<i64: 32, 128>}, {pipeline_mode = #tpu.pipeline_mode<synchronous>, transform_indices = @transform_1, window_bounds = array<i64: 32, 32>}, {pipeline_mode = #tpu.pipeline_mode<synchronous>, transform_indices = @transform_2, window_bounds = array<i64: 32, 1>}, {pipeline_mode = #tpu.pipeline_mode<synchronous>, transform_indices = @transform_3, window_bounds = array<i64: 32, 1>}, {pipeline_mode = #tpu.pipeline_mode<synchronous>, transform_indices = @transform_4, window_bounds = array<i64: 32, 1>}, {pipeline_mode = #tpu.pipeline_mode<synchronous>, transform_indices = @transform_5, window_bounds = array<i64: 32, 1>}, {transform_indices = @transform_6, window_bounds = array<i64: 1, 1536, 128>}, {transform_indices = @transform_7, window_bounds = array<i64: 1, 1, 128>}, {pipeline_mode = #tpu.pipeline_mode<synchronous>, transform_indices = @transform_8, window_bounds = array<i64: 4, 32>}, {pipeline_mode = #tpu.pipeline_mode<synchronous>, transform_indices = @transform_9, window_bounds = array<i64: 128, 128>}, {pipeline_mode = #tpu.pipeline_mode<synchronous>, transform_indices = @transform_10, window_bounds = array<i64: 1, 128>}, {pipeline_mode = #tpu.pipeline_mode<synchronous>, transform_indices = @transform_11, window_bounds = array<i64: 128, 128>}, {pipeline_mode = #tpu.pipeline_mode<synchronous>, transform_indices = @transform_12, window_bounds = array<i64: 1, 128>}, {pipeline_mode = #tpu.pipeline_mode<synchronous>, transform_indices = @transform_13, window_bounds = array<i64: 128, 128>}, {pipeline_mode = #tpu.pipeline_mode<synchronous>, transform_indices = @transform_14, window_bounds = array<i64: 1, 128>}, {pipeline_mode = #tpu.pipeline_mode<synchronous>, transform_indices = @transform_15, window_bounds = array<i64: 4, 128>}]} {
    %c0_i32 = arith.constant 0 : i32
    %0 = arith.cmpi eq, %arg0, %c0_i32 : i32
    %1 = arith.extui %0 : i1 to i32
    %c0_i32_0 = arith.constant 0 : i32
    %2 = arith.cmpi ne, %1, %c0_i32_0 : i32
    scf.if %2 {
      %c0_68 = arith.constant 0 : index
      %c0_69 = arith.constant 0 : index
      %128 = vector.load %arg1[%c0_68, %c0_69] : memref<32x128xf32, #tpu.memory_space<vmem>>, vector<32x128xf32>
      %c0_70 = arith.constant 0 : index
      %c0_71 = arith.constant 0 : index
      %129 = vector.load %arg17[%c0_70, %c0_71] : memref<32x128xf32, #tpu.memory_space<vmem>>, vector<32x128xf32>
      tpu.vector_store %arg17[%c0_70, %c0_71], %128 {strides = array<i32>} : memref<32x128xf32, #tpu.memory_space<vmem>>, vector<32x128xf32>,
    } else {
    }
    %c0 = arith.constant 0 : index
    %c0_1 = arith.constant 0 : index
    %3 = vector.load %arg17[%c0, %c0_1] : memref<32x128xf32, #tpu.memory_space<vmem>>, vector<32x128xf32>
    %c0_2 = arith.constant 0 : index
    %c0_3 = arith.constant 0 : index
    %4 = vector.load %arg2[%c0_2, %c0_3] : memref<32x32xf32, #tpu.memory_space<vmem>>, vector<32x32xf32>
    %c0_4 = arith.constant 0 : index
    %c0_5 = arith.constant 0 : index
    %5 = vector.load %arg3[%c0_4, %c0_5] : memref<32x1xf32, #tpu.memory_space<vmem>>, vector<32x1xf32>
    %c0_6 = arith.constant 0 : index
    %c0_7 = arith.constant 0 : index
    %6 = vector.load %arg4[%c0_6, %c0_7] : memref<32x1xf32, #tpu.memory_space<vmem>>, vector<32x1xf32>
    %c0_8 = arith.constant 0 : index
    %c0_9 = arith.constant 0 : index
    %7 = vector.load %arg5[%c0_8, %c0_9] : memref<32x1xf32, #tpu.memory_space<vmem>>, vector<32x1xf32>
    %c0_10 = arith.constant 0 : index
    %c0_11 = arith.constant 0 : index
    %8 = vector.load %arg6[%c0_10, %c0_11] : memref<32x1xf32, #tpu.memory_space<vmem>>, vector<32x1xf32>
    %cst = arith.constant dense<0.000000e+00> : vector<32x128xf32>
    %9 = tpu.matmul %4, %3, %cst {dimension_numbers = #tpu.dot_dimension_numbers<[1], [0], [0], [1], [0, 0, 1, 1], [], []>} : vector<32x32xf32>, vector<32x128xf32>, vector<32x128xf32> -> vector<32x128xf32>
    %10 = arith.mulf %3, %3 : vector<32x128xf32>
    %cst_12 = arith.constant dense<0.000000e+00> : vector<32x128xf32>
    %11 = tpu.matmul %4, %10, %cst_12 {dimension_numbers = #tpu.dot_dimension_numbers<[1], [0], [0], [1], [0, 0, 1, 1], [], []>} : vector<32x32xf32>, vector<32x128xf32>, vector<32x128xf32> -> vector<32x128xf32>
    %cst_13 = arith.constant 0.000000e+00 : f32
    %12 = vector.broadcast %cst_13 : f32 to vector<32x32xf32>
    %13 = arith.cmpf ogt, %4, %12 : vector<32x32xf32>
    %14 = arith.extui %13 : vector<32x32xi1> to vector<32x32xi32>
    %15 = arith.sitofp %14 : vector<32x32xi32> to vector<32x32xf32>
    %cst_14 = arith.constant 1.000000e+00 : f32
    %16 = vector.broadcast %cst_14 : f32 to vector<32x32xf32>
    %17 = arith.subf %16, %15 : vector<32x32xf32>
    %cst_15 = arith.constant 1.000000e+30 : f32
    %18 = vector.broadcast %cst_15 : f32 to vector<32x32xf32>
    %19 = arith.mulf %17, %18 : vector<32x32xf32>
    %20 = vector.shape_cast %3 : vector<32x128xf32> to vector<1x32x128xf32>
    %21 = vector.shape_cast %19 : vector<32x32xf32> to vector<32x32x1xf32>
    %22 = vector.broadcast %20 : vector<1x32x128xf32> to vector<32x32x128xf32>
    %23 = vector.broadcast %21 : vector<32x32x1xf32> to vector<32x32x128xf32>
    %24 = arith.addf %22, %23 : vector<32x32x128xf32>
    %cst_16 = arith.constant dense<0x7F800000> : vector<32x128xf32>
    %25 = vector.multi_reduction <minimumf>, %24, %cst_16 [1] : vector<32x32x128xf32> to vector<32x128xf32>
    %26 = vector.shape_cast %19 : vector<32x32xf32> to vector<32x32x1xf32>
    %27 = vector.broadcast %20 : vector<1x32x128xf32> to vector<32x32x128xf32>
    %28 = vector.broadcast %26 : vector<32x32x1xf32> to vector<32x32x128xf32>
    %29 = arith.subf %27, %28 : vector<32x32x128xf32>
    %cst_17 = arith.constant dense<0xFF800000> : vector<32x128xf32>
    %30 = vector.multi_reduction <maximumf>, %29, %cst_17 [1] : vector<32x32x128xf32> to vector<32x128xf32>
    %cst_18 = arith.constant 0.000000e+00 : f32
    %31 = vector.broadcast %cst_18 : f32 to vector<32x1xf32>
    %32 = arith.cmpf ogt, %5, %31 : vector<32x1xf32>
    %cst_19 = arith.constant 0.000000e+00 : f32
    %33 = vector.shape_cast %32 : vector<32x1xi1> to vector<32x1xi1>
    %34 = vector.broadcast %33 : vector<32x1xi1> to vector<32x128xi1>
    %35 = vector.broadcast %cst_19 : f32 to vector<32x128xf32>
    %36 = arith.select %34, %25, %35 : vector<32x128xi1>, vector<32x128xf32>
    %cst_20 = arith.constant 0.000000e+00 : f32
    %37 = vector.broadcast %cst_20 : f32 to vector<32x1xf32>
    %38 = arith.cmpf ogt, %5, %37 : vector<32x1xf32>
    %cst_21 = arith.constant 0.000000e+00 : f32
    %39 = vector.shape_cast %38 : vector<32x1xi1> to vector<32x1xi1>
    %40 = vector.broadcast %39 : vector<32x1xi1> to vector<32x128xi1>
    %41 = vector.broadcast %cst_21 : f32 to vector<32x128xf32>
    %42 = arith.select %40, %30, %41 : vector<32x128xi1>, vector<32x128xf32>
    %43 = vector.broadcast %6 : vector<32x1xf32> to vector<32x128xf32>
    %44 = arith.mulf %9, %43 : vector<32x128xf32>
    %45 = vector.broadcast %6 : vector<32x1xf32> to vector<32x128xf32>
    %46 = arith.mulf %11, %45 : vector<32x128xf32>
    %47 = arith.mulf %44, %44 : vector<32x128xf32>
    %48 = arith.subf %46, %47 : vector<32x128xf32>
    %cst_22 = arith.constant 0.000000e+00 : f32
    %49 = vector.broadcast %cst_22 : f32 to vector<32x128xf32>
    %50 = arith.maximumf %48, %49 : vector<32x128xf32>
    %cst_23 = arith.constant 9.99999974E-6 : f32
    %51 = vector.broadcast %cst_23 : f32 to vector<32x128xf32>
    %52 = arith.addf %50, %51 : vector<32x128xf32>
    %53 = math.sqrt %52 : vector<32x128xf32>
    %54 = vector.broadcast %7 : vector<32x1xf32> to vector<32x128xf32>
    %55 = arith.mulf %44, %54 : vector<32x128xf32>
    %56 = vector.broadcast %7 : vector<32x1xf32> to vector<32x128xf32>
    %57 = arith.mulf %36, %56 : vector<32x128xf32>
    %58 = vector.broadcast %7 : vector<32x1xf32> to vector<32x128xf32>
    %59 = arith.mulf %42, %58 : vector<32x128xf32>
    %60 = vector.broadcast %7 : vector<32x1xf32> to vector<32x128xf32>
    %61 = arith.mulf %53, %60 : vector<32x128xf32>
    %62 = vector.broadcast %8 : vector<32x1xf32> to vector<32x128xf32>
    %63 = arith.mulf %44, %62 : vector<32x128xf32>
    %64 = vector.broadcast %8 : vector<32x1xf32> to vector<32x128xf32>
    %65 = arith.mulf %36, %64 : vector<32x128xf32>
    %66 = vector.broadcast %8 : vector<32x1xf32> to vector<32x128xf32>
    %67 = arith.mulf %42, %66 : vector<32x128xf32>
    %68 = vector.broadcast %8 : vector<32x1xf32> to vector<32x128xf32>
    %69 = arith.mulf %53, %68 : vector<32x128xf32>
    %c0_24 = arith.constant 0 : index
    %c0_25 = arith.constant 0 : index
    %c0_26 = arith.constant 0 : index
    %70 = vector.load %arg7[%c0_24, %c0_25, %c0_26] : memref<1x1536x128xf32, #tpu.memory_space<vmem>>, vector<1x128x128xf32>
    %71 = vector.shape_cast %70 : vector<1x128x128xf32> to vector<128x128xf32>
    %cst_27 = arith.constant dense<0.000000e+00> : vector<32x128xf32>
    %72 = tpu.matmul %44, %71, %cst_27 {dimension_numbers = #tpu.dot_dimension_numbers<[1], [0], [0], [1], [0, 0, 1, 1], [], []>} : vector<32x128xf32>, vector<128x128xf32>, vector<32x128xf32> -> vector<32x128xf32>
    %c0_28 = arith.constant 0 : index
    %c128 = arith.constant 128 : index
    %c0_29 = arith.constant 0 : index
    %73 = vector.load %arg7[%c0_28, %c128, %c0_29] : memref<1x1536x128xf32, #tpu.memory_space<vmem>>, vector<1x128x128xf32>
    %74 = vector.shape_cast %73 : vector<1x128x128xf32> to vector<128x128xf32>
    %cst_30 = arith.constant dense<0.000000e+00> : vector<32x128xf32>
    %75 = tpu.matmul %36, %74, %cst_30 {dimension_numbers = #tpu.dot_dimension_numbers<[1], [0], [0], [1], [0, 0, 1, 1], [], []>} : vector<32x128xf32>, vector<128x128xf32>, vector<32x128xf32> -> vector<32x128xf32>
    %76 = arith.addf %72, %75 : vector<32x128xf32>
    %c0_31 = arith.constant 0 : index
    %c256 = arith.constant 256 : index
    %c0_32 = arith.constant 0 : index
    %77 = vector.load %arg7[%c0_31, %c256, %c0_32] : memref<1x1536x128xf32, #tpu.memory_space<vmem>>, vector<1x128x128xf32>
    %78 = vector.shape_cast %77 : vector<1x128x128xf32> to vector<128x128xf32>
    %cst_33 = arith.constant dense<0.000000e+00> : vector<32x128xf32>
    %79 = tpu.matmul %42, %78, %cst_33 {dimension_numbers = #tpu.dot_dimension_numbers<[1], [0], [0], [1], [0, 0, 1, 1], [], []>} : vector<32x128xf32>, vector<128x128xf32>, vector<32x128xf32> -> vector<32x128xf32>
    %80 = arith.addf %76, %79 : vector<32x128xf32>
    %c0_34 = arith.constant 0 : index
    %c384 = arith.constant 384 : index
    %c0_35 = arith.constant 0 : index
    %81 = vector.load %arg7[%c0_34, %c384, %c0_35] : memref<1x1536x128xf32, #tpu.memory_space<vmem>>, vector<1x128x128xf32>
    %82 = vector.shape_cast %81 : vector<1x128x128xf32> to vector<128x128xf32>
    %cst_36 = arith.constant dense<0.000000e+00> : vector<32x128xf32>
    %83 = tpu.matmul %53, %82, %cst_36 {dimension_numbers = #tpu.dot_dimension_numbers<[1], [0], [0], [1], [0, 0, 1, 1], [], []>} : vector<32x128xf32>, vector<128x128xf32>, vector<32x128xf32> -> vector<32x128xf32>
    %84 = arith.addf %80, %83 : vector<32x128xf32>
    %c0_37 = arith.constant 0 : index
    %c512 = arith.constant 512 : index
    %c0_38 = arith.constant 0 : index
    %85 = vector.load %arg7[%c0_37, %c512, %c0_38] : memref<1x1536x128xf32, #tpu.memory_space<vmem>>, vector<1x128x128xf32>
    %86 = vector.shape_cast %85 : vector<1x128x128xf32> to vector<128x128xf32>
    %cst_39 = arith.constant dense<0.000000e+00> : vector<32x128xf32>
    %87 = tpu.matmul %55, %86, %cst_39 {dimension_numbers = #tpu.dot_dimension_numbers<[1], [0], [0], [1], [0, 0, 1, 1], [], []>} : vector<32x128xf32>, vector<128x128xf32>, vector<32x128xf32> -> vector<32x128xf32>
    %88 = arith.addf %84, %87 : vector<32x128xf32>
    %c0_40 = arith.constant 0 : index
    %c640 = arith.constant 640 : index
    %c0_41 = arith.constant 0 : index
    %89 = vector.load %arg7[%c0_40, %c640, %c0_41] : memref<1x1536x128xf32, #tpu.memory_space<vmem>>, vector<1x128x128xf32>
    %90 = vector.shape_cast %89 : vector<1x128x128xf32> to vector<128x128xf32>
    %cst_42 = arith.constant dense<0.000000e+00> : vector<32x128xf32>
    %91 = tpu.matmul %57, %90, %cst_42 {dimension_numbers = #tpu.dot_dimension_numbers<[1], [0], [0], [1], [0, 0, 1, 1], [], []>} : vector<32x128xf32>, vector<128x128xf32>, vector<32x128xf32> -> vector<32x128xf32>
    %92 = arith.addf %88, %91 : vector<32x128xf32>
    %c0_43 = arith.constant 0 : index
    %c768 = arith.constant 768 : index
    %c0_44 = arith.constant 0 : index
    %93 = vector.load %arg7[%c0_43, %c768, %c0_44] : memref<1x1536x128xf32, #tpu.memory_space<vmem>>, vector<1x128x128xf32>
    %94 = vector.shape_cast %93 : vector<1x128x128xf32> to vector<128x128xf32>
    %cst_45 = arith.constant dense<0.000000e+00> : vector<32x128xf32>
    %95 = tpu.matmul %59, %94, %cst_45 {dimension_numbers = #tpu.dot_dimension_numbers<[1], [0], [0], [1], [0, 0, 1, 1], [], []>} : vector<32x128xf32>, vector<128x128xf32>, vector<32x128xf32> -> vector<32x128xf32>
    %96 = arith.addf %92, %95 : vector<32x128xf32>
    %c0_46 = arith.constant 0 : index
    %c896 = arith.constant 896 : index
    %c0_47 = arith.constant 0 : index
    %97 = vector.load %arg7[%c0_46, %c896, %c0_47] : memref<1x1536x128xf32, #tpu.memory_space<vmem>>, vector<1x128x128xf32>
    %98 = vector.shape_cast %97 : vector<1x128x128xf32> to vector<128x128xf32>
    %cst_48 = arith.constant dense<0.000000e+00> : vector<32x128xf32>
    %99 = tpu.matmul %61, %98, %cst_48 {dimension_numbers = #tpu.dot_dimension_numbers<[1], [0], [0], [1], [0, 0, 1, 1], [], []>} : vector<32x128xf32>, vector<128x128xf32>, vector<32x128xf32> -> vector<32x128xf32>
    %100 = arith.addf %96, %99 : vector<32x128xf32>
    %c0_49 = arith.constant 0 : index
    %c1024 = arith.constant 1024 : index
    %c0_50 = arith.constant 0 : index
    %101 = vector.load %arg7[%c0_49, %c1024, %c0_50] : memref<1x1536x128xf32, #tpu.memory_space<vmem>>, vector<1x128x128xf32>
    %102 = vector.shape_cast %101 : vector<1x128x128xf32> to vector<128x128xf32>
    %cst_51 = arith.constant dense<0.000000e+00> : vector<32x128xf32>
    %103 = tpu.matmul %63, %102, %cst_51 {dimension_numbers = #tpu.dot_dimension_numbers<[1], [0], [0], [1], [0, 0, 1, 1], [], []>} : vector<32x128xf32>, vector<128x128xf32>, vector<32x128xf32> -> vector<32x128xf32>
    %104 = arith.addf %100, %103 : vector<32x128xf32>
    %c0_52 = arith.constant 0 : index
    %c1152 = arith.constant 1152 : index
    %c0_53 = arith.constant 0 : index
    %105 = vector.load %arg7[%c0_52, %c1152, %c0_53] : memref<1x1536x128xf32, #tpu.memory_space<vmem>>, vector<1x128x128xf32>
    %106 = vector.shape_cast %105 : vector<1x128x128xf32> to vector<128x128xf32>
    %cst_54 = arith.constant dense<0.000000e+00> : vector<32x128xf32>
    %107 = tpu.matmul %65, %106, %cst_54 {dimension_numbers = #tpu.dot_dimension_numbers<[1], [0], [0], [1], [0, 0, 1, 1], [], []>} : vector<32x128xf32>, vector<128x128xf32>, vector<32x128xf32> -> vector<32x128xf32>
    %108 = arith.addf %104, %107 : vector<32x128xf32>
    %c0_55 = arith.constant 0 : index
    %c1280 = arith.constant 1280 : index
    %c0_56 = arith.constant 0 : index
    %109 = vector.load %arg7[%c0_55, %c1280, %c0_56] : memref<1x1536x128xf32, #tpu.memory_space<vmem>>, vector<1x128x128xf32>
    %110 = vector.shape_cast %109 : vector<1x128x128xf32> to vector<128x128xf32>
    %cst_57 = arith.constant dense<0.000000e+00> : vector<32x128xf32>
    %111 = tpu.matmul %67, %110, %cst_57 {dimension_numbers = #tpu.dot_dimension_numbers<[1], [0], [0], [1], [0, 0, 1, 1], [], []>} : vector<32x128xf32>, vector<128x128xf32>, vector<32x128xf32> -> vector<32x128xf32>
    %112 = arith.addf %108, %111 : vector<32x128xf32>
    %c0_58 = arith.constant 0 : index
    %c1408 = arith.constant 1408 : index
    %c0_59 = arith.constant 0 : index
    %113 = vector.load %arg7[%c0_58, %c1408, %c0_59] : memref<1x1536x128xf32, #tpu.memory_space<vmem>>, vector<1x128x128xf32>
    %114 = vector.shape_cast %113 : vector<1x128x128xf32> to vector<128x128xf32>
    %cst_60 = arith.constant dense<0.000000e+00> : vector<32x128xf32>
    %115 = tpu.matmul %69, %114, %cst_60 {dimension_numbers = #tpu.dot_dimension_numbers<[1], [0], [0], [1], [0, 0, 1, 1], [], []>} : vector<32x128xf32>, vector<128x128xf32>, vector<32x128xf32> -> vector<32x128xf32>
    %116 = arith.addf %112, %115 : vector<32x128xf32>
    %c0_61 = arith.constant 0 : index
    %c0_62 = arith.constant 0 : index
    %c0_63 = arith.constant 0 : index
    %117 = vector.load %arg8[%c0_61, %c0_62, %c0_63] : memref<1x1x128xf32, #tpu.memory_space<vmem>>, vector<1x1x128xf32>
    %118 = vector.shape_cast %117 : vector<1x1x128xf32> to vector<1x128xf32>
    %119 = vector.broadcast %118 : vector<1x128xf32> to vector<32x128xf32>
    %120 = arith.addf %116, %119 : vector<32x128xf32>
    %cst_64 = arith.constant 0.000000e+00 : f32
    %121 = vector.broadcast %cst_64 : f32 to vector<32x128xf32>
    %122 = arith.maximumf %120, %121 : vector<32x128xf32>
    %123 = arith.addf %122, %3 : vector<32x128xf32>
    %c0_65 = arith.constant 0 : index
    %c0_66 = arith.constant 0 : index
    %124 = vector.load %arg17[%c0_65, %c0_66] : memref<32x128xf32, #tpu.memory_space<vmem>>, vector<32x128xf32>
    tpu.vector_store %arg17[%c0_65, %c0_66], %123 {strides = array<i32>} : memref<32x128xf32, #tpu.memory_space<vmem>>, vector<32x128xf32>,
    %c3_i32 = arith.constant 3 : i32
    %125 = arith.cmpi eq, %arg0, %c3_i32 : i32
    %126 = arith.extui %125 : i1 to i32
    %c0_i32_67 = arith.constant 0 : i32
    %127 = arith.cmpi ne, %126, %c0_i32_67 : i32
    scf.if %127 {
      %c0_68 = arith.constant 0 : index
      %c0_69 = arith.constant 0 : index
      %128 = vector.load %arg17[%c0_68, %c0_69] : memref<32x128xf32, #tpu.memory_space<vmem>>, vector<32x128xf32>
      %c0_70 = arith.constant 0 : index
      %c0_71 = arith.constant 0 : index
      %129 = vector.load %arg9[%c0_70, %c0_71] : memref<4x32xf32, #tpu.memory_space<vmem>>, vector<4x32xf32>
      %cst_72 = arith.constant dense<0.000000e+00> : vector<4x128xf32>
      %130 = tpu.matmul %129, %128, %cst_72 {dimension_numbers = #tpu.dot_dimension_numbers<[1], [0], [0], [1], [0, 0, 1, 1], [], []>} : vector<4x32xf32>, vector<32x128xf32>, vector<4x128xf32> -> vector<4x128xf32>
      %c0_73 = arith.constant 0 : index
      %c0_74 = arith.constant 0 : index
      %131 = vector.load %arg10[%c0_73, %c0_74] : memref<128x128xf32, #tpu.memory_space<vmem>>, vector<128x128xf32>
      %cst_75 = arith.constant dense<0.000000e+00> : vector<4x128xf32>
      %132 = tpu.matmul %130, %131, %cst_75 {dimension_numbers = #tpu.dot_dimension_numbers<[1], [0], [0], [1], [0, 0, 1, 1], [], []>} : vector<4x128xf32>, vector<128x128xf32>, vector<4x128xf32> -> vector<4x128xf32>
      %c0_76 = arith.constant 0 : index
      %c0_77 = arith.constant 0 : index
      %133 = vector.load %arg11[%c0_76, %c0_77] : memref<1x128xf32, #tpu.memory_space<vmem>>, vector<1x128xf32>
      %134 = vector.broadcast %133 : vector<1x128xf32> to vector<4x128xf32>
      %135 = arith.addf %132, %134 : vector<4x128xf32>
      %cst_78 = arith.constant 0.000000e+00 : f32
      %136 = vector.broadcast %cst_78 : f32 to vector<4x128xf32>
      %137 = arith.maximumf %135, %136 : vector<4x128xf32>
      %c0_79 = arith.constant 0 : index
      %c0_80 = arith.constant 0 : index
      %138 = vector.load %arg12[%c0_79, %c0_80] : memref<128x128xf32, #tpu.memory_space<vmem>>, vector<128x128xf32>
      %cst_81 = arith.constant dense<0.000000e+00> : vector<4x128xf32>
      %139 = tpu.matmul %137, %138, %cst_81 {dimension_numbers = #tpu.dot_dimension_numbers<[1], [0], [0], [1], [0, 0, 1, 1], [], []>} : vector<4x128xf32>, vector<128x128xf32>, vector<4x128xf32> -> vector<4x128xf32>
      %c0_82 = arith.constant 0 : index
      %c0_83 = arith.constant 0 : index
      %140 = vector.load %arg13[%c0_82, %c0_83] : memref<1x128xf32, #tpu.memory_space<vmem>>, vector<1x128xf32>
      %141 = vector.broadcast %140 : vector<1x128xf32> to vector<4x128xf32>
      %142 = arith.addf %139, %141 : vector<4x128xf32>
      %cst_84 = arith.constant 0.000000e+00 : f32
      %143 = vector.broadcast %cst_84 : f32 to vector<4x128xf32>
      %144 = arith.maximumf %142, %143 : vector<4x128xf32>
      %c0_85 = arith.constant 0 : index
      %c0_86 = arith.constant 0 : index
      %145 = vector.load %arg14[%c0_85, %c0_86] : memref<128x128xf32, #tpu.memory_space<vmem>>, vector<128x128xf32>
      %cst_87 = arith.constant dense<0.000000e+00> : vector<4x128xf32>
      %146 = tpu.matmul %144, %145, %cst_87 {dimension_numbers = #tpu.dot_dimension_numbers<[1], [0], [0], [1], [0, 0, 1, 1], [], []>} : vector<4x128xf32>, vector<128x128xf32>, vector<4x128xf32> -> vector<4x128xf32>
      %c0_88 = arith.constant 0 : index
      %c0_89 = arith.constant 0 : index
      %147 = vector.load %arg15[%c0_88, %c0_89] : memref<1x128xf32, #tpu.memory_space<vmem>>, vector<1x128xf32>
      %148 = vector.broadcast %147 : vector<1x128xf32> to vector<4x128xf32>
      %149 = arith.addf %146, %148 : vector<4x128xf32>
      %c0_90 = arith.constant 0 : index
      %c0_91 = arith.constant 0 : index
      %150 = vector.load %arg16[%c0_90, %c0_91] : memref<4x128xf32, #tpu.memory_space<vmem>>, vector<4x128xf32>
      tpu.vector_store %arg16[%c0_90, %c0_91], %149 {strides = array<i32>} : memref<4x128xf32, #tpu.memory_space<vmem>>, vector<4x128xf32>,
    } else {
    }
    return
  }
  func.func @transform_0(%arg0: i32) -> (i32, i32) {
    %c0_i32 = arith.constant 0 : i32
    %c0_i32_0 = arith.constant 0 : i32
    %c0_i32_1 = arith.constant 0 : i32
    return %c0_i32, %c0_i32_0 : i32, i32
  }
  func.func @transform_1(%arg0: i32) -> (i32, i32) {
    %c0_i32 = arith.constant 0 : i32
    %c0_i32_0 = arith.constant 0 : i32
    %c0_i32_1 = arith.constant 0 : i32
    return %c0_i32, %c0_i32_0 : i32, i32
  }
  func.func @transform_2(%arg0: i32) -> (i32, i32) {
    %c0_i32 = arith.constant 0 : i32
    %c0_i32_0 = arith.constant 0 : i32
    %c0_i32_1 = arith.constant 0 : i32
    return %c0_i32, %c0_i32_0 : i32, i32
  }
  func.func @transform_3(%arg0: i32) -> (i32, i32) {
    %c0_i32 = arith.constant 0 : i32
    %c0_i32_0 = arith.constant 0 : i32
    %c0_i32_1 = arith.constant 0 : i32
    return %c0_i32, %c0_i32_0 : i32, i32
  }
  func.func @transform_4(%arg0: i32) -> (i32, i32) {
    %c0_i32 = arith.constant 0 : i32
    %c0_i32_0 = arith.constant 0 : i32
    %c0_i32_1 = arith.constant 0 : i32
    return %c0_i32, %c0_i32_0 : i32, i32
  }
  func.func @transform_5(%arg0: i32) -> (i32, i32) {
    %c0_i32 = arith.constant 0 : i32
    %c0_i32_0 = arith.constant 0 : i32
    %c0_i32_1 = arith.constant 0 : i32
    return %c0_i32, %c0_i32_0 : i32, i32
  }
  func.func @transform_6(%arg0: i32) -> (i32, i32, i32) {
    %c0_i32 = arith.constant 0 : i32
    %c0_i32_0 = arith.constant 0 : i32
    %c0_i32_1 = arith.constant 0 : i32
    return %arg0, %c0_i32, %c0_i32_0 : i32, i32, i32
  }
  func.func @transform_7(%arg0: i32) -> (i32, i32, i32) {
    %c0_i32 = arith.constant 0 : i32
    %c0_i32_0 = arith.constant 0 : i32
    %c0_i32_1 = arith.constant 0 : i32
    return %arg0, %c0_i32, %c0_i32_0 : i32, i32, i32
  }
  func.func @transform_8(%arg0: i32) -> (i32, i32) {
    %c0_i32 = arith.constant 0 : i32
    %c0_i32_0 = arith.constant 0 : i32
    %c0_i32_1 = arith.constant 0 : i32
    return %c0_i32, %c0_i32_0 : i32, i32
  }
  func.func @transform_9(%arg0: i32) -> (i32, i32) {
    %c0_i32 = arith.constant 0 : i32
    %c0_i32_0 = arith.constant 0 : i32
    %c0_i32_1 = arith.constant 0 : i32
    return %c0_i32, %c0_i32_0 : i32, i32
  }
  func.func @transform_10(%arg0: i32) -> (i32, i32) {
    %c0_i32 = arith.constant 0 : i32
    %c0_i32_0 = arith.constant 0 : i32
    %c0_i32_1 = arith.constant 0 : i32
    return %c0_i32, %c0_i32_0 : i32, i32
  }
  func.func @transform_11(%arg0: i32) -> (i32, i32) {
    %c0_i32 = arith.constant 0 : i32
    %c0_i32_0 = arith.constant 0 : i32
    %c0_i32_1 = arith.constant 0 : i32
    return %c0_i32, %c0_i32_0 : i32, i32
  }
  func.func @transform_12(%arg0: i32) -> (i32, i32) {
    %c0_i32 = arith.constant 0 : i32
    %c0_i32_0 = arith.constant 0 : i32
    %c0_i32_1 = arith.constant 0 : i32
    return %c0_i32, %c0_i32_0 : i32, i32
  }
  func.func @transform_13(%arg0: i32) -> (i32, i32) {
    %c0_i32 = arith.constant 0 : i32
    %c0_i32_0 = arith.constant 0 : i32
    %c0_i32_1 = arith.constant 0 : i32
    return %c0_i32, %c0_i32_0 : i32, i32
  }
  func.func @transform_14(%arg0: i32) -> (i32, i32) {
    %c0_i32 = arith.constant 0 : i32
    %c0_i32_0 = arith.constant 0 : i32
    %c0_i32_1 = arith.constant 0 : i32
    return %c0_i32, %c0_i32_0 : i32, i32
  }
  func.func @transform_15(%arg0: i32) -> (i32, i32) {
    %c0_i32 = arith.constant 0 : i32
    %c0_i32_0 = arith.constant 0 : i32
    %c0_i32_1 = arith.constant 0 : i32
    return %c0_i32, %c0_i32_0 : i32, i32
  }
}

</mosaic_0001>

<llo_original>
// kernel: tpu_custom_call.1
$region0: #{tpu_custom_call.1}
  #allocation0 [shape = 'u32[]', space=smem, size = 0x4, offset = 0x4, fixed_abs, tag = 'smem constant byte address 0x4 - core index']
  #allocation1 [shape = 'u32[144,128]{1,0:T(1,128)}', space=vmem, size = 0x12000, scoped, tag = 'internal scratch']
  #allocation2 [shape = 'f32[32,128]{1,0:T(8,128)}', space=vmem, size = 0x4000, scoped, tag = 'scratch operand']
  %s0 = inlined_call_operand.hbm [shape: f32[32,128], index: 0, kind: input, shape index: {}]
  %s1 = inlined_call_operand.hbm [shape: f32[32,32], index: 1, kind: input, shape index: {}]
  %s2 = inlined_call_operand.vmem [shape: f32[32,1], index: 2, kind: input, shape index: {}]
  %s3 = inlined_call_operand.vmem [shape: f32[32,1], index: 3, kind: input, shape index: {}]
  %s4 = inlined_call_operand.vmem [shape: f32[32,1], index: 4, kind: input, shape index: {}]
  %s5 = inlined_call_operand.vmem [shape: f32[32,1], index: 5, kind: input, shape index: {}]
  %s6 = inlined_call_operand.hbm [shape: f32[4,1536,128], index: 6, kind: input, shape index: {}]
  %s7 = inlined_call_operand.hbm [shape: f32[4,1,128], index: 7, kind: input, shape index: {}]
  %s8 = inlined_call_operand.hbm [shape: f32[4,32], index: 8, kind: input, shape index: {}]
  %s9 = inlined_call_operand.hbm [shape: f32[128,128], index: 9, kind: input, shape index: {}]
  %s10 = inlined_call_operand.hbm [shape: f32[1,128], index: 10, kind: input, shape index: {}]
  %s11 = inlined_call_operand.hbm [shape: f32[128,128], index: 11, kind: input, shape index: {}]
  %s12 = inlined_call_operand.hbm [shape: f32[1,128], index: 12, kind: input, shape index: {}]
  %s13 = inlined_call_operand.hbm [shape: f32[128,128], index: 13, kind: input, shape index: {}]
  %s14 = inlined_call_operand.hbm [shape: f32[1,128], index: 14, kind: input, shape index: {}]
  %s15 = inlined_call_operand.hbm [shape: f32[4,128], index: 15, kind: output, shape index: {}]
  %s16 = sld [smem:[#allocation0]]
  $region145: #{tpu_custom_call.1} parent=0
    _
  %s18 = ssub.s32 1, %s16
  %s19 = scalar_select 0, %s18, %s16
  $region1: #{tpu_custom_call.1} parent=0
    #allocation3 [shape = 'u8[16384]{0}', space=vmem, size = 0x4000, scoped, tag = 'input window, operand 0, single buffered']
    #allocation4 [shape = 's32[2]{0}', space=sflag, size = 0x8, scoped, tag = 'scoped memory for tpu_custom_call.1']
    #allocation5 [shape = 's32[2]{0}', space=sflag, size = 0x8, scoped, tag = 'scoped memory for tpu_custom_call.1']
    #allocation6 [shape = 'u8[16384]{0}', space=vmem, size = 0x4000, scoped, tag = 'input window, operand 1, single buffered']
    #allocation7 [shape = 's32[1]{0}', space=sflag, size = 0x4, scoped, tag = 'scoped memory for tpu_custom_call.1']
    #allocation8 [shape = 'u8[1572864]{0}', space=vmem, size = 0x180000, scoped, tag = 'input window, operand 6']
    #allocation9 [shape = 'u8[1024]{0}', space=vmem, size = 0x400, scoped, tag = 'input window, operand 7']
    #allocation10 [shape = 'u8[2048]{0}', space=vmem, size = 0x800, scoped, tag = 'input window, operand 8, single buffered']
    #allocation11 [shape = 'u8[65536]{0}', space=vmem, size = 0x10000, scoped, tag = 'input window, operand 9, single buffered']
    #allocation12 [shape = 's32[1]{0}', space=sflag, size = 0x4, scoped, tag = 'scoped memory for tpu_custom_call.1']
    #allocation13 [shape = 'u8[512]{0}', space=vmem, size = 0x400, scoped, tag = 'input window, operand 10, single buffered']
    #allocation14 [shape = 'u8[65536]{0}', space=vmem, size = 0x10000, scoped, tag = 'input window, operand 11, single buffered']
    #allocation15 [shape = 's32[1]{0}', space=sflag, size = 0x4, scoped, tag = 'scoped memory for tpu_custom_call.1']
    #allocation16 [shape = 'u8[512]{0}', space=vmem, size = 0x400, scoped, tag = 'input window, operand 12, single buffered']
    #allocation17 [shape = 'u8[65536]{0}', space=vmem, size = 0x10000, scoped, tag = 'input window, operand 13, single buffered']
    #allocation18 [shape = 's32[1]{0}', space=sflag, size = 0x4, scoped, tag = 'scoped memory for tpu_custom_call.1']
    #allocation19 [shape = 'u8[512]{0}', space=vmem, size = 0x400, scoped, tag = 'input window, operand 14, single buffered']
    #allocation20 [shape = 'u8[2048]{0}', space=vmem, size = 0x800, scoped, tag = 'output window, operand 0, single buffered']
    %20 = vsyncpa [#allocation4], 0
    %21 = vsyncpa [#allocation7], 0
    %22 = vsyncpa [#allocation12], 0
    %23 = vsyncpa [#allocation15], 0
    %24 = vsyncpa [#allocation18], 0
    %25 = vsyncpa [#allocation5], 0
    loop: start=0, step=1, limit=6
    $region2: #{tpu_custom_call.1} parent=1 // loop_pre_header
      _
    $region3: #{tpu_custom_call.1} parent=1 // loop_header
      %s27 = sphi 0, %s31
      %p28 = scmp.ge.s32.totalorder %s27, 6
      %s35 = sphi 0, %s35
      %s37 = sphi 0, %s35
      %s38 = sphi 0, %s37
      %s52 = sphi 0, %s38
      %s56 = sphi 0, %s56
      %s58 = sphi 0, %s56
      %s59 = sphi 0, %s58
      %s73 = sphi 0, %s59
      %s77 = sphi 0, %s77
      %s79 = sphi 0, %s77
      %s80 = sphi 0, %s79
      %s94 = sphi 0, %s80
      %s98 = sphi 0, %s98
      %s100 = sphi 0, %s98
      %s101 = sphi 0, %s100
      %s115 = sphi 0, %s101
      %s119 = sphi 0, %s119
      %s121 = sphi 0, %s119
      %s122 = sphi 0, %s121
      %s136 = sphi 0, %s122
      %s140 = sphi 0, %s140
      %s142 = sphi 0, %s140
      %s143 = sphi 0, %s142
      %s157 = sphi 0, %s143
      %s163 = sphi 0, %s165
      %s166 = sphi 0, %s163
      %s167 = sphi 0, %s166
      %s183 = sphi 0, %s167
      %s189 = sphi 0, %s191
      %s192 = sphi 0, %s189
      %s193 = sphi 0, %s192
      %s209 = sphi 0, %s193
      %s213 = sphi 0, %s213
      %s215 = sphi 0, %s213
      %s216 = sphi 0, %s215
      %s230 = sphi 0, %s216
      %s234 = sphi 0, %s234
      %s236 = sphi 0, %s234
      %s237 = sphi 0, %s236
      %s251 = sphi 0, %s237
      %s255 = sphi 0, %s255
      %s257 = sphi 0, %s255
      %s258 = sphi 0, %s257
      %s272 = sphi 0, %s258
      %s276 = sphi 0, %s276
      %s278 = sphi 0, %s276
      %s279 = sphi 0, %s278
      %s293 = sphi 0, %s279
      %s297 = sphi 0, %s297
      %s299 = sphi 0, %s297
      %s300 = sphi 0, %s299
      %s314 = sphi 0, %s300
      %s318 = sphi 0, %s318
      %s320 = sphi 0, %s318
      %s321 = sphi 0, %s320
      %s335 = sphi 0, %s321
      %s339 = sphi 0, %s339
      %s341 = sphi 0, %s339
      %s342 = sphi 0, %s341
      %s356 = sphi 0, %s342
      %s360 = sphi 0, %s360
      %s362 = sphi 0, %s360
      %s363 = sphi 0, %s362
      %s377 = sphi 0, %s363
    $region4: #{tpu_custom_call.1} parent=1 // loop_header_branch
      %30 = sbr.rel (%p28) target = $region8
    $region5: #{tpu_custom_call.1} parent=1 // loop_body
      %s32 = ssub.s32 %s27, 1
      %s33 = ssub.s32 %s27, 2
      %s34 = sadd.s32 %s27, 1
      %s36 = sadd.s32 %s35, 1
      %p39 = scmp.eq.s32.totalorder %s27, 3
      %p40 = scmp.ne.s32.totalorder %s35, %s37
      %p41 = scmp.eq.s32.totalorder %s27, 0
      %p42 = por %p40, %p41
      %p43 = scmp.ne.s32.totalorder %s35, %s37
      %p44 = scmp.eq.s32.totalorder %s32, 3
      %p45 = por %p43, %p44
      %p46 = scmp.ne.s32.totalorder %s37, %s38
      %p47 = scmp.eq.s32.totalorder %s32, 0
      %p48 = por %p46, %p47
      %p49 = scmp.ne.s32.totalorder %s37, %s38
      %p50 = scmp.eq.s32.totalorder %s33, 3
      %p51 = por %p49, %p50
      %p53 = scmp.ne.s32.totalorder %s38, %s52
      %p54 = scmp.eq.s32.totalorder %s33, 0
      %p55 = por %p53, %p54
      %s57 = sadd.s32 %s56, 1
      %p60 = scmp.eq.s32.totalorder %s27, 3
      %p61 = scmp.ne.s32.totalorder %s56, %s58
      %p62 = scmp.eq.s32.totalorder %s27, 0
      %p63 = por %p61, %p62
      %p64 = scmp.ne.s32.totalorder %s56, %s58
      %p65 = scmp.eq.s32.totalorder %s32, 3
      %p66 = por %p64, %p65
      %p67 = scmp.ne.s32.totalorder %s58, %s59
      %p68 = scmp.eq.s32.totalorder %s32, 0
      %p69 = por %p67, %p68
      %p70 = scmp.ne.s32.totalorder %s58, %s59
      %p71 = scmp.eq.s32.totalorder %s33, 3
      %p72 = por %p70, %p71
      %p74 = scmp.ne.s32.totalorder %s59, %s73
      %p75 = scmp.eq.s32.totalorder %s33, 0
      %p76 = por %p74, %p75
      %s78 = sadd.s32 %s77, 1
      %p81 = scmp.eq.s32.totalorder %s27, 3
      %p82 = scmp.ne.s32.totalorder %s77, %s79
      %p83 = scmp.eq.s32.totalorder %s27, 0
      %p84 = por %p82, %p83
      %p85 = scmp.ne.s32.totalorder %s77, %s79
      %p86 = scmp.eq.s32.totalorder %s32, 3
      %p87 = por %p85, %p86
      %p88 = scmp.ne.s32.totalorder %s79, %s80
      %p89 = scmp.eq.s32.totalorder %s32, 0
      %p90 = por %p88, %p89
      %p91 = scmp.ne.s32.totalorder %s79, %s80
      %p92 = scmp.eq.s32.totalorder %s33, 3
      %p93 = por %p91, %p92
      %p95 = scmp.ne.s32.totalorder %s80, %s94
      %p96 = scmp.eq.s32.totalorder %s33, 0
      %p97 = por %p95, %p96
      %s99 = sadd.s32 %s98, 1
      %p102 = scmp.eq.s32.totalorder %s27, 3
      %p103 = scmp.ne.s32.totalorder %s98, %s100
      %p104 = scmp.eq.s32.totalorder %s27, 0
      %p105 = por %p103, %p104
      %p106 = scmp.ne.s32.totalorder %s98, %s100
      %p107 = scmp.eq.s32.totalorder %s32, 3
      %p108 = por %p106, %p107
      %p109 = scmp.ne.s32.totalorder %s100, %s101
      %p110 = scmp.eq.s32.totalorder %s32, 0
      %p111 = por %p109, %p110
      %p112 = scmp.ne.s32.totalorder %s100, %s101
      %p113 = scmp.eq.s32.totalorder %s33, 3
      %p114 = por %p112, %p113
      %p116 = scmp.ne.s32.totalorder %s101, %s115
      %p117 = scmp.eq.s32.totalorder %s33, 0
      %p118 = por %p116, %p117
      %s120 = sadd.s32 %s119, 1
      %p123 = scmp.eq.s32.totalorder %s27, 3
      %p124 = scmp.ne.s32.totalorder %s119, %s121
      %p125 = scmp.eq.s32.totalorder %s27, 0
      %p126 = por %p124, %p125
      %p127 = scmp.ne.s32.totalorder %s119, %s121
      %p128 = scmp.eq.s32.totalorder %s32, 3
      %p129 = por %p127, %p128
      %p130 = scmp.ne.s32.totalorder %s121, %s122
      %p131 = scmp.eq.s32.totalorder %s32, 0
      %p132 = por %p130, %p131
      %p133 = scmp.ne.s32.totalorder %s121, %s122
      %p134 = scmp.eq.s32.totalorder %s33, 3
      %p135 = por %p133, %p134
      %p137 = scmp.ne.s32.totalorder %s122, %s136
      %p138 = scmp.eq.s32.totalorder %s33, 0
      %p139 = por %p137, %p138
      %s141 = sadd.s32 %s140, 1
      %p144 = scmp.eq.s32.totalorder %s27, 3
      %p145 = scmp.ne.s32.totalorder %s140, %s142
      %p146 = scmp.eq.s32.totalorder %s27, 0
      %p147 = por %p145, %p146
      %p148 = scmp.ne.s32.totalorder %s140, %s142
      %p149 = scmp.eq.s32.totalorder %s32, 3
      %p150 = por %p148, %p149
      %p151 = scmp.ne.s32.totalorder %s142, %s143
      %p152 = scmp.eq.s32.totalorder %s32, 0
      %p153 = por %p151, %p152
      %p154 = scmp.ne.s32.totalorder %s142, %s143
      %p155 = scmp.eq.s32.totalorder %s33, 3
      %p156 = por %p154, %p155
      %p158 = scmp.ne.s32.totalorder %s143, %s157
      %p159 = scmp.eq.s32.totalorder %s33, 0
      %p160 = por %p158, %p159
      %s161 = ssub.s32 %s27, %s34
      %p162 = scmp.eq.s32.totalorder %s161, 0
      %s164 = sadd.s32 %s163, 1
      %s165 = scalar_select %p162, %s163, %s164
      %p168 = pneg %p162
      %p169 = scmp.eq.s32.totalorder %s27, 3
      %p170 = por %p168, %p169
      %p171 = scmp.ne.s32.totalorder %s163, %s166
      %p172 = scmp.eq.s32.totalorder %s27, 0
      %p173 = por %p171, %p172
      %p174 = scmp.ne.s32.totalorder %s163, %s166
      %p175 = scmp.eq.s32.totalorder %s32, 3
      %p176 = por %p174, %p175
      %p177 = scmp.ne.s32.totalorder %s166, %s167
      %p178 = scmp.eq.s32.totalorder %s32, 0
      %p179 = por %p177, %p178
      %p180 = scmp.ne.s32.totalorder %s166, %s167
      %p181 = scmp.eq.s32.totalorder %s33, 3
      %p182 = por %p180, %p181
      %p184 = scmp.ne.s32.totalorder %s167, %s183
      %p185 = scmp.eq.s32.totalorder %s33, 0
      %p186 = por %p184, %p185
      %s187 = ssub.s32 %s27, %s34
      %p188 = scmp.eq.s32.totalorder %s187, 0
      %s190 = sadd.s32 %s189, 1
      %s191 = scalar_select %p188, %s189, %s190
      %p194 = pneg %p188
      %p195 = scmp.eq.s32.totalorder %s27, 3
      %p196 = por %p194, %p195
      %p197 = scmp.ne.s32.totalorder %s189, %s192
      %p198 = scmp.eq.s32.totalorder %s27, 0
      %p199 = por %p197, %p198
      %p200 = scmp.ne.s32.totalorder %s189, %s192
      %p201 = scmp.eq.s32.totalorder %s32, 3
      %p202 = por %p200, %p201
      %p203 = scmp.ne.s32.totalorder %s192, %s193
      %p204 = scmp.eq.s32.totalorder %s32, 0
      %p205 = por %p203, %p204
      %p206 = scmp.ne.s32.totalorder %s192, %s193
      %p207 = scmp.eq.s32.totalorder %s33, 3
      %p208 = por %p206, %p207
      %p210 = scmp.ne.s32.totalorder %s193, %s209
      %p211 = scmp.eq.s32.totalorder %s33, 0
      %p212 = por %p210, %p211
      %s214 = sadd.s32 %s213, 1
      %p217 = scmp.eq.s32.totalorder %s27, 3
      %p218 = scmp.ne.s32.totalorder %s213, %s215
      %p219 = scmp.eq.s32.totalorder %s27, 0
      %p220 = por %p218, %p219
      %p221 = scmp.ne.s32.totalorder %s213, %s215
      %p222 = scmp.eq.s32.totalorder %s32, 3
      %p223 = por %p221, %p222
      %p224 = scmp.ne.s32.totalorder %s215, %s216
      %p225 = scmp.eq.s32.totalorder %s32, 0
      %p226 = por %p224, %p225
      %p227 = scmp.ne.s32.totalorder %s215, %s216
      %p228 = scmp.eq.s32.totalorder %s33, 3
      %p229 = por %p227, %p228
      %p231 = scmp.ne.s32.totalorder %s216, %s230
      %p232 = scmp.eq.s32.totalorder %s33, 0
      %p233 = por %p231, %p232
      %s235 = sadd.s32 %s234, 1
      %p238 = scmp.eq.s32.totalorder %s27, 3
      %p239 = scmp.ne.s32.totalorder %s234, %s236
      %p240 = scmp.eq.s32.totalorder %s27, 0
      %p241 = por %p239, %p240
      %p242 = scmp.ne.s32.totalorder %s234, %s236
      %p243 = scmp.eq.s32.totalorder %s32, 3
      %p244 = por %p242, %p243
      %p245 = scmp.ne.s32.totalorder %s236, %s237
      %p246 = scmp.eq.s32.totalorder %s32, 0
      %p247 = por %p245, %p246
      %p248 = scmp.ne.s32.totalorder %s236, %s237
      %p249 = scmp.eq.s32.totalorder %s33, 3
      %p250 = por %p248, %p249
      %p252 = scmp.ne.s32.totalorder %s237, %s251
      %p253 = scmp.eq.s32.totalorder %s33, 0
      %p254 = por %p252, %p253
      %s256 = sadd.s32 %s255, 1
      %p259 = scmp.eq.s32.totalorder %s27, 3
      %p260 = scmp.ne.s32.totalorder %s255, %s257
      %p261 = scmp.eq.s32.totalorder %s27, 0
      %p262 = por %p260, %p261
      %p263 = scmp.ne.s32.totalorder %s255, %s257
      %p264 = scmp.eq.s32.totalorder %s32, 3
      %p265 = por %p263, %p264
      %p266 = scmp.ne.s32.totalorder %s257, %s258
      %p267 = scmp.eq.s32.totalorder %s32, 0
      %p268 = por %p266, %p267
      %p269 = scmp.ne.s32.totalorder %s257, %s258
      %p270 = scmp.eq.s32.totalorder %s33, 3
      %p271 = por %p269, %p270
      %p273 = scmp.ne.s32.totalorder %s258, %s272
      %p274 = scmp.eq.s32.totalorder %s33, 0
      %p275 = por %p273, %p274
      %s277 = sadd.s32 %s276, 1
      %p280 = scmp.eq.s32.totalorder %s27, 3
      %p281 = scmp.ne.s32.totalorder %s276, %s278
      %p282 = scmp.eq.s32.totalorder %s27, 0
      %p283 = por %p281, %p282
      %p284 = scmp.ne.s32.totalorder %s276, %s278
      %p285 = scmp.eq.s32.totalorder %s32, 3
      %p286 = por %p284, %p285
      %p287 = scmp.ne.s32.totalorder %s278, %s279
      %p288 = scmp.eq.s32.totalorder %s32, 0
      %p289 = por %p287, %p288
      %p290 = scmp.ne.s32.totalorder %s278, %s279
      %p291 = scmp.eq.s32.totalorder %s33, 3
      %p292 = por %p290, %p291
      %p294 = scmp.ne.s32.totalorder %s279, %s293
      %p295 = scmp.eq.s32.totalorder %s33, 0
      %p296 = por %p294, %p295
      %s298 = sadd.s32 %s297, 1
      %p301 = scmp.eq.s32.totalorder %s27, 3
      %p302 = scmp.ne.s32.totalorder %s297, %s299
      %p303 = scmp.eq.s32.totalorder %s27, 0
      %p304 = por %p302, %p303
      %p305 = scmp.ne.s32.totalorder %s297, %s299
      %p306 = scmp.eq.s32.totalorder %s32, 3
      %p307 = por %p305, %p306
      %p308 = scmp.ne.s32.totalorder %s299, %s300
      %p309 = scmp.eq.s32.totalorder %s32, 0
      %p310 = por %p308, %p309
      %p311 = scmp.ne.s32.totalorder %s299, %s300
      %p312 = scmp.eq.s32.totalorder %s33, 3
      %p313 = por %p311, %p312
      %p315 = scmp.ne.s32.totalorder %s300, %s314
      %p316 = scmp.eq.s32.totalorder %s33, 0
      %p317 = por %p315, %p316
      %s319 = sadd.s32 %s318, 1
      %p322 = scmp.eq.s32.totalorder %s27, 3
      %p323 = scmp.ne.s32.totalorder %s318, %s320
      %p324 = scmp.eq.s32.totalorder %s27, 0
      %p325 = por %p323, %p324
      %p326 = scmp.ne.s32.totalorder %s318, %s320
      %p327 = scmp.eq.s32.totalorder %s32, 3
      %p328 = por %p326, %p327
      %p329 = scmp.ne.s32.totalorder %s320, %s321
      %p330 = scmp.eq.s32.totalorder %s32, 0
      %p331 = por %p329, %p330
      %p332 = scmp.ne.s32.totalorder %s320, %s321
      %p333 = scmp.eq.s32.totalorder %s33, 3
      %p334 = por %p332, %p333
      %p336 = scmp.ne.s32.totalorder %s321, %s335
      %p337 = scmp.eq.s32.totalorder %s33, 0
      %p338 = por %p336, %p337
      %s340 = sadd.s32 %s339, 1
      %p343 = scmp.eq.s32.totalorder %s27, 3
      %p344 = scmp.ne.s32.totalorder %s339, %s341
      %p345 = scmp.eq.s32.totalorder %s27, 0
      %p346 = por %p344, %p345
      %p347 = scmp.ne.s32.totalorder %s339, %s341
      %p348 = scmp.eq.s32.totalorder %s32, 3
      %p349 = por %p347, %p348
      %p350 = scmp.ne.s32.totalorder %s341, %s342
      %p351 = scmp.eq.s32.totalorder %s32, 0
      %p352 = por %p350, %p351
      %p353 = scmp.ne.s32.totalorder %s341, %s342
      %p354 = scmp.eq.s32.totalorder %s33, 3
      %p355 = por %p353, %p354
      %p357 = scmp.ne.s32.totalorder %s342, %s356
      %p358 = scmp.eq.s32.totalorder %s33, 0
      %p359 = por %p357, %p358
      %s361 = sadd.s32 %s360, 1
      %p364 = scmp.eq.s32.totalorder %s27, 3
      %p365 = scmp.ne.s32.totalorder %s360, %s362
      %p366 = scmp.eq.s32.totalorder %s27, 0
      %p367 = por %p365, %p366
      %p368 = scmp.ne.s32.totalorder %s360, %s362
      %p369 = scmp.eq.s32.totalorder %s32, 3
      %p370 = por %p368, %p369
      %p371 = scmp.ne.s32.totalorder %s362, %s363
      %p372 = scmp.eq.s32.totalorder %s32, 0
      %p373 = por %p371, %p372
      %p374 = scmp.ne.s32.totalorder %s362, %s363
      %p375 = scmp.eq.s32.totalorder %s33, 3
      %p376 = por %p374, %p375
      %p378 = scmp.ne.s32.totalorder %s363, %s377
      %p379 = scmp.eq.s32.totalorder %s33, 0
      %p380 = por %p378, %p379
      %p381 = scmp.le.s32.totalorder 1, %s27
      %p382 = scmp.lt.s32.totalorder %s27, 5
      %p383 = pnand %p381, %p382
      %p384 = pneg %p383
      // Predicated region
      $region9: #{tpu_custom_call.1} parent=5 // pred_check
        _
      $region10: #{tpu_custom_call.1} parent=5 // pred_check_branch
        %386 = sbr.rel (%p383) target = $region12
      $region11: #{tpu_custom_call.1} parent=5 // pred_region
        %s387 = ssub.s32 %s27, 1
        // Predicated region
        $region13: #{tpu_custom_call.1} parent=11 // pred_check
          %p388 = pneg %p48
        $region14: #{tpu_custom_call.1} parent=11 // pred_check_branch
          %390 = sbr.rel (%p388) target = $region16
        $region15: #{tpu_custom_call.1} parent=11 // pred_region
          %s392 = ssub.s32 512, 512
          %393 = vsyncadd [#allocation4], %s392
          %s394 = sshll.u32 [#allocation3], 4
          %s395 = int_to_ptr.vmem [resolvable:$true] %s394
          %400 = dma.hbm_to_vmem [thread:$0]  %s0, 512, %s395, [#allocation4], 128, 128, 8
        $region16: #{tpu_custom_call.1} parent=11 // pred_fallthru
          _
        // Predicated region
        $region17: #{tpu_custom_call.1} parent=11 // pred_check
          %p401 = pneg %p69
        $region18: #{tpu_custom_call.1} parent=11 // pred_check_branch
          %403 = sbr.rel (%p401) target = $region20
        $region19: #{tpu_custom_call.1} parent=11 // pred_region
          %s405 = ssub.s32 512, 512
          %406 = vsyncadd [#allocation7], %s405
          %s407 = sshll.u32 [#allocation6], 4
          %s408 = int_to_ptr.vmem [resolvable:$true] %s407
          %413 = dma.hbm_to_vmem [thread:$0]  %s1, 512, %s408, [#allocation7], 128, 128, 8
        $region20: #{tpu_custom_call.1} parent=11 // pred_fallthru
          _
        // Predicated region
        $region21: #{tpu_custom_call.1} parent=11 // pred_check
          %p414 = pneg %p90
        $region22: #{tpu_custom_call.1} parent=11 // pred_check_branch
          %416 = sbr.rel (%p414) target = $region24
        $region23: #{tpu_custom_call.1} parent=11 // pred_region
          _
        $region24: #{tpu_custom_call.1} parent=11 // pred_fallthru
          _
        // Predicated region
        $region25: #{tpu_custom_call.1} parent=11 // pred_check
          %p417 = pneg %p111
        $region26: #{tpu_custom_call.1} parent=11 // pred_check_branch
          %419 = sbr.rel (%p417) target = $region28
        $region27: #{tpu_custom_call.1} parent=11 // pred_region
          _
        $region28: #{tpu_custom_call.1} parent=11 // pred_fallthru
          _
        // Predicated region
        $region29: #{tpu_custom_call.1} parent=11 // pred_check
          %p420 = pneg %p132
        $region30: #{tpu_custom_call.1} parent=11 // pred_check_branch
          %422 = sbr.rel (%p420) target = $region32
        $region31: #{tpu_custom_call.1} parent=11 // pred_region
          _
        $region32: #{tpu_custom_call.1} parent=11 // pred_fallthru
          _
        // Predicated region
        $region33: #{tpu_custom_call.1} parent=11 // pred_check
          %p423 = pneg %p153
        $region34: #{tpu_custom_call.1} parent=11 // pred_check_branch
          %425 = sbr.rel (%p423) target = $region36
        $region35: #{tpu_custom_call.1} parent=11 // pred_region
          _
        $region36: #{tpu_custom_call.1} parent=11 // pred_fallthru
          _
        // Predicated region
        $region37: #{tpu_custom_call.1} parent=11 // pred_check
          %p426 = pneg %p226
        $region38: #{tpu_custom_call.1} parent=11 // pred_check_branch
          %428 = sbr.rel (%p426) target = $region40
        $region39: #{tpu_custom_call.1} parent=11 // pred_region
          %s430 = ssub.s32 64, 64
          %431 = vsyncadd [#allocation7], %s430
          %s433 = sshll.u32 [#allocation10], 4
          %s434 = int_to_ptr.vmem [resolvable:$true] %s433
          %436 = dma.hbm_to_vmem [thread:$0]  %s8, 64, %s434, [#allocation7]
        $region40: #{tpu_custom_call.1} parent=11 // pred_fallthru
          _
        // Predicated region
        $region41: #{tpu_custom_call.1} parent=11 // pred_check
          %p437 = pneg %p247
        $region42: #{tpu_custom_call.1} parent=11 // pred_check_branch
          %439 = sbr.rel (%p437) target = $region44
        $region43: #{tpu_custom_call.1} parent=11 // pred_region
          %s441 = ssub.s32 2048, 2048
          %442 = vsyncadd [#allocation12], %s441
          %s443 = sshll.u32 [#allocation11], 4
          %s444 = int_to_ptr.vmem [resolvable:$true] %s443
          %449 = dma.hbm_to_vmem [thread:$0]  %s9, 2048, %s444, [#allocation12], 128, 128, 8
        $region44: #{tpu_custom_call.1} parent=11 // pred_fallthru
          _
        // Predicated region
        $region45: #{tpu_custom_call.1} parent=11 // pred_check
          %p450 = pneg %p268
        $region46: #{tpu_custom_call.1} parent=11 // pred_check_branch
          %452 = sbr.rel (%p450) target = $region48
        $region47: #{tpu_custom_call.1} parent=11 // pred_region
          %s454 = ssub.s32 16, 16
          %455 = vsyncadd [#allocation12], %s454
          %s457 = sshll.u32 [#allocation13], 4
          %s458 = int_to_ptr.vmem [resolvable:$true] %s457
          %460 = dma.hbm_to_vmem [thread:$0]  %s10, 16, %s458, [#allocation12]
        $region48: #{tpu_custom_call.1} parent=11 // pred_fallthru
          _
        // Predicated region
        $region49: #{tpu_custom_call.1} parent=11 // pred_check
          %p461 = pneg %p289
        $region50: #{tpu_custom_call.1} parent=11 // pred_check_branch
          %463 = sbr.rel (%p461) target = $region52
        $region51: #{tpu_custom_call.1} parent=11 // pred_region
          %s465 = ssub.s32 2048, 2048
          %466 = vsyncadd [#allocation15], %s465
          %s467 = sshll.u32 [#allocation14], 4
          %s468 = int_to_ptr.vmem [resolvable:$true] %s467
          %473 = dma.hbm_to_vmem [thread:$0]  %s11, 2048, %s468, [#allocation15], 128, 128, 8
        $region52: #{tpu_custom_call.1} parent=11 // pred_fallthru
          _
        // Predicated region
        $region53: #{tpu_custom_call.1} parent=11 // pred_check
          %p474 = pneg %p310
        $region54: #{tpu_custom_call.1} parent=11 // pred_check_branch
          %476 = sbr.rel (%p474) target = $region56
        $region55: #{tpu_custom_call.1} parent=11 // pred_region
          %s478 = ssub.s32 16, 16
          %479 = vsyncadd [#allocation15], %s478
          %s481 = sshll.u32 [#allocation16], 4
          %s482 = int_to_ptr.vmem [resolvable:$true] %s481
          %484 = dma.hbm_to_vmem [thread:$0]  %s12, 16, %s482, [#allocation15]
        $region56: #{tpu_custom_call.1} parent=11 // pred_fallthru
          _
        // Predicated region
        $region57: #{tpu_custom_call.1} parent=11 // pred_check
          %p485 = pneg %p331
        $region58: #{tpu_custom_call.1} parent=11 // pred_check_branch
          %487 = sbr.rel (%p485) target = $region60
        $region59: #{tpu_custom_call.1} parent=11 // pred_region
          %s489 = ssub.s32 2048, 2048
          %490 = vsyncadd [#allocation18], %s489
          %s491 = sshll.u32 [#allocation17], 4
          %s492 = int_to_ptr.vmem [resolvable:$true] %s491
          %497 = dma.hbm_to_vmem [thread:$0]  %s13, 2048, %s492, [#allocation18], 128, 128, 8
        $region60: #{tpu_custom_call.1} parent=11 // pred_fallthru
          _
        // Predicated region
        $region61: #{tpu_custom_call.1} parent=11 // pred_check
          %p498 = pneg %p352
        $region62: #{tpu_custom_call.1} parent=11 // pred_check_branch
          %500 = sbr.rel (%p498) target = $region64
        $region63: #{tpu_custom_call.1} parent=11 // pred_region
          %s502 = ssub.s32 16, 16
          %503 = vsyncadd [#allocation18], %s502
          %s505 = sshll.u32 [#allocation19], 4
          %s506 = int_to_ptr.vmem [resolvable:$true] %s505
          %508 = dma.hbm_to_vmem [thread:$0]  %s14, 16, %s506, [#allocation18]
        $region64: #{tpu_custom_call.1} parent=11 // pred_fallthru
          _
      $region12: #{tpu_custom_call.1} parent=5 // pred_fallthru
        _
      %p509 = scmp.lt.s32.totalorder %s27, 4
      // Predicated region
      $region65: #{tpu_custom_call.1} parent=5 // pred_check
        %p510 = pneg %p509
      $region66: #{tpu_custom_call.1} parent=5 // pred_check_branch
        %512 = sbr.rel (%p510) target = $region68
      $region67: #{tpu_custom_call.1} parent=5 // pred_region
        // Predicated region
        $region69: #{tpu_custom_call.1} parent=67 // pred_check
          %p513 = pneg %p173
        $region70: #{tpu_custom_call.1} parent=67 // pred_check_branch
          %515 = sbr.rel (%p513) target = $region72
        $region71: #{tpu_custom_call.1} parent=67 // pred_region
          %s516 = sand.u32 %s27, 1
          %s517 = scalar_lea.sflag [#allocation4], %s516
          %s518 = sand.u32 %s163, 1
          %s519 = smul.addr %s518, 1536
          %s520 = scalar_lea.vmem [#allocation8], %s519
          %s522 = ssub.s32 24576, 24576
          %523 = vsyncadd %s517, %s522
          %s524 = smul.addr %s27, 192
          %s525 = smul.addr %s524, 128
          %s526 = scalar_lea.hbm %s6, %s525
          %s527 = sshll.u32 %s520, 4
          %s528 = int_to_ptr.vmem [resolvable:$true] %s527
          %533 = dma.hbm_to_vmem [thread:$0]  %s526, 24576, %s528, %s517, 128, 128, 8
        $region72: #{tpu_custom_call.1} parent=67 // pred_fallthru
          _
        // Predicated region
        $region73: #{tpu_custom_call.1} parent=67 // pred_check
          %p534 = pneg %p199
        $region74: #{tpu_custom_call.1} parent=67 // pred_check_branch
          %536 = sbr.rel (%p534) target = $region76
        $region75: #{tpu_custom_call.1} parent=67 // pred_region
          %s537 = sand.u32 %s27, 1
          %s538 = scalar_lea.sflag [#allocation4], %s537
          %s539 = sand.u32 %s189, 1
          %s540 = scalar_lea.vmem [#allocation9], %s539
          %s542 = ssub.s32 16, 16
          %543 = vsyncadd %s538, %s542
          %s544 = smul.addr %s27, 16
          %s545 = scalar_lea.hbm %s7, %s544
          %s547 = sshll.u32 %s540, 4
          %s548 = int_to_ptr.vmem [resolvable:$true] %s547
          %550 = dma.hbm_to_vmem [thread:$0]  %s545, 16, %s548, %s538
        $region76: #{tpu_custom_call.1} parent=67 // pred_fallthru
          _
      $region68: #{tpu_custom_call.1} parent=5 // pred_fallthru
        _
      %p551 = scmp.le.s32.totalorder 1, %s27
      %p552 = scmp.lt.s32.totalorder %s27, 5
      %p553 = pnand %p551, %p552
      %p554 = pneg %p553
      // Predicated region
      $region77: #{tpu_custom_call.1} parent=5 // pred_check
        _
      $region78: #{tpu_custom_call.1} parent=5 // pred_check_branch
        %556 = sbr.rel (%p553) target = $region80
      $region79: #{tpu_custom_call.1} parent=5 // pred_region
        %s557 = ssub.s32 %s27, 1
        // Predicated region
        $region81: #{tpu_custom_call.1} parent=79 // pred_check
          %p558 = pneg %p48
        $region82: #{tpu_custom_call.1} parent=79 // pred_check_branch
          %560 = sbr.rel (%p558) target = $region84
        $region83: #{tpu_custom_call.1} parent=79 // pred_region
          %561 = dma.done [#allocation4], 512
        $region84: #{tpu_custom_call.1} parent=79 // pred_fallthru
          _
        // Predicated region
        $region85: #{tpu_custom_call.1} parent=79 // pred_check
          %p562 = pneg %p69
        $region86: #{tpu_custom_call.1} parent=79 // pred_check_branch
          %564 = sbr.rel (%p562) target = $region88
        $region87: #{tpu_custom_call.1} parent=79 // pred_region
          %565 = dma.done [#allocation7], 512
        $region88: #{tpu_custom_call.1} parent=79 // pred_fallthru
          _
        %s566 = sand.u32 %s32, 1
        %s567 = scalar_lea.sflag [#allocation4], %s566
        %s568 = sand.u32 %s166, 1
        %s569 = smul.addr %s568, 1536
        %s570 = scalar_lea.vmem [#allocation8], %s569
        // Predicated region
        $region89: #{tpu_custom_call.1} parent=79 // pred_check
          %p571 = pneg %p179
        $region90: #{tpu_custom_call.1} parent=79 // pred_check_branch
          %573 = sbr.rel (%p571) target = $region92
        $region91: #{tpu_custom_call.1} parent=79 // pred_region
          %574 = dma.done %s567, 24576
        $region92: #{tpu_custom_call.1} parent=79 // pred_fallthru
          _
        %s575 = sand.u32 %s32, 1
        %s576 = scalar_lea.sflag [#allocation4], %s575
        %s577 = sand.u32 %s192, 1
        %s578 = scalar_lea.vmem [#allocation9], %s577
        // Predicated region
        $region93: #{tpu_custom_call.1} parent=79 // pred_check
          %p579 = pneg %p205
        $region94: #{tpu_custom_call.1} parent=79 // pred_check_branch
          %581 = sbr.rel (%p579) target = $region96
        $region95: #{tpu_custom_call.1} parent=79 // pred_region
          %582 = dma.done %s576, 16
        $region96: #{tpu_custom_call.1} parent=79 // pred_fallthru
          _
        // Predicated region
        $region97: #{tpu_custom_call.1} parent=79 // pred_check
          %p583 = pneg %p226
        $region98: #{tpu_custom_call.1} parent=79 // pred_check_branch
          %585 = sbr.rel (%p583) target = $region100
        $region99: #{tpu_custom_call.1} parent=79 // pred_region
          %586 = dma.done [#allocation7], 64
        $region100: #{tpu_custom_call.1} parent=79 // pred_fallthru
          _
        // Predicated region
        $region101: #{tpu_custom_call.1} parent=79 // pred_check
          %p587 = pneg %p247
        $region102: #{tpu_custom_call.1} parent=79 // pred_check_branch
          %589 = sbr.rel (%p587) target = $region104
        $region103: #{tpu_custom_call.1} parent=79 // pred_region
          %590 = dma.done [#allocation12], 2048
        $region104: #{tpu_custom_call.1} parent=79 // pred_fallthru
          _
        // Predicated region
        $region105: #{tpu_custom_call.1} parent=79 // pred_check
          %p591 = pneg %p268
        $region106: #{tpu_custom_call.1} parent=79 // pred_check_branch
          %593 = sbr.rel (%p591) target = $region108
        $region107: #{tpu_custom_call.1} parent=79 // pred_region
          %594 = dma.done [#allocation12], 16
        $region108: #{tpu_custom_call.1} parent=79 // pred_fallthru
          _
        // Predicated region
        $region109: #{tpu_custom_call.1} parent=79 // pred_check
          %p595 = pneg %p289
        $region110: #{tpu_custom_call.1} parent=79 // pred_check_branch
          %597 = sbr.rel (%p595) target = $region112
        $region111: #{tpu_custom_call.1} parent=79 // pred_region
          %598 = dma.done [#allocation15], 2048
        $region112: #{tpu_custom_call.1} parent=79 // pred_fallthru
          _
        // Predicated region
        $region113: #{tpu_custom_call.1} parent=79 // pred_check
          %p599 = pneg %p310
        $region114: #{tpu_custom_call.1} parent=79 // pred_check_branch
          %601 = sbr.rel (%p599) target = $region116
        $region115: #{tpu_custom_call.1} parent=79 // pred_region
          %602 = dma.done [#allocation15], 16
        $region116: #{tpu_custom_call.1} parent=79 // pred_fallthru
          _
        // Predicated region
        $region117: #{tpu_custom_call.1} parent=79 // pred_check
          %p603 = pneg %p331
        $region118: #{tpu_custom_call.1} parent=79 // pred_check_branch
          %605 = sbr.rel (%p603) target = $region120
        $region119: #{tpu_custom_call.1} parent=79 // pred_region
          %606 = dma.done [#allocation18], 2048
        $region120: #{tpu_custom_call.1} parent=79 // pred_fallthru
          _
        // Predicated region
        $region121: #{tpu_custom_call.1} parent=79 // pred_check
          %p607 = pneg %p352
        $region122: #{tpu_custom_call.1} parent=79 // pred_check_branch
          %609 = sbr.rel (%p607) target = $region124
        $region123: #{tpu_custom_call.1} parent=79 // pred_region
          %610 = dma.done [#allocation18], 16
        $region124: #{tpu_custom_call.1} parent=79 // pred_fallthru
          _
        %p611 = pneg %p48
        %p612 = pneg %p45
        %p613 = pneg %p69
        %p614 = pneg %p66
        %p615 = pneg %p90
        %p616 = pneg %p87
        %p617 = pneg %p111
        %p618 = pneg %p108
        %p619 = pneg %p132
        %p620 = pneg %p129
        %p621 = pneg %p153
        %p622 = pneg %p150
        %s623 = sand.u32 %s32, 1
        %s624 = scalar_lea.sflag [#allocation4], %s623
        %s625 = sand.u32 %s166, 1
        %s626 = smul.addr %s625, 1536
        %s627 = scalar_lea.vmem [#allocation8], %s626
        %p628 = pneg %p179
        %p629 = pneg %p176
        %s630 = sand.u32 %s32, 1
        %s631 = scalar_lea.sflag [#allocation4], %s630
        %s632 = sand.u32 %s192, 1
        %s633 = scalar_lea.vmem [#allocation9], %s632
        %p634 = pneg %p205
        %p635 = pneg %p202
        %p636 = pneg %p226
        %p637 = pneg %p223
        %p638 = pneg %p247
        %p639 = pneg %p244
        %p640 = pneg %p268
        %p641 = pneg %p265
        %p642 = pneg %p289
        %p643 = pneg %p286
        %p644 = pneg %p310
        %p645 = pneg %p307
        %p646 = pneg %p331
        %p647 = pneg %p328
        %p648 = pneg %p352
        %p649 = pneg %p349
        %p650 = pneg %p373
        %p651 = pneg %p370
        %p652 = scmp.eq.s32.totalorder %s32, 0
        // Predicated region
        $region125: #{tpu_custom_call.1} parent=79 // pred_check
          %p653 = pneg %p652
        $region126: #{tpu_custom_call.1} parent=79 // pred_check_branch
          %655 = sbr.rel (%p653) target = $region128
        $region127: #{tpu_custom_call.1} parent=79 // pred_region
          %v656 = vld [vmem:[#allocation3] sm:$0xff]
          %v657 = vld [vmem:[#allocation3 + $0x8] sm:$0xff]
          %v658 = vld [vmem:[#allocation3 + $0x10] sm:$0xff]
          %v659 = vld [vmem:[#allocation3 + $0x18] sm:$0xff]
          %660 = vst [vmem:[#allocation2] sm:$0xff] %v656
          %661 = vst [vmem:[#allocation2 + $0x8] sm:$0xff] %v657
          %662 = vst [vmem:[#allocation2 + $0x10] sm:$0xff] %v658
          %663 = vst [vmem:[#allocation2 + $0x18] sm:$0xff] %v659
        $region128: #{tpu_custom_call.1} parent=79 // pred_fallthru
          _
        %v664 = vld [vmem:[#allocation2] sm:$0xff]
        %v665 = vld [vmem:[#allocation2 + $0x8] sm:$0xff]
        %v666 = vld [vmem:[#allocation2 + $0x10] sm:$0xff]
        %v667 = vld [vmem:[#allocation2 + $0x18] sm:$0xff]
        %v668 = vld [vmem:[#allocation6] sm:$0xff]
        %v669 = vld [vmem:[#allocation6 + $0x8] sm:$0xff]
        %v670 = vld [vmem:[#allocation6 + $0x10] sm:$0xff]
        %v671 = vld [vmem:[#allocation6 + $0x18] sm:$0xff]
        %v672 = vld [vmem:[%s2] sm:$0xff]
        %v673 = vld [vmem:[%s2 + $0x8] sm:$0xff]
        %v674 = vld [vmem:[%s2 + $0x10] sm:$0xff]
        %v675 = vld [vmem:[%s2 + $0x18] sm:$0xff]
        %v676 = vld [vmem:[%s3] sm:$0xff]
        %v677 = vld [vmem:[%s3 + $0x8] sm:$0xff]
        %v678 = vld [vmem:[%s3 + $0x10] sm:$0xff]
        %v679 = vld [vmem:[%s3 + $0x18] sm:$0xff]
        %v680 = vld [vmem:[%s4] sm:$0xff]
        %v681 = vld [vmem:[%s4 + $0x8] sm:$0xff]
        %v682 = vld [vmem:[%s4 + $0x10] sm:$0xff]
        %v683 = vld [vmem:[%s4 + $0x18] sm:$0xff]
        %v684 = vld [vmem:[%s5] sm:$0xff]
        %v685 = vld [vmem:[%s5 + $0x8] sm:$0xff]
        %v686 = vld [vmem:[%s5 + $0x10] sm:$0xff]
        %v687 = vld [vmem:[%s5 + $0x18] sm:$0xff]
        %vm688 = vcmask 261120
        %v690 = vsel %vm688, %v668, 0
        %v693 = vsel %vm688, %v669, 0
        %v696 = vsel %vm688, %v670, 0
        %v699 = vsel %vm688, %v671, 0
        %701 = vmatprep.subr.mxu0 0.0
        %702 = vmatpush1.msra.mxu0 %v664
        %703 = vmatprep.subr.mxu0 0.0
        %704 = vmatpush1.msra.mxu0 %v665
        %705 = vmatprep.subr.mxu0 0.0
        %706 = vmatpush1.msra.mxu0 %v666
        %707 = vmatprep.subr.mxu0 0.0
        %708 = vmatpush1.msra.mxu0 %v667
        %709 = vmatprep.subr.mxu0 0.0
        %710 = vmatpush1.msra.mxu0 0.0
        %711 = vmatprep.subr.mxu0 0.0
        %712 = vmatpush1.msra.mxu0 0.0
        %713 = vmatprep.subr.mxu0 0.0
        %714 = vmatpush1.msra.mxu0 0.0
        %715 = vmatprep.subr.mxu0 0.0
        %716 = vmatpush1.msra.mxu0 0.0
        %717 = vmatprep.subr.mxu0 0.0
        %718 = vmatpush1.msra.mxu0 0.0
        %719 = vmatprep.subr.mxu0 0.0
        %720 = vmatpush1.msra.mxu0 0.0
        %721 = vmatprep.subr.mxu0 0.0
        %722 = vmatpush1.msra.mxu0 0.0
        %723 = vmatprep.subr.mxu0 0.0
        %724 = vmatpush1.msra.mxu0 0.0
        %725 = vmatprep.subr.mxu0 0.0
        %726 = vmatpush1.msra.mxu0 0.0
        %727 = vmatprep.subr.mxu0 0.0
        %728 = vmatpush1.msra.mxu0 0.0
        %729 = vmatprep.subr.mxu0 0.0
        %730 = vmatpush1.msra.mxu0 0.0
        %731 = vmatprep.subr.mxu0 0.0
        %732 = vmatpush1.msra.mxu0 0.0
        %733 = vmatprep.subr.mxu0 0.0
        %734 = vmatpush1.msra.mxu0 0.0
        %735 = vmatprep.subr.mxu0 0.0
        %736 = vmatpush1.msra.mxu0 0.0
        %737 = vmatprep.subr.mxu0 0.0
        %738 = vmatpush1.msra.mxu0 0.0
        %739 = vmatprep.subr.mxu0 0.0
        %740 = vmatpush1.msra.mxu0 0.0
        %741 = vmatprep.subr.mxu0 0.0
        %742 = vmatpush1.msra.mxu0 0.0
        %743 = vmatprep.subr.mxu0 0.0
        %744 = vmatpush1.msra.mxu0 0.0
        %745 = vmatprep.subr.mxu0 0.0
        %746 = vmatpush1.msra.mxu0 0.0
        %747 = vmatprep.subr.mxu0 0.0
        %748 = vmatpush1.msra.mxu0 0.0
        %749 = vmatprep.subr.mxu0 0.0
        %750 = vmatpush1.msra.mxu0 0.0
        %751 = vmatprep.subr.mxu0 0.0
        %752 = vmatpush1.msra.mxu0 0.0
        %753 = vmatprep.subr.mxu0 0.0
        %754 = vmatpush1.msra.mxu0 0.0
        %755 = vmatprep.subr.mxu0 0.0
        %756 = vmatpush1.msra.mxu0 0.0
        %757 = vmatprep.subr.mxu0 0.0
        %758 = vmatpush1.msra.mxu0 0.0
        %759 = vmatprep.subr.mxu0 0.0
        %760 = vmatpush1.msra.mxu0 0.0
        %761 = vmatprep.subr.mxu0 0.0
        %762 = vmatpush1.msra.mxu0 0.0
        %763 = vmatprep.subr.mxu0 0.0
        %764 = vmatpush1.msra.mxu0 0.0
        %765 = vmatprep.mubr.f32.mxu0 0.0
        %766 = vmatmul.mubr.f32.gmra.mrb[0].mxu0 %v690
        %v767 = vpop.f32.mrb[0].mxu0
        %v768 = vadd.f32 0.0, %v767
        %v769 = vpop.f32.mrb[0].mxu0
        %770 = vmatprep.mubr.f32.mxu0 0.0
        %771 = vmatmul.mubr.f32.gmra.mrb[0].mxu0 %v693
        %v772 = vpop.f32.mrb[0].mxu0
        %v773 = vadd.f32 0.0, %v772
        %v774 = vpop.f32.mrb[0].mxu0
        %775 = vmatprep.mubr.f32.mxu0 0.0
        %776 = vmatmul.mubr.f32.gmra.mrb[0].mxu0 %v696
        %v777 = vpop.f32.mrb[0].mxu0
        %v778 = vadd.f32 0.0, %v777
        %v779 = vpop.f32.mrb[0].mxu0
        %780 = vmatprep.mubr.f32.mxu0 0.0
        %781 = vmatmul.mubr.f32.gmra.mrb[0].mxu0 %v699
        %v782 = vpop.f32.mrb[0].mxu0
        %v783 = vadd.f32 0.0, %v782
        %v784 = vpop.f32.mrb[0].mxu0
        %785 = vdwg.mxu0
        %v786 = vmul.f32 %v664, %v664
        %v787 = vmul.f32 %v665, %v665
        %v788 = vmul.f32 %v666, %v666
        %v789 = vmul.f32 %v667, %v667
        %790 = vmatprep.subr.mxu0 0.0
        %791 = vmatpush1.msra.mxu0 %v786
        %792 = vmatprep.subr.mxu0 0.0
        %793 = vmatpush1.msra.mxu0 %v787
        %794 = vmatprep.subr.mxu0 0.0
        %795 = vmatpush1.msra.mxu0 %v788
        %796 = vmatprep.subr.mxu0 0.0
        %797 = vmatpush1.msra.mxu0 %v789
        %798 = vmatprep.subr.mxu0 0.0
        %799 = vmatpush1.msra.mxu0 0.0
        %800 = vmatprep.subr.mxu0 0.0
        %801 = vmatpush1.msra.mxu0 0.0
        %802 = vmatprep.subr.mxu0 0.0
        %803 = vmatpush1.msra.mxu0 0.0
        %804 = vmatprep.subr.mxu0 0.0
        %805 = vmatpush1.msra.mxu0 0.0
        %806 = vmatprep.subr.mxu0 0.0
        %807 = vmatpush1.msra.mxu0 0.0
        %808 = vmatprep.subr.mxu0 0.0
        %809 = vmatpush1.msra.mxu0 0.0
        %810 = vmatprep.subr.mxu0 0.0
        %811 = vmatpush1.msra.mxu0 0.0
        %812 = vmatprep.subr.mxu0 0.0
        %813 = vmatpush1.msra.mxu0 0.0
        %814 = vmatprep.subr.mxu0 0.0
        %815 = vmatpush1.msra.mxu0 0.0
        %816 = vmatprep.subr.mxu0 0.0
        %817 = vmatpush1.msra.mxu0 0.0
        %818 = vmatprep.subr.mxu0 0.0
        %819 = vmatpush1.msra.mxu0 0.0
        %820 = vmatprep.subr.mxu0 0.0
        %821 = vmatpush1.msra.mxu0 0.0
        %822 = vmatprep.subr.mxu0 0.0
        %823 = vmatpush1.msra.mxu0 0.0
        %824 = vmatprep.subr.mxu0 0.0
        %825 = vmatpush1.msra.mxu0 0.0
        %826 = vmatprep.subr.mxu0 0.0
        %827 = vmatpush1.msra.mxu0 0.0
        %828 = vmatprep.subr.mxu0 0.0
        %829 = vmatpush1.msra.mxu0 0.0
        %830 = vmatprep.subr.mxu0 0.0
        %831 = vmatpush1.msra.mxu0 0.0
        %832 = vmatprep.subr.mxu0 0.0
        %833 = vmatpush1.msra.mxu0 0.0
        %834 = vmatprep.subr.mxu0 0.0
        %835 = vmatpush1.msra.mxu0 0.0
        %836 = vmatprep.subr.mxu0 0.0
        %837 = vmatpush1.msra.mxu0 0.0
        %838 = vmatprep.subr.mxu0 0.0
        %839 = vmatpush1.msra.mxu0 0.0
        %840 = vmatprep.subr.mxu0 0.0
        %841 = vmatpush1.msra.mxu0 0.0
        %842 = vmatprep.subr.mxu0 0.0
        %843 = vmatpush1.msra.mxu0 0.0
        %844 = vmatprep.subr.mxu0 0.0
        %845 = vmatpush1.msra.mxu0 0.0
        %846 = vmatprep.subr.mxu0 0.0
        %847 = vmatpush1.msra.mxu0 0.0
        %848 = vmatprep.subr.mxu0 0.0
        %849 = vmatpush1.msra.mxu0 0.0
        %850 = vmatprep.subr.mxu0 0.0
        %851 = vmatpush1.msra.mxu0 0.0
        %852 = vmatprep.subr.mxu0 0.0
        %853 = vmatpush1.msra.mxu0 0.0
        %854 = vmatprep.mubr.f32.mxu0 0.0
        %855 = vmatmul.mubr.f32.gmra.mrb[0].mxu0 %v690
        %v856 = vpop.f32.mrb[0].mxu0
        %v857 = vadd.f32 0.0, %v856
        %v858 = vpop.f32.mrb[0].mxu0
        %859 = vmatprep.mubr.f32.mxu0 0.0
        %860 = vmatmul.mubr.f32.gmra.mrb[0].mxu0 %v693
        %v861 = vpop.f32.mrb[0].mxu0
        %v862 = vadd.f32 0.0, %v861
        %v863 = vpop.f32.mrb[0].mxu0
        %864 = vmatprep.mubr.f32.mxu0 0.0
        %865 = vmatmul.mubr.f32.gmra.mrb[0].mxu0 %v696
        %v866 = vpop.f32.mrb[0].mxu0
        %v867 = vadd.f32 0.0, %v866
        %v868 = vpop.f32.mrb[0].mxu0
        %869 = vmatprep.mubr.f32.mxu0 0.0
        %870 = vmatmul.mubr.f32.gmra.mrb[0].mxu0 %v699
        %v871 = vpop.f32.mrb[0].mxu0
        %v872 = vadd.f32 0.0, %v871
        %v873 = vpop.f32.mrb[0].mxu0
        %874 = vdwg.mxu0
        %vm875 = vcmp.gt.f32.partialorder %v668, 0.0
        %vm876 = vcmp.gt.f32.partialorder %v669, 0.0
        %vm877 = vcmp.gt.f32.partialorder %v670, 0.0
        %vm878 = vcmp.gt.f32.partialorder %v671, 0.0
        %v879 = vsel %vm875, 1, 0
        %v880 = vsel %vm876, 1, 0
        %v881 = vsel %vm877, 1, 0
        %v882 = vsel %vm878, 1, 0
        %v883 = vcvt.s32.f32 %v879
        %v884 = vcvt.s32.f32 %v880
        %v885 = vcvt.s32.f32 %v881
        %v886 = vcvt.s32.f32 %v882
        %v887 = vsub.f32 1.0, %v883
        %v888 = vsub.f32 1.0, %v884
        %v889 = vsub.f32 1.0, %v885
        %v890 = vsub.f32 1.0, %v886
        %v891 = vmul.f32 %v887, 1e+30
        %v892 = vmul.f32 %v888, 1e+30
        %v893 = vmul.f32 %v889, 1e+30
        %v894 = vmul.f32 %v890, 1e+30
        %v895 = vlaneseq
        %v896 = vshrl.u32 %v895, 7
        %v897 = vsub.s32 0, %v896
        %v898 = vrot.slane %v891, %v897
        %900 = vbcast.lane.b32.xlu0 %v898, 256
        %v901 = vpop.permute.xlu0 %900
        %s903 = sor.u32 256, 8
        %904 = vbcast.lane.b32.xlu0 %v898, %s903
        %v905 = vpop.permute.xlu0 %904
        %s907 = sor.u32 256, 16
        %908 = vbcast.lane.b32.xlu0 %v898, %s907
        %v909 = vpop.permute.xlu0 %908
        %s911 = sor.u32 256, 24
        %912 = vbcast.lane.b32.xlu0 %v898, %s911
        %v913 = vpop.permute.xlu0 %912
        %v914 = vlaneseq
        %v915 = vshrl.u32 %v914, 7
        %v916 = vsub.s32 1, %v915
        %v917 = vrot.slane %v891, %v916
        %919 = vbcast.lane.b32.xlu0 %v917, 256
        %v920 = vpop.permute.xlu0 %919
        %s922 = sor.u32 256, 8
        %923 = vbcast.lane.b32.xlu0 %v917, %s922
        %v924 = vpop.permute.xlu0 %923
        %s926 = sor.u32 256, 16
        %927 = vbcast.lane.b32.xlu0 %v917, %s926
        %v928 = vpop.permute.xlu0 %927
        %s930 = sor.u32 256, 24
        %931 = vbcast.lane.b32.xlu0 %v917, %s930
        %v932 = vpop.permute.xlu0 %931
        %v933 = vlaneseq
        %v934 = vshrl.u32 %v933, 7
        %v935 = vsub.s32 2, %v934
        %v936 = vrot.slane %v891, %v935
        %938 = vbcast.lane.b32.xlu0 %v936, 256
        %v939 = vpop.permute.xlu0 %938
        %s941 = sor.u32 256, 8
        %942 = vbcast.lane.b32.xlu0 %v936, %s941
        %v943 = vpop.permute.xlu0 %942
        %s945 = sor.u32 256, 16
        %946 = vbcast.lane.b32.xlu0 %v936, %s945
        %v947 = vpop.permute.xlu0 %946
        %s949 = sor.u32 256, 24
        %950 = vbcast.lane.b32.xlu0 %v936, %s949
        %v951 = vpop.permute.xlu0 %950
        %v952 = vlaneseq
        %v953 = vshrl.u32 %v952, 7
        %v954 = vsub.s32 3, %v953
        %v955 = vrot.slane %v891, %v954
        %957 = vbcast.lane.b32.xlu0 %v955, 256
        %v958 = vpop.permute.xlu0 %957
        %s960 = sor.u32 256, 8
        %961 = vbcast.lane.b32.xlu0 %v955, %s960
        %v962 = vpop.permute.xlu0 %961
        %s964 = sor.u32 256, 16
        %965 = vbcast.lane.b32.xlu0 %v955, %s964
        %v966 = vpop.permute.xlu0 %965
        %s968 = sor.u32 256, 24
        %969 = vbcast.lane.b32.xlu0 %v955, %s968
        %v970 = vpop.permute.xlu0 %969
        %v971 = vlaneseq
        %v972 = vshrl.u32 %v971, 7
        %v973 = vsub.s32 4, %v972
        %v974 = vrot.slane %v891, %v973
        %976 = vbcast.lane.b32.xlu0 %v974, 256
        %v977 = vpop.permute.xlu0 %976
        %s979 = sor.u32 256, 8
        %980 = vbcast.lane.b32.xlu0 %v974, %s979
        %v981 = vpop.permute.xlu0 %980
        %s983 = sor.u32 256, 16
        %984 = vbcast.lane.b32.xlu0 %v974, %s983
        %v985 = vpop.permute.xlu0 %984
        %s987 = sor.u32 256, 24
        %988 = vbcast.lane.b32.xlu0 %v974, %s987
        %v989 = vpop.permute.xlu0 %988
        %v990 = vlaneseq
        %v991 = vshrl.u32 %v990, 7
        %v992 = vsub.s32 5, %v991
        %v993 = vrot.slane %v891, %v992
        %995 = vbcast.lane.b32.xlu0 %v993, 256
        %v996 = vpop.permute.xlu0 %995
        %s998 = sor.u32 256, 8
        %999 = vbcast.lane.b32.xlu0 %v993, %s998
        %v1000 = vpop.permute.xlu0 %999
        %s1002 = sor.u32 256, 16
        %1003 = vbcast.lane.b32.xlu0 %v993, %s1002
        %v1004 = vpop.permute.xlu0 %1003
        %s1006 = sor.u32 256, 24
        %1007 = vbcast.lane.b32.xlu0 %v993, %s1006
        %v1008 = vpop.permute.xlu0 %1007
        %v1009 = vlaneseq
        %v1010 = vshrl.u32 %v1009, 7
        %v1011 = vsub.s32 6, %v1010
        %v1012 = vrot.slane %v891, %v1011
        %1014 = vbcast.lane.b32.xlu0 %v1012, 256
        %v1015 = vpop.permute.xlu0 %1014
        %s1017 = sor.u32 256, 8
        %1018 = vbcast.lane.b32.xlu0 %v1012, %s1017
        %v1019 = vpop.permute.xlu0 %1018
        %s1021 = sor.u32 256, 16
        %1022 = vbcast.lane.b32.xlu0 %v1012, %s1021
        %v1023 = vpop.permute.xlu0 %1022
        %s1025 = sor.u32 256, 24
        %1026 = vbcast.lane.b32.xlu0 %v1012, %s1025
        %v1027 = vpop.permute.xlu0 %1026
        %v1028 = vlaneseq
        %v1029 = vshrl.u32 %v1028, 7
        %v1030 = vsub.s32 7, %v1029
        %v1031 = vrot.slane %v891, %v1030
        %1033 = vbcast.lane.b32.xlu0 %v1031, 256
        %v1034 = vpop.permute.xlu0 %1033
        %s1036 = sor.u32 256, 8
        %1037 = vbcast.lane.b32.xlu0 %v1031, %s1036
        %v1038 = vpop.permute.xlu0 %1037
        %s1040 = sor.u32 256, 16
        %1041 = vbcast.lane.b32.xlu0 %v1031, %s1040
        %v1042 = vpop.permute.xlu0 %1041
        %s1044 = sor.u32 256, 24
        %1045 = vbcast.lane.b32.xlu0 %v1031, %s1044
        %v1046 = vpop.permute.xlu0 %1045
        %v1047 = vlaneseq
        %v1048 = vshrl.u32 %v1047, 7
        %v1049 = vsub.s32 0, %v1048
        %v1050 = vrot.slane %v892, %v1049
        %1052 = vbcast.lane.b32.xlu0 %v1050, 256
        %v1053 = vpop.permute.xlu0 %1052
        %s1055 = sor.u32 256, 8
        %1056 = vbcast.lane.b32.xlu0 %v1050, %s1055
        %v1057 = vpop.permute.xlu0 %1056
        %s1059 = sor.u32 256, 16
        %1060 = vbcast.lane.b32.xlu0 %v1050, %s1059
        %v1061 = vpop.permute.xlu0 %1060
        %s1063 = sor.u32 256, 24
        %1064 = vbcast.lane.b32.xlu0 %v1050, %s1063
        %v1065 = vpop.permute.xlu0 %1064
        %v1066 = vlaneseq
        %v1067 = vshrl.u32 %v1066, 7
        %v1068 = vsub.s32 1, %v1067
        %v1069 = vrot.slane %v892, %v1068
        %1071 = vbcast.lane.b32.xlu0 %v1069, 256
        %v1072 = vpop.permute.xlu0 %1071
        %s1074 = sor.u32 256, 8
        %1075 = vbcast.lane.b32.xlu0 %v1069, %s1074
        %v1076 = vpop.permute.xlu0 %1075
        %s1078 = sor.u32 256, 16
        %1079 = vbcast.lane.b32.xlu0 %v1069, %s1078
        %v1080 = vpop.permute.xlu0 %1079
        %s1082 = sor.u32 256, 24
        %1083 = vbcast.lane.b32.xlu0 %v1069, %s1082
        %v1084 = vpop.permute.xlu0 %1083
        %v1085 = vlaneseq
        %v1086 = vshrl.u32 %v1085, 7
        %v1087 = vsub.s32 2, %v1086
        %v1088 = vrot.slane %v892, %v1087
        %1090 = vbcast.lane.b32.xlu0 %v1088, 256
        %v1091 = vpop.permute.xlu0 %1090
        %s1093 = sor.u32 256, 8
        %1094 = vbcast.lane.b32.xlu0 %v1088, %s1093
        %v1095 = vpop.permute.xlu0 %1094
        %s1097 = sor.u32 256, 16
        %1098 = vbcast.lane.b32.xlu0 %v1088, %s1097
        %v1099 = vpop.permute.xlu0 %1098
        %s1101 = sor.u32 256, 24
        %1102 = vbcast.lane.b32.xlu0 %v1088, %s1101
        %v1103 = vpop.permute.xlu0 %1102
        %v1104 = vlaneseq
        %v1105 = vshrl.u32 %v1104, 7
        %v1106 = vsub.s32 3, %v1105
        %v1107 = vrot.slane %v892, %v1106
        %1109 = vbcast.lane.b32.xlu0 %v1107, 256
        %v1110 = vpop.permute.xlu0 %1109
        %s1112 = sor.u32 256, 8
        %1113 = vbcast.lane.b32.xlu0 %v1107, %s1112
        %v1114 = vpop.permute.xlu0 %1113
        %s1116 = sor.u32 256, 16
        %1117 = vbcast.lane.b32.xlu0 %v1107, %s1116
        %v1118 = vpop.permute.xlu0 %1117
        %s1120 = sor.u32 256, 24
        %1121 = vbcast.lane.b32.xlu0 %v1107, %s1120
        %v1122 = vpop.permute.xlu0 %1121
        %v1123 = vlaneseq
        %v1124 = vshrl.u32 %v1123, 7
        %v1125 = vsub.s32 4, %v1124
        %v1126 = vrot.slane %v892, %v1125
        %1128 = vbcast.lane.b32.xlu0 %v1126, 256
        %v1129 = vpop.permute.xlu0 %1128
        %s1131 = sor.u32 256, 8
        %1132 = vbcast.lane.b32.xlu0 %v1126, %s1131
        %v1133 = vpop.permute.xlu0 %1132
        %s1135 = sor.u32 256, 16
        %1136 = vbcast.lane.b32.xlu0 %v1126, %s1135
        %v1137 = vpop.permute.xlu0 %1136
        %s1139 = sor.u32 256, 24
        %1140 = vbcast.lane.b32.xlu0 %v1126, %s1139
        %v1141 = vpop.permute.xlu0 %1140
        %v1142 = vlaneseq
        %v1143 = vshrl.u32 %v1142, 7
        %v1144 = vsub.s32 5, %v1143
        %v1145 = vrot.slane %v892, %v1144
        %1147 = vbcast.lane.b32.xlu0 %v1145, 256
        %v1148 = vpop.permute.xlu0 %1147
        %s1150 = sor.u32 256, 8
        %1151 = vbcast.lane.b32.xlu0 %v1145, %s1150
        %v1152 = vpop.permute.xlu0 %1151
        %s1154 = sor.u32 256, 16
        %1155 = vbcast.lane.b32.xlu0 %v1145, %s1154
        %v1156 = vpop.permute.xlu0 %1155
        %s1158 = sor.u32 256, 24
        %1159 = vbcast.lane.b32.xlu0 %v1145, %s1158
        %v1160 = vpop.permute.xlu0 %1159
        %v1161 = vlaneseq
        %v1162 = vshrl.u32 %v1161, 7
        %v1163 = vsub.s32 6, %v1162
        %v1164 = vrot.slane %v892, %v1163
        %1166 = vbcast.lane.b32.xlu0 %v1164, 256
        %v1167 = vpop.permute.xlu0 %1166
        %s1169 = sor.u32 256, 8
        %1170 = vbcast.lane.b32.xlu0 %v1164, %s1169
        %v1171 = vpop.permute.xlu0 %1170
        %s1173 = sor.u32 256, 16
        %1174 = vbcast.lane.b32.xlu0 %v1164, %s1173
        %v1175 = vpop.permute.xlu0 %1174
        %s1177 = sor.u32 256, 24
        %1178 = vbcast.lane.b32.xlu0 %v1164, %s1177
        %v1179 = vpop.permute.xlu0 %1178
        %v1180 = vlaneseq
        %v1181 = vshrl.u32 %v1180, 7
        %v1182 = vsub.s32 7, %v1181
        %v1183 = vrot.slane %v892, %v1182
        %1185 = vbcast.lane.b32.xlu0 %v1183, 256
        %v1186 = vpop.permute.xlu0 %1185
        %s1188 = sor.u32 256, 8
        %1189 = vbcast.lane.b32.xlu0 %v1183, %s1188
        %v1190 = vpop.permute.xlu0 %1189
        %s1192 = sor.u32 256, 16
        %1193 = vbcast.lane.b32.xlu0 %v1183, %s1192
        %v1194 = vpop.permute.xlu0 %1193
        %s1196 = sor.u32 256, 24
        %1197 = vbcast.lane.b32.xlu0 %v1183, %s1196
        %v1198 = vpop.permute.xlu0 %1197
        %v1199 = vlaneseq
        %v1200 = vshrl.u32 %v1199, 7
        %v1201 = vsub.s32 0, %v1200
        %v1202 = vrot.slane %v893, %v1201
        %1204 = vbcast.lane.b32.xlu0 %v1202, 256
        %v1205 = vpop.permute.xlu0 %1204
        %s1207 = sor.u32 256, 8
        %1208 = vbcast.lane.b32.xlu0 %v1202, %s1207
        %v1209 = vpop.permute.xlu0 %1208
        %s1211 = sor.u32 256, 16
        %1212 = vbcast.lane.b32.xlu0 %v1202, %s1211
        %v1213 = vpop.permute.xlu0 %1212
        %s1215 = sor.u32 256, 24
        %1216 = vbcast.lane.b32.xlu0 %v1202, %s1215
        %v1217 = vpop.permute.xlu0 %1216
        %v1218 = vlaneseq
        %v1219 = vshrl.u32 %v1218, 7
        %v1220 = vsub.s32 1, %v1219
        %v1221 = vrot.slane %v893, %v1220
        %1223 = vbcast.lane.b32.xlu0 %v1221, 256
        %v1224 = vpop.permute.xlu0 %1223
        %s1226 = sor.u32 256, 8
        %1227 = vbcast.lane.b32.xlu0 %v1221, %s1226
        %v1228 = vpop.permute.xlu0 %1227
        %s1230 = sor.u32 256, 16
        %1231 = vbcast.lane.b32.xlu0 %v1221, %s1230
        %v1232 = vpop.permute.xlu0 %1231
        %s1234 = sor.u32 256, 24
        %1235 = vbcast.lane.b32.xlu0 %v1221, %s1234
        %v1236 = vpop.permute.xlu0 %1235
        %v1237 = vlaneseq
        %v1238 = vshrl.u32 %v1237, 7
        %v1239 = vsub.s32 2, %v1238
        %v1240 = vrot.slane %v893, %v1239
        %1242 = vbcast.lane.b32.xlu0 %v1240, 256
        %v1243 = vpop.permute.xlu0 %1242
        %s1245 = sor.u32 256, 8
        %1246 = vbcast.lane.b32.xlu0 %v1240, %s1245
        %v1247 = vpop.permute.xlu0 %1246
        %s1249 = sor.u32 256, 16
        %1250 = vbcast.lane.b32.xlu0 %v1240, %s1249
        %v1251 = vpop.permute.xlu0 %1250
        %s1253 = sor.u32 256, 24
        %1254 = vbcast.lane.b32.xlu0 %v1240, %s1253
        %v1255 = vpop.permute.xlu0 %1254
        %v1256 = vlaneseq
        %v1257 = vshrl.u32 %v1256, 7
        %v1258 = vsub.s32 3, %v1257
        %v1259 = vrot.slane %v893, %v1258
        %1261 = vbcast.lane.b32.xlu0 %v1259, 256
        %v1262 = vpop.permute.xlu0 %1261
        %s1264 = sor.u32 256, 8
        %1265 = vbcast.lane.b32.xlu0 %v1259, %s1264
        %v1266 = vpop.permute.xlu0 %1265
        %s1268 = sor.u32 256, 16
        %1269 = vbcast.lane.b32.xlu0 %v1259, %s1268
        %v1270 = vpop.permute.xlu0 %1269
        %s1272 = sor.u32 256, 24
        %1273 = vbcast.lane.b32.xlu0 %v1259, %s1272
        %v1274 = vpop.permute.xlu0 %1273
        %v1275 = vlaneseq
        %v1276 = vshrl.u32 %v1275, 7
        %v1277 = vsub.s32 4, %v1276
        %v1278 = vrot.slane %v893, %v1277
        %1280 = vbcast.lane.b32.xlu0 %v1278, 256
        %v1281 = vpop.permute.xlu0 %1280
        %s1283 = sor.u32 256, 8
        %1284 = vbcast.lane.b32.xlu0 %v1278, %s1283
        %v1285 = vpop.permute.xlu0 %1284
        %s1287 = sor.u32 256, 16
        %1288 = vbcast.lane.b32.xlu0 %v1278, %s1287
        %v1289 = vpop.permute.xlu0 %1288
        %s1291 = sor.u32 256, 24
        %1292 = vbcast.lane.b32.xlu0 %v1278, %s1291
        %v1293 = vpop.permute.xlu0 %1292
        %v1294 = vlaneseq
        %v1295 = vshrl.u32 %v1294, 7
        %v1296 = vsub.s32 5, %v1295
        %v1297 = vrot.slane %v893, %v1296
        %1299 = vbcast.lane.b32.xlu0 %v1297, 256
        %v1300 = vpop.permute.xlu0 %1299
        %s1302 = sor.u32 256, 8
        %1303 = vbcast.lane.b32.xlu0 %v1297, %s1302
        %v1304 = vpop.permute.xlu0 %1303
        %s1306 = sor.u32 256, 16
        %1307 = vbcast.lane.b32.xlu0 %v1297, %s1306
        %v1308 = vpop.permute.xlu0 %1307
        %s1310 = sor.u32 256, 24
        %1311 = vbcast.lane.b32.xlu0 %v1297, %s1310
        %v1312 = vpop.permute.xlu0 %1311
        %v1313 = vlaneseq
        %v1314 = vshrl.u32 %v1313, 7
        %v1315 = vsub.s32 6, %v1314
        %v1316 = vrot.slane %v893, %v1315
        %1318 = vbcast.lane.b32.xlu0 %v1316, 256
        %v1319 = vpop.permute.xlu0 %1318
        %s1321 = sor.u32 256, 8
        %1322 = vbcast.lane.b32.xlu0 %v1316, %s1321
        %v1323 = vpop.permute.xlu0 %1322
        %s1325 = sor.u32 256, 16
        %1326 = vbcast.lane.b32.xlu0 %v1316, %s1325
        %v1327 = vpop.permute.xlu0 %1326
        %s1329 = sor.u32 256, 24
        %1330 = vbcast.lane.b32.xlu0 %v1316, %s1329
        %v1331 = vpop.permute.xlu0 %1330
        %v1332 = vlaneseq
        %v1333 = vshrl.u32 %v1332, 7
        %v1334 = vsub.s32 7, %v1333
        %v1335 = vrot.slane %v893, %v1334
        %1337 = vbcast.lane.b32.xlu0 %v1335, 256
        %v1338 = vpop.permute.xlu0 %1337
        %s1340 = sor.u32 256, 8
        %1341 = vbcast.lane.b32.xlu0 %v1335, %s1340
        %v1342 = vpop.permute.xlu0 %1341
        %s1344 = sor.u32 256, 16
        %1345 = vbcast.lane.b32.xlu0 %v1335, %s1344
        %v1346 = vpop.permute.xlu0 %1345
        %s1348 = sor.u32 256, 24
        %1349 = vbcast.lane.b32.xlu0 %v1335, %s1348
        %v1350 = vpop.permute.xlu0 %1349
        %v1351 = vlaneseq
        %v1352 = vshrl.u32 %v1351, 7
        %v1353 = vsub.s32 0, %v1352
        %v1354 = vrot.slane %v894, %v1353
        %1356 = vbcast.lane.b32.xlu0 %v1354, 256
        %v1357 = vpop.permute.xlu0 %1356
        %s1359 = sor.u32 256, 8
        %1360 = vbcast.lane.b32.xlu0 %v1354, %s1359
        %v1361 = vpop.permute.xlu0 %1360
        %s1363 = sor.u32 256, 16
        %1364 = vbcast.lane.b32.xlu0 %v1354, %s1363
        %v1365 = vpop.permute.xlu0 %1364
        %s1367 = sor.u32 256, 24
        %1368 = vbcast.lane.b32.xlu0 %v1354, %s1367
        %v1369 = vpop.permute.xlu0 %1368
        %v1370 = vlaneseq
        %v1371 = vshrl.u32 %v1370, 7
        %v1372 = vsub.s32 1, %v1371
        %v1373 = vrot.slane %v894, %v1372
        %1375 = vbcast.lane.b32.xlu0 %v1373, 256
        %v1376 = vpop.permute.xlu0 %1375
        %s1378 = sor.u32 256, 8
        %1379 = vbcast.lane.b32.xlu0 %v1373, %s1378
        %v1380 = vpop.permute.xlu0 %1379
        %s1382 = sor.u32 256, 16
        %1383 = vbcast.lane.b32.xlu0 %v1373, %s1382
        %v1384 = vpop.permute.xlu0 %1383
        %s1386 = sor.u32 256, 24
        %1387 = vbcast.lane.b32.xlu0 %v1373, %s1386
        %v1388 = vpop.permute.xlu0 %1387
        %v1389 = vlaneseq
        %v1390 = vshrl.u32 %v1389, 7
        %v1391 = vsub.s32 2, %v1390
        %v1392 = vrot.slane %v894, %v1391
        %1394 = vbcast.lane.b32.xlu0 %v1392, 256
        %v1395 = vpop.permute.xlu0 %1394
        %s1397 = sor.u32 256, 8
        %1398 = vbcast.lane.b32.xlu0 %v1392, %s1397
        %v1399 = vpop.permute.xlu0 %1398
        %s1401 = sor.u32 256, 16
        %1402 = vbcast.lane.b32.xlu0 %v1392, %s1401
        %v1403 = vpop.permute.xlu0 %1402
        %s1405 = sor.u32 256, 24
        %1406 = vbcast.lane.b32.xlu0 %v1392, %s1405
        %v1407 = vpop.permute.xlu0 %1406
        %v1408 = vlaneseq
        %v1409 = vshrl.u32 %v1408, 7
        %v1410 = vsub.s32 3, %v1409
        %v1411 = vrot.slane %v894, %v1410
        %1413 = vbcast.lane.b32.xlu0 %v1411, 256
        %v1414 = vpop.permute.xlu0 %1413
        %s1416 = sor.u32 256, 8
        %1417 = vbcast.lane.b32.xlu0 %v1411, %s1416
        %v1418 = vpop.permute.xlu0 %1417
        %s1420 = sor.u32 256, 16
        %1421 = vbcast.lane.b32.xlu0 %v1411, %s1420
        %v1422 = vpop.permute.xlu0 %1421
        %s1424 = sor.u32 256, 24
        %1425 = vbcast.lane.b32.xlu0 %v1411, %s1424
        %v1426 = vpop.permute.xlu0 %1425
        %v1427 = vlaneseq
        %v1428 = vshrl.u32 %v1427, 7
        %v1429 = vsub.s32 4, %v1428
        %v1430 = vrot.slane %v894, %v1429
        %1432 = vbcast.lane.b32.xlu0 %v1430, 256
        %v1433 = vpop.permute.xlu0 %1432
        %s1435 = sor.u32 256, 8
        %1436 = vbcast.lane.b32.xlu0 %v1430, %s1435
        %v1437 = vpop.permute.xlu0 %1436
        %s1439 = sor.u32 256, 16
        %1440 = vbcast.lane.b32.xlu0 %v1430, %s1439
        %v1441 = vpop.permute.xlu0 %1440
        %s1443 = sor.u32 256, 24
        %1444 = vbcast.lane.b32.xlu0 %v1430, %s1443
        %v1445 = vpop.permute.xlu0 %1444
        %v1446 = vlaneseq
        %v1447 = vshrl.u32 %v1446, 7
        %v1448 = vsub.s32 5, %v1447
        %v1449 = vrot.slane %v894, %v1448
        %1451 = vbcast.lane.b32.xlu0 %v1449, 256
        %v1452 = vpop.permute.xlu0 %1451
        %s1454 = sor.u32 256, 8
        %1455 = vbcast.lane.b32.xlu0 %v1449, %s1454
        %v1456 = vpop.permute.xlu0 %1455
        %s1458 = sor.u32 256, 16
        %1459 = vbcast.lane.b32.xlu0 %v1449, %s1458
        %v1460 = vpop.permute.xlu0 %1459
        %s1462 = sor.u32 256, 24
        %1463 = vbcast.lane.b32.xlu0 %v1449, %s1462
        %v1464 = vpop.permute.xlu0 %1463
        %v1465 = vlaneseq
        %v1466 = vshrl.u32 %v1465, 7
        %v1467 = vsub.s32 6, %v1466
        %v1468 = vrot.slane %v894, %v1467
        %1470 = vbcast.lane.b32.xlu0 %v1468, 256
        %v1471 = vpop.permute.xlu0 %1470
        %s1473 = sor.u32 256, 8
        %1474 = vbcast.lane.b32.xlu0 %v1468, %s1473
        %v1475 = vpop.permute.xlu0 %1474
        %s1477 = sor.u32 256, 16
        %1478 = vbcast.lane.b32.xlu0 %v1468, %s1477
        %v1479 = vpop.permute.xlu0 %1478
        %s1481 = sor.u32 256, 24
        %1482 = vbcast.lane.b32.xlu0 %v1468, %s1481
        %v1483 = vpop.permute.xlu0 %1482
        %v1484 = vlaneseq
        %v1485 = vshrl.u32 %v1484, 7
        %v1486 = vsub.s32 7, %v1485
        %v1487 = vrot.slane %v894, %v1486
        %1489 = vbcast.lane.b32.xlu0 %v1487, 256
        %v1490 = vpop.permute.xlu0 %1489
        %s1492 = sor.u32 256, 8
        %1493 = vbcast.lane.b32.xlu0 %v1487, %s1492
        %v1494 = vpop.permute.xlu0 %1493
        %s1496 = sor.u32 256, 16
        %1497 = vbcast.lane.b32.xlu0 %v1487, %s1496
        %v1498 = vpop.permute.xlu0 %1497
        %s1500 = sor.u32 256, 24
        %1501 = vbcast.lane.b32.xlu0 %v1487, %s1500
        %v1502 = vpop.permute.xlu0 %1501
        %v1503 = vadd.f32 %v664, %v901
        %v1504 = vadd.f32 %v665, %v905
        %v1505 = vadd.f32 %v666, %v909
        %v1506 = vadd.f32 %v667, %v913
        %v1507 = vadd.f32 %v664, %v920
        %v1508 = vadd.f32 %v665, %v924
        %v1509 = vadd.f32 %v666, %v928
        %v1510 = vadd.f32 %v667, %v932
        %v1511 = vadd.f32 %v664, %v939
        %v1512 = vadd.f32 %v665, %v943
        %v1513 = vadd.f32 %v666, %v947
        %v1514 = vadd.f32 %v667, %v951
        %v1515 = vadd.f32 %v664, %v958
        %v1516 = vadd.f32 %v665, %v962
        %v1517 = vadd.f32 %v666, %v966
        %v1518 = vadd.f32 %v667, %v970
        %v1519 = vadd.f32 %v664, %v977
        %v1520 = vadd.f32 %v665, %v981
        %v1521 = vadd.f32 %v666, %v985
        %v1522 = vadd.f32 %v667, %v989
        %v1523 = vadd.f32 %v664, %v996
        %v1524 = vadd.f32 %v665, %v1000
        %v1525 = vadd.f32 %v666, %v1004
        %v1526 = vadd.f32 %v667, %v1008
        %v1527 = vadd.f32 %v664, %v1015
        %v1528 = vadd.f32 %v665, %v1019
        %v1529 = vadd.f32 %v666, %v1023
        %v1530 = vadd.f32 %v667, %v1027
        %v1531 = vadd.f32 %v664, %v1034
        %v1532 = vadd.f32 %v665, %v1038
        %v1533 = vadd.f32 %v666, %v1042
        %v1534 = vadd.f32 %v667, %v1046
        %v1535 = vadd.f32 %v664, %v1053
        %v1536 = vadd.f32 %v665, %v1057
        %v1537 = vadd.f32 %v666, %v1061
        %v1538 = vadd.f32 %v667, %v1065
        %v1539 = vadd.f32 %v664, %v1072
        %v1540 = vadd.f32 %v665, %v1076
        %v1541 = vadd.f32 %v666, %v1080
        %v1542 = vadd.f32 %v667, %v1084
        %v1543 = vadd.f32 %v664, %v1091
        %v1544 = vadd.f32 %v665, %v1095
        %v1545 = vadd.f32 %v666, %v1099
        %v1546 = vadd.f32 %v667, %v1103
        %v1547 = vadd.f32 %v664, %v1110
        %v1548 = vadd.f32 %v665, %v1114
        %v1549 = vadd.f32 %v666, %v1118
        %v1550 = vadd.f32 %v667, %v1122
        %v1551 = vadd.f32 %v664, %v1129
        %v1552 = vadd.f32 %v665, %v1133
        %v1553 = vadd.f32 %v666, %v1137
        %v1554 = vadd.f32 %v667, %v1141
        %v1555 = vadd.f32 %v664, %v1148
        %v1556 = vadd.f32 %v665, %v1152
        %v1557 = vadd.f32 %v666, %v1156
        %v1558 = vadd.f32 %v667, %v1160
        %v1559 = vadd.f32 %v664, %v1167
        %v1560 = vadd.f32 %v665, %v1171
        %v1561 = vadd.f32 %v666, %v1175
        %v1562 = vadd.f32 %v667, %v1179
        %v1563 = vadd.f32 %v664, %v1186
        %v1564 = vadd.f32 %v665, %v1190
        %v1565 = vadd.f32 %v666, %v1194
        %v1566 = vadd.f32 %v667, %v1198
        %v1567 = vadd.f32 %v664, %v1205
        %v1568 = vadd.f32 %v665, %v1209
        %v1569 = vadd.f32 %v666, %v1213
        %v1570 = vadd.f32 %v667, %v1217
        %v1571 = vadd.f32 %v664, %v1224
        %v1572 = vadd.f32 %v665, %v1228
        %v1573 = vadd.f32 %v666, %v1232
        %v1574 = vadd.f32 %v667, %v1236
        %v1575 = vadd.f32 %v664, %v1243
        %v1576 = vadd.f32 %v665, %v1247
        %v1577 = vadd.f32 %v666, %v1251
        %v1578 = vadd.f32 %v667, %v1255
        %v1579 = vadd.f32 %v664, %v1262
        %v1580 = vadd.f32 %v665, %v1266
        %v1581 = vadd.f32 %v666, %v1270
        %v1582 = vadd.f32 %v667, %v1274
        %v1583 = vadd.f32 %v664, %v1281
        %v1584 = vadd.f32 %v665, %v1285
        %v1585 = vadd.f32 %v666, %v1289
        %v1586 = vadd.f32 %v667, %v1293
        %v1587 = vadd.f32 %v664, %v1300
        %v1588 = vadd.f32 %v665, %v1304
        %v1589 = vadd.f32 %v666, %v1308
        %v1590 = vadd.f32 %v667, %v1312
        %v1591 = vadd.f32 %v664, %v1319
        %v1592 = vadd.f32 %v665, %v1323
        %v1593 = vadd.f32 %v666, %v1327
        %v1594 = vadd.f32 %v667, %v1331
        %v1595 = vadd.f32 %v664, %v1338
        %v1596 = vadd.f32 %v665, %v1342
        %v1597 = vadd.f32 %v666, %v1346
        %v1598 = vadd.f32 %v667, %v1350
        %v1599 = vadd.f32 %v664, %v1357
        %v1600 = vadd.f32 %v665, %v1361
        %v1601 = vadd.f32 %v666, %v1365
        %v1602 = vadd.f32 %v667, %v1369
        %v1603 = vadd.f32 %v664, %v1376
        %v1604 = vadd.f32 %v665, %v1380
        %v1605 = vadd.f32 %v666, %v1384
        %v1606 = vadd.f32 %v667, %v1388
        %v1607 = vadd.f32 %v664, %v1395
        %v1608 = vadd.f32 %v665, %v1399
        %v1609 = vadd.f32 %v666, %v1403
        %v1610 = vadd.f32 %v667, %v1407
        %v1611 = vadd.f32 %v664, %v1414
        %v1612 = vadd.f32 %v665, %v1418
        %v1613 = vadd.f32 %v666, %v1422
        %v1614 = vadd.f32 %v667, %v1426
        %v1615 = vadd.f32 %v664, %v1433
        %v1616 = vadd.f32 %v665, %v1437
        %v1617 = vadd.f32 %v666, %v1441
        %v1618 = vadd.f32 %v667, %v1445
        %v1619 = vadd.f32 %v664, %v1452
        %v1620 = vadd.f32 %v665, %v1456
        %v1621 = vadd.f32 %v666, %v1460
        %v1622 = vadd.f32 %v667, %v1464
        %v1623 = vadd.f32 %v664, %v1471
        %v1624 = vadd.f32 %v665, %v1475
        %v1625 = vadd.f32 %v666, %v1479
        %v1626 = vadd.f32 %v667, %v1483
        %v1627 = vadd.f32 %v664, %v1490
        %v1628 = vadd.f32 %v665, %v1494
        %v1629 = vadd.f32 %v666, %v1498
        %v1630 = vadd.f32 %v667, %v1502
        %v1631 = vmin.f32 %v1503, %v1504
        %v1632 = vmin.f32 %v1631, %v1505
        %v1633 = vmin.f32 %v1632, %v1506
        %v1634 = vrot.slane %v1633, 4
        %v1635 = vmin.f32 %v1633, %v1634
        %v1636 = vrot.slane %v1635, 2
        %v1637 = vmin.f32 %v1635, %v1636
        %v1638 = vrot.slane %v1637, 1
        %v1639 = vmin.f32 %v1637, %v1638
        %v1640 = vmin.f32 %v1507, %v1508
        %v1641 = vmin.f32 %v1640, %v1509
        %v1642 = vmin.f32 %v1641, %v1510
        %v1643 = vrot.slane %v1642, 4
        %v1644 = vmin.f32 %v1642, %v1643
        %v1645 = vrot.slane %v1644, 2
        %v1646 = vmin.f32 %v1644, %v1645
        %v1647 = vrot.slane %v1646, 1
        %v1648 = vmin.f32 %v1646, %v1647
        %v1649 = vmin.f32 %v1511, %v1512
        %v1650 = vmin.f32 %v1649, %v1513
        %v1651 = vmin.f32 %v1650, %v1514
        %v1652 = vrot.slane %v1651, 4
        %v1653 = vmin.f32 %v1651, %v1652
        %v1654 = vrot.slane %v1653, 2
        %v1655 = vmin.f32 %v1653, %v1654
        %v1656 = vrot.slane %v1655, 1
        %v1657 = vmin.f32 %v1655, %v1656
        %v1658 = vmin.f32 %v1515, %v1516
        %v1659 = vmin.f32 %v1658, %v1517
        %v1660 = vmin.f32 %v1659, %v1518
        %v1661 = vrot.slane %v1660, 4
        %v1662 = vmin.f32 %v1660, %v1661
        %v1663 = vrot.slane %v1662, 2
        %v1664 = vmin.f32 %v1662, %v1663
        %v1665 = vrot.slane %v1664, 1
        %v1666 = vmin.f32 %v1664, %v1665
        %v1667 = vmin.f32 %v1519, %v1520
        %v1668 = vmin.f32 %v1667, %v1521
        %v1669 = vmin.f32 %v1668, %v1522
        %v1670 = vrot.slane %v1669, 4
        %v1671 = vmin.f32 %v1669, %v1670
        %v1672 = vrot.slane %v1671, 2
        %v1673 = vmin.f32 %v1671, %v1672
        %v1674 = vrot.slane %v1673, 1
        %v1675 = vmin.f32 %v1673, %v1674
        %v1676 = vmin.f32 %v1523, %v1524
        %v1677 = vmin.f32 %v1676, %v1525
        %v1678 = vmin.f32 %v1677, %v1526
        %v1679 = vrot.slane %v1678, 4
        %v1680 = vmin.f32 %v1678, %v1679
        %v1681 = vrot.slane %v1680, 2
        %v1682 = vmin.f32 %v1680, %v1681
        %v1683 = vrot.slane %v1682, 1
        %v1684 = vmin.f32 %v1682, %v1683
        %v1685 = vmin.f32 %v1527, %v1528
        %v1686 = vmin.f32 %v1685, %v1529
        %v1687 = vmin.f32 %v1686, %v1530
        %v1688 = vrot.slane %v1687, 4
        %v1689 = vmin.f32 %v1687, %v1688
        %v1690 = vrot.slane %v1689, 2
        %v1691 = vmin.f32 %v1689, %v1690
        %v1692 = vrot.slane %v1691, 1
        %v1693 = vmin.f32 %v1691, %v1692
        %v1694 = vmin.f32 %v1531, %v1532
        %v1695 = vmin.f32 %v1694, %v1533
        %v1696 = vmin.f32 %v1695, %v1534
        %v1697 = vrot.slane %v1696, 4
        %v1698 = vmin.f32 %v1696, %v1697
        %v1699 = vrot.slane %v1698, 2
        %v1700 = vmin.f32 %v1698, %v1699
        %v1701 = vrot.slane %v1700, 1
        %v1702 = vmin.f32 %v1700, %v1701
        %v1703 = vmin.f32 %v1535, %v1536
        %v1704 = vmin.f32 %v1703, %v1537
        %v1705 = vmin.f32 %v1704, %v1538
        %v1706 = vrot.slane %v1705, 4
        %v1707 = vmin.f32 %v1705, %v1706
        %v1708 = vrot.slane %v1707, 2
        %v1709 = vmin.f32 %v1707, %v1708
        %v1710 = vrot.slane %v1709, 1
        %v1711 = vmin.f32 %v1709, %v1710
        %v1712 = vmin.f32 %v1539, %v1540
        %v1713 = vmin.f32 %v1712, %v1541
        %v1714 = vmin.f32 %v1713, %v1542
        %v1715 = vrot.slane %v1714, 4
        %v1716 = vmin.f32 %v1714, %v1715
        %v1717 = vrot.slane %v1716, 2
        %v1718 = vmin.f32 %v1716, %v1717
        %v1719 = vrot.slane %v1718, 1
        %v1720 = vmin.f32 %v1718, %v1719
        %v1721 = vmin.f32 %v1543, %v1544
        %v1722 = vmin.f32 %v1721, %v1545
        %v1723 = vmin.f32 %v1722, %v1546
        %v1724 = vrot.slane %v1723, 4
        %v1725 = vmin.f32 %v1723, %v1724
        %v1726 = vrot.slane %v1725, 2
        %v1727 = vmin.f32 %v1725, %v1726
        %v1728 = vrot.slane %v1727, 1
        %v1729 = vmin.f32 %v1727, %v1728
        %v1730 = vmin.f32 %v1547, %v1548
        %v1731 = vmin.f32 %v1730, %v1549
        %v1732 = vmin.f32 %v1731, %v1550
        %v1733 = vrot.slane %v1732, 4
        %v1734 = vmin.f32 %v1732, %v1733
        %v1735 = vrot.slane %v1734, 2
        %v1736 = vmin.f32 %v1734, %v1735
        %v1737 = vrot.slane %v1736, 1
        %v1738 = vmin.f32 %v1736, %v1737
        %v1739 = vmin.f32 %v1551, %v1552
        %v1740 = vmin.f32 %v1739, %v1553
        %v1741 = vmin.f32 %v1740, %v1554
        %v1742 = vrot.slane %v1741, 4
        %v1743 = vmin.f32 %v1741, %v1742
        %v1744 = vrot.slane %v1743, 2
        %v1745 = vmin.f32 %v1743, %v1744
        %v1746 = vrot.slane %v1745, 1
        %v1747 = vmin.f32 %v1745, %v1746
        %v1748 = vmin.f32 %v1555, %v1556
        %v1749 = vmin.f32 %v1748, %v1557
        %v1750 = vmin.f32 %v1749, %v1558
        %v1751 = vrot.slane %v1750, 4
        %v1752 = vmin.f32 %v1750, %v1751
        %v1753 = vrot.slane %v1752, 2
        %v1754 = vmin.f32 %v1752, %v1753
        %v1755 = vrot.slane %v1754, 1
        %v1756 = vmin.f32 %v1754, %v1755
        %v1757 = vmin.f32 %v1559, %v1560
        %v1758 = vmin.f32 %v1757, %v1561
        %v1759 = vmin.f32 %v1758, %v1562
        %v1760 = vrot.slane %v1759, 4
        %v1761 = vmin.f32 %v1759, %v1760
        %v1762 = vrot.slane %v1761, 2
        %v1763 = vmin.f32 %v1761, %v1762
        %v1764 = vrot.slane %v1763, 1
        %v1765 = vmin.f32 %v1763, %v1764
        %v1766 = vmin.f32 %v1563, %v1564
        %v1767 = vmin.f32 %v1766, %v1565
        %v1768 = vmin.f32 %v1767, %v1566
        %v1769 = vrot.slane %v1768, 4
        %v1770 = vmin.f32 %v1768, %v1769
        %v1771 = vrot.slane %v1770, 2
        %v1772 = vmin.f32 %v1770, %v1771
        %v1773 = vrot.slane %v1772, 1
        %v1774 = vmin.f32 %v1772, %v1773
        %v1775 = vmin.f32 %v1567, %v1568
        %v1776 = vmin.f32 %v1775, %v1569
        %v1777 = vmin.f32 %v1776, %v1570
        %v1778 = vrot.slane %v1777, 4
        %v1779 = vmin.f32 %v1777, %v1778
        %v1780 = vrot.slane %v1779, 2
        %v1781 = vmin.f32 %v1779, %v1780
        %v1782 = vrot.slane %v1781, 1
        %v1783 = vmin.f32 %v1781, %v1782
        %v1784 = vmin.f32 %v1571, %v1572
        %v1785 = vmin.f32 %v1784, %v1573
        %v1786 = vmin.f32 %v1785, %v1574
        %v1787 = vrot.slane %v1786, 4
        %v1788 = vmin.f32 %v1786, %v1787
        %v1789 = vrot.slane %v1788, 2
        %v1790 = vmin.f32 %v1788, %v1789
        %v1791 = vrot.slane %v1790, 1
        %v1792 = vmin.f32 %v1790, %v1791
        %v1793 = vmin.f32 %v1575, %v1576
        %v1794 = vmin.f32 %v1793, %v1577
        %v1795 = vmin.f32 %v1794, %v1578
        %v1796 = vrot.slane %v1795, 4
        %v1797 = vmin.f32 %v1795, %v1796
        %v1798 = vrot.slane %v1797, 2
        %v1799 = vmin.f32 %v1797, %v1798
        %v1800 = vrot.slane %v1799, 1
        %v1801 = vmin.f32 %v1799, %v1800
        %v1802 = vmin.f32 %v1579, %v1580
        %v1803 = vmin.f32 %v1802, %v1581
        %v1804 = vmin.f32 %v1803, %v1582
        %v1805 = vrot.slane %v1804, 4
        %v1806 = vmin.f32 %v1804, %v1805
        %v1807 = vrot.slane %v1806, 2
        %v1808 = vmin.f32 %v1806, %v1807
        %v1809 = vrot.slane %v1808, 1
        %v1810 = vmin.f32 %v1808, %v1809
        %v1811 = vmin.f32 %v1583, %v1584
        %v1812 = vmin.f32 %v1811, %v1585
        %v1813 = vmin.f32 %v1812, %v1586
        %v1814 = vrot.slane %v1813, 4
        %v1815 = vmin.f32 %v1813, %v1814
        %v1816 = vrot.slane %v1815, 2
        %v1817 = vmin.f32 %v1815, %v1816
        %v1818 = vrot.slane %v1817, 1
        %v1819 = vmin.f32 %v1817, %v1818
        %v1820 = vmin.f32 %v1587, %v1588
        %v1821 = vmin.f32 %v1820, %v1589
        %v1822 = vmin.f32 %v1821, %v1590
        %v1823 = vrot.slane %v1822, 4
        %v1824 = vmin.f32 %v1822, %v1823
        %v1825 = vrot.slane %v1824, 2
        %v1826 = vmin.f32 %v1824, %v1825
        %v1827 = vrot.slane %v1826, 1
        %v1828 = vmin.f32 %v1826, %v1827
        %v1829 = vmin.f32 %v1591, %v1592
        %v1830 = vmin.f32 %v1829, %v1593
        %v1831 = vmin.f32 %v1830, %v1594
        %v1832 = vrot.slane %v1831, 4
        %v1833 = vmin.f32 %v1831, %v1832
        %v1834 = vrot.slane %v1833, 2
        %v1835 = vmin.f32 %v1833, %v1834
        %v1836 = vrot.slane %v1835, 1
        %v1837 = vmin.f32 %v1835, %v1836
        %v1838 = vmin.f32 %v1595, %v1596
        %v1839 = vmin.f32 %v1838, %v1597
        %v1840 = vmin.f32 %v1839, %v1598
        %v1841 = vrot.slane %v1840, 4
        %v1842 = vmin.f32 %v1840, %v1841
        %v1843 = vrot.slane %v1842, 2
        %v1844 = vmin.f32 %v1842, %v1843
        %v1845 = vrot.slane %v1844, 1
        %v1846 = vmin.f32 %v1844, %v1845
        %v1847 = vmin.f32 %v1599, %v1600
        %v1848 = vmin.f32 %v1847, %v1601
        %v1849 = vmin.f32 %v1848, %v1602
        %v1850 = vrot.slane %v1849, 4
        %v1851 = vmin.f32 %v1849, %v1850
        %v1852 = vrot.slane %v1851, 2
        %v1853 = vmin.f32 %v1851, %v1852
        %v1854 = vrot.slane %v1853, 1
        %v1855 = vmin.f32 %v1853, %v1854
        %v1856 = vmin.f32 %v1603, %v1604
        %v1857 = vmin.f32 %v1856, %v1605
        %v1858 = vmin.f32 %v1857, %v1606
        %v1859 = vrot.slane %v1858, 4
        %v1860 = vmin.f32 %v1858, %v1859
        %v1861 = vrot.slane %v1860, 2
        %v1862 = vmin.f32 %v1860, %v1861
        %v1863 = vrot.slane %v1862, 1
        %v1864 = vmin.f32 %v1862, %v1863
        %v1865 = vmin.f32 %v1607, %v1608
        %v1866 = vmin.f32 %v1865, %v1609
        %v1867 = vmin.f32 %v1866, %v1610
        %v1868 = vrot.slane %v1867, 4
        %v1869 = vmin.f32 %v1867, %v1868
        %v1870 = vrot.slane %v1869, 2
        %v1871 = vmin.f32 %v1869, %v1870
        %v1872 = vrot.slane %v1871, 1
        %v1873 = vmin.f32 %v1871, %v1872
        %v1874 = vmin.f32 %v1611, %v1612
        %v1875 = vmin.f32 %v1874, %v1613
        %v1876 = vmin.f32 %v1875, %v1614
        %v1877 = vrot.slane %v1876, 4
        %v1878 = vmin.f32 %v1876, %v1877
        %v1879 = vrot.slane %v1878, 2
        %v1880 = vmin.f32 %v1878, %v1879
        %v1881 = vrot.slane %v1880, 1
        %v1882 = vmin.f32 %v1880, %v1881
        %v1883 = vmin.f32 %v1615, %v1616
        %v1884 = vmin.f32 %v1883, %v1617
        %v1885 = vmin.f32 %v1884, %v1618
        %v1886 = vrot.slane %v1885, 4
        %v1887 = vmin.f32 %v1885, %v1886
        %v1888 = vrot.slane %v1887, 2
        %v1889 = vmin.f32 %v1887, %v1888
        %v1890 = vrot.slane %v1889, 1
        %v1891 = vmin.f32 %v1889, %v1890
        %v1892 = vmin.f32 %v1619, %v1620
        %v1893 = vmin.f32 %v1892, %v1621
        %v1894 = vmin.f32 %v1893, %v1622
        %v1895 = vrot.slane %v1894, 4
        %v1896 = vmin.f32 %v1894, %v1895
        %v1897 = vrot.slane %v1896, 2
        %v1898 = vmin.f32 %v1896, %v1897
        %v1899 = vrot.slane %v1898, 1
        %v1900 = vmin.f32 %v1898, %v1899
        %v1901 = vmin.f32 %v1623, %v1624
        %v1902 = vmin.f32 %v1901, %v1625
        %v1903 = vmin.f32 %v1902, %v1626
        %v1904 = vrot.slane %v1903, 4
        %v1905 = vmin.f32 %v1903, %v1904
        %v1906 = vrot.slane %v1905, 2
        %v1907 = vmin.f32 %v1905, %v1906
        %v1908 = vrot.slane %v1907, 1
        %v1909 = vmin.f32 %v1907, %v1908
        %v1910 = vmin.f32 %v1627, %v1628
        %v1911 = vmin.f32 %v1910, %v1629
        %v1912 = vmin.f32 %v1911, %v1630
        %v1913 = vrot.slane %v1912, 4
        %v1914 = vmin.f32 %v1912, %v1913
        %v1915 = vrot.slane %v1914, 2
        %v1916 = vmin.f32 %v1914, %v1915
        %v1917 = vrot.slane %v1916, 1
        %v1918 = vmin.f32 %v1916, %v1917
        %v1919 = vsub.f32 %v664, %v901
        %v1920 = vsub.f32 %v665, %v905
        %v1921 = vsub.f32 %v666, %v909
        %v1922 = vsub.f32 %v667, %v913
        %v1923 = vsub.f32 %v664, %v920
        %v1924 = vsub.f32 %v665, %v924
        %v1925 = vsub.f32 %v666, %v928
        %v1926 = vsub.f32 %v667, %v932
        %v1927 = vsub.f32 %v664, %v939
        %v1928 = vsub.f32 %v665, %v943
        %v1929 = vsub.f32 %v666, %v947
        %v1930 = vsub.f32 %v667, %v951
        %v1931 = vsub.f32 %v664, %v958
        %v1932 = vsub.f32 %v665, %v962
        %v1933 = vsub.f32 %v666, %v966
        %v1934 = vsub.f32 %v667, %v970
        %v1935 = vsub.f32 %v664, %v977
        %v1936 = vsub.f32 %v665, %v981
        %v1937 = vsub.f32 %v666, %v985
        %v1938 = vsub.f32 %v667, %v989
        %v1939 = vsub.f32 %v664, %v996
        %v1940 = vsub.f32 %v665, %v1000
        %v1941 = vsub.f32 %v666, %v1004
        %v1942 = vsub.f32 %v667, %v1008
        %v1943 = vsub.f32 %v664, %v1015
        %v1944 = vsub.f32 %v665, %v1019
        %v1945 = vsub.f32 %v666, %v1023
        %v1946 = vsub.f32 %v667, %v1027
        %v1947 = vsub.f32 %v664, %v1034
        %v1948 = vsub.f32 %v665, %v1038
        %v1949 = vsub.f32 %v666, %v1042
        %v1950 = vsub.f32 %v667, %v1046
        %v1951 = vsub.f32 %v664, %v1053
        %v1952 = vsub.f32 %v665, %v1057
        %v1953 = vsub.f32 %v666, %v1061
        %v1954 = vsub.f32 %v667, %v1065
        %v1955 = vsub.f32 %v664, %v1072
        %v1956 = vsub.f32 %v665, %v1076
        %v1957 = vsub.f32 %v666, %v1080
        %v1958 = vsub.f32 %v667, %v1084
        %v1959 = vsub.f32 %v664, %v1091
        %v1960 = vsub.f32 %v665, %v1095
        %v1961 = vsub.f32 %v666, %v1099
        %v1962 = vsub.f32 %v667, %v1103
        %v1963 = vsub.f32 %v664, %v1110
        %v1964 = vsub.f32 %v665, %v1114
        %v1965 = vsub.f32 %v666, %v1118
        %v1966 = vsub.f32 %v667, %v1122
        %v1967 = vsub.f32 %v664, %v1129
        %v1968 = vsub.f32 %v665, %v1133
        %v1969 = vsub.f32 %v666, %v1137
        %v1970 = vsub.f32 %v667, %v1141
        %v1971 = vsub.f32 %v664, %v1148
        %v1972 = vsub.f32 %v665, %v1152
        %v1973 = vsub.f32 %v666, %v1156
        %v1974 = vsub.f32 %v667, %v1160
        %v1975 = vsub.f32 %v664, %v1167
        %v1976 = vsub.f32 %v665, %v1171
        %v1977 = vsub.f32 %v666, %v1175
        %v1978 = vsub.f32 %v667, %v1179
        %v1979 = vsub.f32 %v664, %v1186
        %v1980 = vsub.f32 %v665, %v1190
        %v1981 = vsub.f32 %v666, %v1194
        %v1982 = vsub.f32 %v667, %v1198
        %v1983 = vsub.f32 %v664, %v1205
        %v1984 = vsub.f32 %v665, %v1209
        %v1985 = vsub.f32 %v666, %v1213
        %v1986 = vsub.f32 %v667, %v1217
        %v1987 = vsub.f32 %v664, %v1224
        %v1988 = vsub.f32 %v665, %v1228
        %v1989 = vsub.f32 %v666, %v1232
        %v1990 = vsub.f32 %v667, %v1236
        %v1991 = vsub.f32 %v664, %v1243
        %v1992 = vsub.f32 %v665, %v1247
        %v1993 = vsub.f32 %v666, %v1251
        %v1994 = vsub.f32 %v667, %v1255
        %v1995 = vsub.f32 %v664, %v1262
        %v1996 = vsub.f32 %v665, %v1266
        %v1997 = vsub.f32 %v666, %v1270
        %v1998 = vsub.f32 %v667, %v1274
        %v1999 = vsub.f32 %v664, %v1281
        %v2000 = vsub.f32 %v665, %v1285
        %v2001 = vsub.f32 %v666, %v1289
        %v2002 = vsub.f32 %v667, %v1293
        %v2003 = vsub.f32 %v664, %v1300
        %v2004 = vsub.f32 %v665, %v1304
        %v2005 = vsub.f32 %v666, %v1308
        %v2006 = vsub.f32 %v667, %v1312
        %v2007 = vsub.f32 %v664, %v1319
        %v2008 = vsub.f32 %v665, %v1323
        %v2009 = vsub.f32 %v666, %v1327
        %v2010 = vsub.f32 %v667, %v1331
        %v2011 = vsub.f32 %v664, %v1338
        %v2012 = vsub.f32 %v665, %v1342
        %v2013 = vsub.f32 %v666, %v1346
        %v2014 = vsub.f32 %v667, %v1350
        %v2015 = vsub.f32 %v664, %v1357
        %v2016 = vsub.f32 %v665, %v1361
        %v2017 = vsub.f32 %v666, %v1365
        %v2018 = vsub.f32 %v667, %v1369
        %v2019 = vsub.f32 %v664, %v1376
        %v2020 = vsub.f32 %v665, %v1380
        %v2021 = vsub.f32 %v666, %v1384
        %v2022 = vsub.f32 %v667, %v1388
        %v2023 = vsub.f32 %v664, %v1395
        %v2024 = vsub.f32 %v665, %v1399
        %v2025 = vsub.f32 %v666, %v1403
        %v2026 = vsub.f32 %v667, %v1407
        %v2027 = vsub.f32 %v664, %v1414
        %v2028 = vsub.f32 %v665, %v1418
        %v2029 = vsub.f32 %v666, %v1422
        %v2030 = vsub.f32 %v667, %v1426
        %v2031 = vsub.f32 %v664, %v1433
        %v2032 = vsub.f32 %v665, %v1437
        %v2033 = vsub.f32 %v666, %v1441
        %v2034 = vsub.f32 %v667, %v1445
        %v2035 = vsub.f32 %v664, %v1452
        %v2036 = vsub.f32 %v665, %v1456
        %v2037 = vsub.f32 %v666, %v1460
        %v2038 = vsub.f32 %v667, %v1464
        %v2039 = vsub.f32 %v664, %v1471
        %v2040 = vsub.f32 %v665, %v1475
        %v2041 = vsub.f32 %v666, %v1479
        %v2042 = vsub.f32 %v667, %v1483
        %v2043 = vsub.f32 %v664, %v1490
        %v2044 = vsub.f32 %v665, %v1494
        %v2045 = vsub.f32 %v666, %v1498
        %v2046 = vsub.f32 %v667, %v1502
        %v2047 = vmax.f32 %v1919, %v1920
        %v2048 = vmax.f32 %v2047, %v1921
        %v2049 = vmax.f32 %v2048, %v1922
        %v2050 = vrot.slane %v2049, 4
        %v2051 = vmax.f32 %v2049, %v2050
        %v2052 = vrot.slane %v2051, 2
        %v2053 = vmax.f32 %v2051, %v2052
        %v2054 = vrot.slane %v2053, 1
        %v2055 = vmax.f32 %v2053, %v2054
        %v2056 = vmax.f32 %v1923, %v1924
        %v2057 = vmax.f32 %v2056, %v1925
        %v2058 = vmax.f32 %v2057, %v1926
        %v2059 = vrot.slane %v2058, 4
        %v2060 = vmax.f32 %v2058, %v2059
        %v2061 = vrot.slane %v2060, 2
        %v2062 = vmax.f32 %v2060, %v2061
        %v2063 = vrot.slane %v2062, 1
        %v2064 = vmax.f32 %v2062, %v2063
        %v2065 = vmax.f32 %v1927, %v1928
        %v2066 = vmax.f32 %v2065, %v1929
        %v2067 = vmax.f32 %v2066, %v1930
        %v2068 = vrot.slane %v2067, 4
        %v2069 = vmax.f32 %v2067, %v2068
        %v2070 = vrot.slane %v2069, 2
        %v2071 = vmax.f32 %v2069, %v2070
        %v2072 = vrot.slane %v2071, 1
        %v2073 = vmax.f32 %v2071, %v2072
        %v2074 = vmax.f32 %v1931, %v1932
        %v2075 = vmax.f32 %v2074, %v1933
        %v2076 = vmax.f32 %v2075, %v1934
        %v2077 = vrot.slane %v2076, 4
        %v2078 = vmax.f32 %v2076, %v2077
        %v2079 = vrot.slane %v2078, 2
        %v2080 = vmax.f32 %v2078, %v2079
        %v2081 = vrot.slane %v2080, 1
        %v2082 = vmax.f32 %v2080, %v2081
        %v2083 = vmax.f32 %v1935, %v1936
        %v2084 = vmax.f32 %v2083, %v1937
        %v2085 = vmax.f32 %v2084, %v1938
        %v2086 = vrot.slane %v2085, 4
        %v2087 = vmax.f32 %v2085, %v2086
        %v2088 = vrot.slane %v2087, 2
        %v2089 = vmax.f32 %v2087, %v2088
        %v2090 = vrot.slane %v2089, 1
        %v2091 = vmax.f32 %v2089, %v2090
        %v2092 = vmax.f32 %v1939, %v1940
        %v2093 = vmax.f32 %v2092, %v1941
        %v2094 = vmax.f32 %v2093, %v1942
        %v2095 = vrot.slane %v2094, 4
        %v2096 = vmax.f32 %v2094, %v2095
        %v2097 = vrot.slane %v2096, 2
        %v2098 = vmax.f32 %v2096, %v2097
        %v2099 = vrot.slane %v2098, 1
        %v2100 = vmax.f32 %v2098, %v2099
        %v2101 = vmax.f32 %v1943, %v1944
        %v2102 = vmax.f32 %v2101, %v1945
        %v2103 = vmax.f32 %v2102, %v1946
        %v2104 = vrot.slane %v2103, 4
        %v2105 = vmax.f32 %v2103, %v2104
        %v2106 = vrot.slane %v2105, 2
        %v2107 = vmax.f32 %v2105, %v2106
        %v2108 = vrot.slane %v2107, 1
        %v2109 = vmax.f32 %v2107, %v2108
        %v2110 = vmax.f32 %v1947, %v1948
        %v2111 = vmax.f32 %v2110, %v1949
        %v2112 = vmax.f32 %v2111, %v1950
        %v2113 = vrot.slane %v2112, 4
        %v2114 = vmax.f32 %v2112, %v2113
        %v2115 = vrot.slane %v2114, 2
        %v2116 = vmax.f32 %v2114, %v2115
        %v2117 = vrot.slane %v2116, 1
        %v2118 = vmax.f32 %v2116, %v2117
        %v2119 = vmax.f32 %v1951, %v1952
        %v2120 = vmax.f32 %v2119, %v1953
        %v2121 = vmax.f32 %v2120, %v1954
        %v2122 = vrot.slane %v2121, 4
        %v2123 = vmax.f32 %v2121, %v2122
        %v2124 = vrot.slane %v2123, 2
        %v2125 = vmax.f32 %v2123, %v2124
        %v2126 = vrot.slane %v2125, 1
        %v2127 = vmax.f32 %v2125, %v2126
        %v2128 = vmax.f32 %v1955, %v1956
        %v2129 = vmax.f32 %v2128, %v1957
        %v2130 = vmax.f32 %v2129, %v1958
        %v2131 = vrot.slane %v2130, 4
        %v2132 = vmax.f32 %v2130, %v2131
        %v2133 = vrot.slane %v2132, 2
        %v2134 = vmax.f32 %v2132, %v2133
        %v2135 = vrot.slane %v2134, 1
        %v2136 = vmax.f32 %v2134, %v2135
        %v2137 = vmax.f32 %v1959, %v1960
        %v2138 = vmax.f32 %v2137, %v1961
        %v2139 = vmax.f32 %v2138, %v1962
        %v2140 = vrot.slane %v2139, 4
        %v2141 = vmax.f32 %v2139, %v2140
        %v2142 = vrot.slane %v2141, 2
        %v2143 = vmax.f32 %v2141, %v2142
        %v2144 = vrot.slane %v2143, 1
        %v2145 = vmax.f32 %v2143, %v2144
        %v2146 = vmax.f32 %v1963, %v1964
        %v2147 = vmax.f32 %v2146, %v1965
        %v2148 = vmax.f32 %v2147, %v1966
        %v2149 = vrot.slane %v2148, 4
        %v2150 = vmax.f32 %v2148, %v2149
        %v2151 = vrot.slane %v2150, 2
        %v2152 = vmax.f32 %v2150, %v2151
        %v2153 = vrot.slane %v2152, 1
        %v2154 = vmax.f32 %v2152, %v2153
        %v2155 = vmax.f32 %v1967, %v1968
        %v2156 = vmax.f32 %v2155, %v1969
        %v2157 = vmax.f32 %v2156, %v1970
        %v2158 = vrot.slane %v2157, 4
        %v2159 = vmax.f32 %v2157, %v2158
        %v2160 = vrot.slane %v2159, 2
        %v2161 = vmax.f32 %v2159, %v2160
        %v2162 = vrot.slane %v2161, 1
        %v2163 = vmax.f32 %v2161, %v2162
        %v2164 = vmax.f32 %v1971, %v1972
        %v2165 = vmax.f32 %v2164, %v1973
        %v2166 = vmax.f32 %v2165, %v1974
        %v2167 = vrot.slane %v2166, 4
        %v2168 = vmax.f32 %v2166, %v2167
        %v2169 = vrot.slane %v2168, 2
        %v2170 = vmax.f32 %v2168, %v2169
        %v2171 = vrot.slane %v2170, 1
        %v2172 = vmax.f32 %v2170, %v2171
        %v2173 = vmax.f32 %v1975, %v1976
        %v2174 = vmax.f32 %v2173, %v1977
        %v2175 = vmax.f32 %v2174, %v1978
        %v2176 = vrot.slane %v2175, 4
        %v2177 = vmax.f32 %v2175, %v2176
        %v2178 = vrot.slane %v2177, 2
        %v2179 = vmax.f32 %v2177, %v2178
        %v2180 = vrot.slane %v2179, 1
        %v2181 = vmax.f32 %v2179, %v2180
        %v2182 = vmax.f32 %v1979, %v1980
        %v2183 = vmax.f32 %v2182, %v1981
        %v2184 = vmax.f32 %v2183, %v1982
        %v2185 = vrot.slane %v2184, 4
        %v2186 = vmax.f32 %v2184, %v2185
        %v2187 = vrot.slane %v2186, 2
        %v2188 = vmax.f32 %v2186, %v2187
        %v2189 = vrot.slane %v2188, 1
        %v2190 = vmax.f32 %v2188, %v2189
        %v2191 = vmax.f32 %v1983, %v1984
        %v2192 = vmax.f32 %v2191, %v1985
        %v2193 = vmax.f32 %v2192, %v1986
        %v2194 = vrot.slane %v2193, 4
        %v2195 = vmax.f32 %v2193, %v2194
        %v2196 = vrot.slane %v2195, 2
        %v2197 = vmax.f32 %v2195, %v2196
        %v2198 = vrot.slane %v2197, 1
        %v2199 = vmax.f32 %v2197, %v2198
        %v2200 = vmax.f32 %v1987, %v1988
        %v2201 = vmax.f32 %v2200, %v1989
        %v2202 = vmax.f32 %v2201, %v1990
        %v2203 = vrot.slane %v2202, 4
        %v2204 = vmax.f32 %v2202, %v2203
        %v2205 = vrot.slane %v2204, 2
        %v2206 = vmax.f32 %v2204, %v2205
        %v2207 = vrot.slane %v2206, 1
        %v2208 = vmax.f32 %v2206, %v2207
        %v2209 = vmax.f32 %v1991, %v1992
        %v2210 = vmax.f32 %v2209, %v1993
        %v2211 = vmax.f32 %v2210, %v1994
        %v2212 = vrot.slane %v2211, 4
        %v2213 = vmax.f32 %v2211, %v2212
        %v2214 = vrot.slane %v2213, 2
        %v2215 = vmax.f32 %v2213, %v2214
        %v2216 = vrot.slane %v2215, 1
        %v2217 = vmax.f32 %v2215, %v2216
        %v2218 = vmax.f32 %v1995, %v1996
        %v2219 = vmax.f32 %v2218, %v1997
        %v2220 = vmax.f32 %v2219, %v1998
        %v2221 = vrot.slane %v2220, 4
        %v2222 = vmax.f32 %v2220, %v2221
        %v2223 = vrot.slane %v2222, 2
        %v2224 = vmax.f32 %v2222, %v2223
        %v2225 = vrot.slane %v2224, 1
        %v2226 = vmax.f32 %v2224, %v2225
        %v2227 = vmax.f32 %v1999, %v2000
        %v2228 = vmax.f32 %v2227, %v2001
        %v2229 = vmax.f32 %v2228, %v2002
        %v2230 = vrot.slane %v2229, 4
        %v2231 = vmax.f32 %v2229, %v2230
        %v2232 = vrot.slane %v2231, 2
        %v2233 = vmax.f32 %v2231, %v2232
        %v2234 = vrot.slane %v2233, 1
        %v2235 = vmax.f32 %v2233, %v2234
        %v2236 = vmax.f32 %v2003, %v2004
        %v2237 = vmax.f32 %v2236, %v2005
        %v2238 = vmax.f32 %v2237, %v2006
        %v2239 = vrot.slane %v2238, 4
        %v2240 = vmax.f32 %v2238, %v2239
        %v2241 = vrot.slane %v2240, 2
        %v2242 = vmax.f32 %v2240, %v2241
        %v2243 = vrot.slane %v2242, 1
        %v2244 = vmax.f32 %v2242, %v2243
        %v2245 = vmax.f32 %v2007, %v2008
        %v2246 = vmax.f32 %v2245, %v2009
        %v2247 = vmax.f32 %v2246, %v2010
        %v2248 = vrot.slane %v2247, 4
        %v2249 = vmax.f32 %v2247, %v2248
        %v2250 = vrot.slane %v2249, 2
        %v2251 = vmax.f32 %v2249, %v2250
        %v2252 = vrot.slane %v2251, 1
        %v2253 = vmax.f32 %v2251, %v2252
        %v2254 = vmax.f32 %v2011, %v2012
        %v2255 = vmax.f32 %v2254, %v2013
        %v2256 = vmax.f32 %v2255, %v2014
        %v2257 = vrot.slane %v2256, 4
        %v2258 = vmax.f32 %v2256, %v2257
        %v2259 = vrot.slane %v2258, 2
        %v2260 = vmax.f32 %v2258, %v2259
        %v2261 = vrot.slane %v2260, 1
        %v2262 = vmax.f32 %v2260, %v2261
        %v2263 = vmax.f32 %v2015, %v2016
        %v2264 = vmax.f32 %v2263, %v2017
        %v2265 = vmax.f32 %v2264, %v2018
        %v2266 = vrot.slane %v2265, 4
        %v2267 = vmax.f32 %v2265, %v2266
        %v2268 = vrot.slane %v2267, 2
        %v2269 = vmax.f32 %v2267, %v2268
        %v2270 = vrot.slane %v2269, 1
        %v2271 = vmax.f32 %v2269, %v2270
        %v2272 = vmax.f32 %v2019, %v2020
        %v2273 = vmax.f32 %v2272, %v2021
        %v2274 = vmax.f32 %v2273, %v2022
        %v2275 = vrot.slane %v2274, 4
        %v2276 = vmax.f32 %v2274, %v2275
        %v2277 = vrot.slane %v2276, 2
        %v2278 = vmax.f32 %v2276, %v2277
        %v2279 = vrot.slane %v2278, 1
        %v2280 = vmax.f32 %v2278, %v2279
        %v2281 = vmax.f32 %v2023, %v2024
        %v2282 = vmax.f32 %v2281, %v2025
        %v2283 = vmax.f32 %v2282, %v2026
        %v2284 = vrot.slane %v2283, 4
        %v2285 = vmax.f32 %v2283, %v2284
        %v2286 = vrot.slane %v2285, 2
        %v2287 = vmax.f32 %v2285, %v2286
        %v2288 = vrot.slane %v2287, 1
        %v2289 = vmax.f32 %v2287, %v2288
        %v2290 = vmax.f32 %v2027, %v2028
        %v2291 = vmax.f32 %v2290, %v2029
        %v2292 = vmax.f32 %v2291, %v2030
        %v2293 = vrot.slane %v2292, 4
        %v2294 = vmax.f32 %v2292, %v2293
        %v2295 = vrot.slane %v2294, 2
        %v2296 = vmax.f32 %v2294, %v2295
        %v2297 = vrot.slane %v2296, 1
        %v2298 = vmax.f32 %v2296, %v2297
        %v2299 = vmax.f32 %v2031, %v2032
        %v2300 = vmax.f32 %v2299, %v2033
        %v2301 = vmax.f32 %v2300, %v2034
        %v2302 = vrot.slane %v2301, 4
        %v2303 = vmax.f32 %v2301, %v2302
        %v2304 = vrot.slane %v2303, 2
        %v2305 = vmax.f32 %v2303, %v2304
        %v2306 = vrot.slane %v2305, 1
        %v2307 = vmax.f32 %v2305, %v2306
        %v2308 = vmax.f32 %v2035, %v2036
        %v2309 = vmax.f32 %v2308, %v2037
        %v2310 = vmax.f32 %v2309, %v2038
        %v2311 = vrot.slane %v2310, 4
        %v2312 = vmax.f32 %v2310, %v2311
        %v2313 = vrot.slane %v2312, 2
        %v2314 = vmax.f32 %v2312, %v2313
        %v2315 = vrot.slane %v2314, 1
        %v2316 = vmax.f32 %v2314, %v2315
        %v2317 = vmax.f32 %v2039, %v2040
        %v2318 = vmax.f32 %v2317, %v2041
        %v2319 = vmax.f32 %v2318, %v2042
        %v2320 = vrot.slane %v2319, 4
        %v2321 = vmax.f32 %v2319, %v2320
        %v2322 = vrot.slane %v2321, 2
        %v2323 = vmax.f32 %v2321, %v2322
        %v2324 = vrot.slane %v2323, 1
        %v2325 = vmax.f32 %v2323, %v2324
        %v2326 = vmax.f32 %v2043, %v2044
        %v2327 = vmax.f32 %v2326, %v2045
        %v2328 = vmax.f32 %v2327, %v2046
        %v2329 = vrot.slane %v2328, 4
        %v2330 = vmax.f32 %v2328, %v2329
        %v2331 = vrot.slane %v2330, 2
        %v2332 = vmax.f32 %v2330, %v2331
        %v2333 = vrot.slane %v2332, 1
        %v2334 = vmax.f32 %v2332, %v2333
        %vm2335 = vcmp.gt.f32.partialorder %v672, 0.0
        %vm2336 = vcmp.gt.f32.partialorder %v673, 0.0
        %vm2337 = vcmp.gt.f32.partialorder %v674, 0.0
        %vm2338 = vcmp.gt.f32.partialorder %v675, 0.0
        %v2339 = vsel %vm2335, 1, 0
        %v2340 = vsel %vm2336, 1, 0
        %v2341 = vsel %vm2337, 1, 0
        %v2342 = vsel %vm2338, 1, 0
        %2343 = vset.pattern.permute.xlu0 0
        %2344 = vperm.xlu0 %2343, %v2339
        %v2345 = vpop.permute.xlu0 %2344
        %2346 = vset.pattern.permute.xlu0 0
        %2347 = vperm.xlu0 %2346, %v2340
        %v2348 = vpop.permute.xlu0 %2347
        %2349 = vset.pattern.permute.xlu0 0
        %2350 = vperm.xlu0 %2349, %v2341
        %v2351 = vpop.permute.xlu0 %2350
        %2352 = vset.pattern.permute.xlu0 0
        %2353 = vperm.xlu0 %2352, %v2342
        %v2354 = vpop.permute.xlu0 %2353
        %vm2355 = vcmp.eq.s32.totalorder %v2345, 1
        %vm2356 = vcmp.eq.s32.totalorder %v2348, 1
        %vm2357 = vcmp.eq.s32.totalorder %v2351, 1
        %vm2358 = vcmp.eq.s32.totalorder %v2354, 1
        %vm2391 = vcmask 1041409
        %v2392 = vsel %vm2391, %v1648, %v1639
        %vm2393 = vcmask 1042434
        %v2394 = vsel %vm2393, %v1657, %v2392
        %vm2395 = vcmask 1043459
        %v2396 = vsel %vm2395, %v1666, %v2394
        %vm2397 = vcmask 1044484
        %v2398 = vsel %vm2397, %v1675, %v2396
        %vm2399 = vcmask 1045509
        %v2400 = vsel %vm2399, %v1684, %v2398
        %vm2401 = vcmask 1046534
        %v2402 = vsel %vm2401, %v1693, %v2400
        %vm2403 = vcmask 1047559
        %v2404 = vsel %vm2403, %v1702, %v2402
        %v2405 = vsel %vm2391, %v1720, %v1711
        %v2406 = vsel %vm2393, %v1729, %v2405
        %v2407 = vsel %vm2395, %v1738, %v2406
        %v2408 = vsel %vm2397, %v1747, %v2407
        %v2409 = vsel %vm2399, %v1756, %v2408
        %v2410 = vsel %vm2401, %v1765, %v2409
        %v2411 = vsel %vm2403, %v1774, %v2410
        %v2412 = vsel %vm2391, %v1792, %v1783
        %v2413 = vsel %vm2393, %v1801, %v2412
        %v2414 = vsel %vm2395, %v1810, %v2413
        %v2415 = vsel %vm2397, %v1819, %v2414
        %v2416 = vsel %vm2399, %v1828, %v2415
        %v2417 = vsel %vm2401, %v1837, %v2416
        %v2418 = vsel %vm2403, %v1846, %v2417
        %v2419 = vsel %vm2391, %v1864, %v1855
        %v2420 = vsel %vm2393, %v1873, %v2419
        %v2421 = vsel %vm2395, %v1882, %v2420
        %v2422 = vsel %vm2397, %v1891, %v2421
        %v2423 = vsel %vm2399, %v1900, %v2422
        %v2424 = vsel %vm2401, %v1909, %v2423
        %v2425 = vsel %vm2403, %v1918, %v2424
        %v2430 = vsel %vm2355, %v2404, 0.0
        %v2431 = vsel %vm2356, %v2411, 0.0
        %v2432 = vsel %vm2357, %v2418, 0.0
        %v2433 = vsel %vm2358, %v2425, 0.0
        %v2466 = vsel %vm2391, %v2064, %v2055
        %v2467 = vsel %vm2393, %v2073, %v2466
        %v2468 = vsel %vm2395, %v2082, %v2467
        %v2469 = vsel %vm2397, %v2091, %v2468
        %v2470 = vsel %vm2399, %v2100, %v2469
        %v2471 = vsel %vm2401, %v2109, %v2470
        %v2472 = vsel %vm2403, %v2118, %v2471
        %v2473 = vsel %vm2391, %v2136, %v2127
        %v2474 = vsel %vm2393, %v2145, %v2473
        %v2475 = vsel %vm2395, %v2154, %v2474
        %v2476 = vsel %vm2397, %v2163, %v2475
        %v2477 = vsel %vm2399, %v2172, %v2476
        %v2478 = vsel %vm2401, %v2181, %v2477
        %v2479 = vsel %vm2403, %v2190, %v2478
        %v2480 = vsel %vm2391, %v2208, %v2199
        %v2481 = vsel %vm2393, %v2217, %v2480
        %v2482 = vsel %vm2395, %v2226, %v2481
        %v2483 = vsel %vm2397, %v2235, %v2482
        %v2484 = vsel %vm2399, %v2244, %v2483
        %v2485 = vsel %vm2401, %v2253, %v2484
        %v2486 = vsel %vm2403, %v2262, %v2485
        %v2487 = vsel %vm2391, %v2280, %v2271
        %v2488 = vsel %vm2393, %v2289, %v2487
        %v2489 = vsel %vm2395, %v2298, %v2488
        %v2490 = vsel %vm2397, %v2307, %v2489
        %v2491 = vsel %vm2399, %v2316, %v2490
        %v2492 = vsel %vm2401, %v2325, %v2491
        %v2493 = vsel %vm2403, %v2334, %v2492
        %v2498 = vsel %vm2355, %v2472, 0.0
        %v2499 = vsel %vm2356, %v2479, 0.0
        %v2500 = vsel %vm2357, %v2486, 0.0
        %v2501 = vsel %vm2358, %v2493, 0.0
        %2503 = vset.pattern.permute.xlu0 0
        %2504 = vperm.xlu0 %2503, %v676
        %v2505 = vpop.permute.xlu0 %2504
        %2508 = vset.pattern.permute.xlu0 0
        %2509 = vperm.xlu0 %2508, %v677
        %v2510 = vpop.permute.xlu0 %2509
        %2513 = vset.pattern.permute.xlu0 0
        %2514 = vperm.xlu0 %2513, %v678
        %v2515 = vpop.permute.xlu0 %2514
        %2518 = vset.pattern.permute.xlu0 0
        %2519 = vperm.xlu0 %2518, %v679
        %v2520 = vpop.permute.xlu0 %2519
        %v2522 = vmul.f32 %v768, %v2505
        %v2523 = vmul.f32 %v773, %v2510
        %v2524 = vmul.f32 %v778, %v2515
        %v2525 = vmul.f32 %v783, %v2520
        %v2526 = vmul.f32 %v857, %v2505
        %v2527 = vmul.f32 %v862, %v2510
        %v2528 = vmul.f32 %v867, %v2515
        %v2529 = vmul.f32 %v872, %v2520
        %v2530 = vmul.f32 %v2522, %v2522
        %v2531 = vmul.f32 %v2523, %v2523
        %v2532 = vmul.f32 %v2524, %v2524
        %v2533 = vmul.f32 %v2525, %v2525
        %v2534 = vsub.f32 %v2526, %v2530
        %v2535 = vsub.f32 %v2527, %v2531
        %v2536 = vsub.f32 %v2528, %v2532
        %v2537 = vsub.f32 %v2529, %v2533
        %v2538 = vmax.f32 %v2534, 0.0
        %v2539 = vmax.f32 %v2535, 0.0
        %v2540 = vmax.f32 %v2536, 0.0
        %v2541 = vmax.f32 %v2537, 0.0
        %v2542 = vadd.f32 %v2538, 1e-05
        %v2543 = vadd.f32 %v2539, 1e-05
        %v2544 = vadd.f32 %v2540, 1e-05
        %v2545 = vadd.f32 %v2541, 1e-05
        %v2546 = vrsqrt.pop %v2542
        %v2547 = vmul.f32 %v2542, %v2546
        %vm2548 = vcmp.eq.f32.partialorder %v2542, inf
        %v2549 = vsel %vm2548, %v2542, %v2547
        %vm2550 = vcmp.eq.f32.partialorder %v2542, 0.0
        %v2551 = vand.u32 %v2542, 2147483648
        %v2552 = vsel %vm2550, %v2551, %v2549
        %v2553 = vrsqrt.pop %v2543
        %v2554 = vmul.f32 %v2543, %v2553
        %vm2555 = vcmp.eq.f32.partialorder %v2543, inf
        %v2556 = vsel %vm2555, %v2543, %v2554
        %vm2557 = vcmp.eq.f32.partialorder %v2543, 0.0
        %v2558 = vand.u32 %v2543, 2147483648
        %v2559 = vsel %vm2557, %v2558, %v2556
        %v2560 = vrsqrt.pop %v2544
        %v2561 = vmul.f32 %v2544, %v2560
        %vm2562 = vcmp.eq.f32.partialorder %v2544, inf
        %v2563 = vsel %vm2562, %v2544, %v2561
        %vm2564 = vcmp.eq.f32.partialorder %v2544, 0.0
        %v2565 = vand.u32 %v2544, 2147483648
        %v2566 = vsel %vm2564, %v2565, %v2563
        %v2567 = vrsqrt.pop %v2545
        %v2568 = vmul.f32 %v2545, %v2567
        %vm2569 = vcmp.eq.f32.partialorder %v2545, inf
        %v2570 = vsel %vm2569, %v2545, %v2568
        %vm2571 = vcmp.eq.f32.partialorder %v2545, 0.0
        %v2572 = vand.u32 %v2545, 2147483648
        %v2573 = vsel %vm2571, %v2572, %v2570
        %2575 = vset.pattern.permute.xlu0 0
        %2576 = vperm.xlu0 %2575, %v680
        %v2577 = vpop.permute.xlu0 %2576
        %2580 = vset.pattern.permute.xlu0 0
        %2581 = vperm.xlu0 %2580, %v681
        %v2582 = vpop.permute.xlu0 %2581
        %2585 = vset.pattern.permute.xlu0 0
        %2586 = vperm.xlu0 %2585, %v682
        %v2587 = vpop.permute.xlu0 %2586
        %2590 = vset.pattern.permute.xlu0 0
        %2591 = vperm.xlu0 %2590, %v683
        %v2592 = vpop.permute.xlu0 %2591
        %v2594 = vmul.f32 %v2522, %v2577
        %v2595 = vmul.f32 %v2523, %v2582
        %v2596 = vmul.f32 %v2524, %v2587
        %v2597 = vmul.f32 %v2525, %v2592
        %v2598 = vmul.f32 %v2430, %v2577
        %v2599 = vmul.f32 %v2431, %v2582
        %v2600 = vmul.f32 %v2432, %v2587
        %v2601 = vmul.f32 %v2433, %v2592
        %v2602 = vmul.f32 %v2498, %v2577
        %v2603 = vmul.f32 %v2499, %v2582
        %v2604 = vmul.f32 %v2500, %v2587
        %v2605 = vmul.f32 %v2501, %v2592
        %v2606 = vmul.f32 %v2552, %v2577
        %v2607 = vmul.f32 %v2559, %v2582
        %v2608 = vmul.f32 %v2566, %v2587
        %v2609 = vmul.f32 %v2573, %v2592
        %2611 = vset.pattern.permute.xlu0 0
        %2612 = vperm.xlu0 %2611, %v684
        %v2613 = vpop.permute.xlu0 %2612
        %2616 = vset.pattern.permute.xlu0 0
        %2617 = vperm.xlu0 %2616, %v685
        %v2618 = vpop.permute.xlu0 %2617
        %2621 = vset.pattern.permute.xlu0 0
        %2622 = vperm.xlu0 %2621, %v686
        %v2623 = vpop.permute.xlu0 %2622
        %2626 = vset.pattern.permute.xlu0 0
        %2627 = vperm.xlu0 %2626, %v687
        %v2628 = vpop.permute.xlu0 %2627
        %v2630 = vmul.f32 %v2522, %v2613
        %v2631 = vmul.f32 %v2523, %v2618
        %v2632 = vmul.f32 %v2524, %v2623
        %v2633 = vmul.f32 %v2525, %v2628
        %v2634 = vmul.f32 %v2430, %v2613
        %v2635 = vmul.f32 %v2431, %v2618
        %v2636 = vmul.f32 %v2432, %v2623
        %v2637 = vmul.f32 %v2433, %v2628
        %v2638 = vmul.f32 %v2498, %v2613
        %v2639 = vmul.f32 %v2499, %v2618
        %v2640 = vmul.f32 %v2500, %v2623
        %v2641 = vmul.f32 %v2501, %v2628
        %v2642 = vmul.f32 %v2552, %v2613
        %v2643 = vmul.f32 %v2559, %v2618
        %v2644 = vmul.f32 %v2566, %v2623
        %v2645 = vmul.f32 %v2573, %v2628
        %v2646 = vld [vmem:[%s570] sm:$0xff]
        %v2647 = vld [vmem:[%s570 + $0x8] sm:$0xff]
        %v2648 = vld [vmem:[%s570 + $0x10] sm:$0xff]
        %v2649 = vld [vmem:[%s570 + $0x18] sm:$0xff]
        %v2650 = vld [vmem:[%s570 + $0x20] sm:$0xff]
        %v2651 = vld [vmem:[%s570 + $0x28] sm:$0xff]
        %v2652 = vld [vmem:[%s570 + $0x30] sm:$0xff]
        %v2653 = vld [vmem:[%s570 + $0x38] sm:$0xff]
        %v2654 = vld [vmem:[%s570 + $0x40] sm:$0xff]
        %v2655 = vld [vmem:[%s570 + $0x48] sm:$0xff]
        %v2656 = vld [vmem:[%s570 + $0x50] sm:$0xff]
        %v2657 = vld [vmem:[%s570 + $0x58] sm:$0xff]
        %v2658 = vld [vmem:[%s570 + $0x60] sm:$0xff]
        %v2659 = vld [vmem:[%s570 + $0x68] sm:$0xff]
        %v2660 = vld [vmem:[%s570 + $0x70] sm:$0xff]
        %v2661 = vld [vmem:[%s570 + $0x78] sm:$0xff]
        %v2662 = vld [vmem:[%s570 + $0x80] sm:$0xff]
        %v2663 = vld [vmem:[%s570 + $0x88] sm:$0xff]
        %v2664 = vld [vmem:[%s570 + $0x90] sm:$0xff]
        %v2665 = vld [vmem:[%s570 + $0x98] sm:$0xff]
        %v2666 = vld [vmem:[%s570 + $0xa0] sm:$0xff]
        %v2667 = vld [vmem:[%s570 + $0xa8] sm:$0xff]
        %v2668 = vld [vmem:[%s570 + $0xb0] sm:$0xff]
        %v2669 = vld [vmem:[%s570 + $0xb8] sm:$0xff]
        %v2670 = vld [vmem:[%s570 + $0xc0] sm:$0xff]
        %v2671 = vld [vmem:[%s570 + $0xc8] sm:$0xff]
        %v2672 = vld [vmem:[%s570 + $0xd0] sm:$0xff]
        %v2673 = vld [vmem:[%s570 + $0xd8] sm:$0xff]
        %v2674 = vld [vmem:[%s570 + $0xe0] sm:$0xff]
        %v2675 = vld [vmem:[%s570 + $0xe8] sm:$0xff]
        %v2676 = vld [vmem:[%s570 + $0xf0] sm:$0xff]
        %v2677 = vld [vmem:[%s570 + $0xf8] sm:$0xff]
        %2678 = vmatprep.subr.mxu0 0.0
        %2679 = vmatpush1.msra.mxu0 %v2662
        %2680 = vmatprep.subr.mxu0 0.0
        %2681 = vmatpush1.msra.mxu0 %v2663
        %2682 = vmatprep.subr.mxu0 0.0
        %2683 = vmatpush1.msra.mxu0 %v2664
        %2684 = vmatprep.subr.mxu0 0.0
        %2685 = vmatpush1.msra.mxu0 %v2665
        %2686 = vmatprep.subr.mxu0 0.0
        %2687 = vmatpush1.msra.mxu0 %v2666
        %2688 = vmatprep.subr.mxu0 0.0
        %2689 = vmatpush1.msra.mxu0 %v2667
        %2690 = vmatprep.subr.mxu0 0.0
        %2691 = vmatpush1.msra.mxu0 %v2668
        %2692 = vmatprep.subr.mxu0 0.0
        %2693 = vmatpush1.msra.mxu0 %v2669
        %2694 = vmatprep.subr.mxu0 0.0
        %2695 = vmatpush1.msra.mxu0 %v2670
        %2696 = vmatprep.subr.mxu0 0.0
        %2697 = vmatpush1.msra.mxu0 %v2671
        %2698 = vmatprep.subr.mxu0 0.0
        %2699 = vmatpush1.msra.mxu0 %v2672
        %2700 = vmatprep.subr.mxu0 0.0
        %2701 = vmatpush1.msra.mxu0 %v2673
        %2702 = vmatprep.subr.mxu0 0.0
        %2703 = vmatpush1.msra.mxu0 %v2674
        %2704 = vmatprep.subr.mxu0 0.0
        %2705 = vmatpush1.msra.mxu0 %v2675
        %2706 = vmatprep.subr.mxu0 0.0
        %2707 = vmatpush1.msra.mxu0 %v2676
        %2708 = vmatprep.subr.mxu0 0.0
        %2709 = vmatpush1.msra.mxu0 %v2677
        %2710 = vmatprep.subr.mxu0 0.0
        %2711 = vmatpush1.msra.mxu0 0.0
        %2712 = vmatprep.subr.mxu0 0.0
        %2713 = vmatpush1.msra.mxu0 0.0
        %2714 = vmatprep.subr.mxu0 0.0
        %2715 = vmatpush1.msra.mxu0 0.0
        %2716 = vmatprep.subr.mxu0 0.0
        %2717 = vmatpush1.msra.mxu0 0.0
        %2718 = vmatprep.subr.mxu0 0.0
        %2719 = vmatpush1.msra.mxu0 0.0
        %2720 = vmatprep.subr.mxu0 0.0
        %2721 = vmatpush1.msra.mxu0 0.0
        %2722 = vmatprep.subr.mxu0 0.0
        %2723 = vmatpush1.msra.mxu0 0.0
        %2724 = vmatprep.subr.mxu0 0.0
        %2725 = vmatpush1.msra.mxu0 0.0
        %2726 = vmatprep.subr.mxu0 0.0
        %2727 = vmatpush1.msra.mxu0 0.0
        %2728 = vmatprep.subr.mxu0 0.0
        %2729 = vmatpush1.msra.mxu0 0.0
        %2730 = vmatprep.subr.mxu0 0.0
        %2731 = vmatpush1.msra.mxu0 0.0
        %2732 = vmatprep.subr.mxu0 0.0
        %2733 = vmatpush1.msra.mxu0 0.0
        %2734 = vmatprep.subr.mxu0 0.0
        %2735 = vmatpush1.msra.mxu0 0.0
        %2736 = vmatprep.subr.mxu0 0.0
        %2737 = vmatpush1.msra.mxu0 0.0
        %2738 = vmatprep.subr.mxu0 0.0
        %2739 = vmatpush1.msra.mxu0 0.0
        %2740 = vmatprep.subr.mxu0 0.0
        %2741 = vmatpush1.msra.mxu0 0.0
        %2742 = vmatprep.mubr.f32.mxu0 0.0
        %2743 = vmatmul.mubr.f32.gmra.mrb[0].mxu0 %v2430
        %v2744 = vpop.f32.mrb[0].mxu0
        %v2745 = vadd.f32 0.0, %v2744
        %v2746 = vpop.f32.mrb[0].mxu0
        %2747 = vmatprep.mubr.f32.mxu0 0.0
        %2748 = vmatmul.mubr.f32.gmra.mrb[0].mxu0 %v2431
        %v2749 = vpop.f32.mrb[0].mxu0
        %v2750 = vadd.f32 0.0, %v2749
        %v2751 = vpop.f32.mrb[0].mxu0
        %2752 = vmatprep.mubr.f32.mxu0 0.0
        %2753 = vmatmul.mubr.f32.gmra.mrb[0].mxu0 %v2432
        %v2754 = vpop.f32.mrb[0].mxu0
        %v2755 = vadd.f32 0.0, %v2754
        %v2756 = vpop.f32.mrb[0].mxu0
        %2757 = vmatprep.mubr.f32.mxu0 0.0
        %2758 = vmatmul.mubr.f32.gmra.mrb[0].mxu0 %v2433
        %v2759 = vpop.f32.mrb[0].mxu0
        %v2760 = vadd.f32 0.0, %v2759
        %v2761 = vpop.f32.mrb[0].mxu0
        %2762 = vdwg.mxu0
        %2763 = vmatprep.subr.mxu0 0.0
        %2764 = vmatpush1.msra.mxu0 %v2646
        %2765 = vmatprep.subr.mxu0 0.0
        %2766 = vmatpush1.msra.mxu0 %v2647
        %2767 = vmatprep.subr.mxu0 0.0
        %2768 = vmatpush1.msra.mxu0 %v2648
        %2769 = vmatprep.subr.mxu0 0.0
        %2770 = vmatpush1.msra.mxu0 %v2649
        %2771 = vmatprep.subr.mxu0 0.0
        %2772 = vmatpush1.msra.mxu0 %v2650
        %2773 = vmatprep.subr.mxu0 0.0
        %2774 = vmatpush1.msra.mxu0 %v2651
        %2775 = vmatprep.subr.mxu0 0.0
        %2776 = vmatpush1.msra.mxu0 %v2652
        %2777 = vmatprep.subr.mxu0 0.0
        %2778 = vmatpush1.msra.mxu0 %v2653
        %2779 = vmatprep.subr.mxu0 0.0
        %2780 = vmatpush1.msra.mxu0 %v2654
        %2781 = vmatprep.subr.mxu0 0.0
        %2782 = vmatpush1.msra.mxu0 %v2655
        %2783 = vmatprep.subr.mxu0 0.0
        %2784 = vmatpush1.msra.mxu0 %v2656
        %2785 = vmatprep.subr.mxu0 0.0
        %2786 = vmatpush1.msra.mxu0 %v2657
        %2787 = vmatprep.subr.mxu0 0.0
        %2788 = vmatpush1.msra.mxu0 %v2658
        %2789 = vmatprep.subr.mxu0 0.0
        %2790 = vmatpush1.msra.mxu0 %v2659
        %2791 = vmatprep.subr.mxu0 0.0
        %2792 = vmatpush1.msra.mxu0 %v2660
        %2793 = vmatprep.subr.mxu0 0.0
        %2794 = vmatpush1.msra.mxu0 %v2661
        %2795 = vmatprep.subr.mxu0 0.0
        %2796 = vmatpush1.msra.mxu0 0.0
        %2797 = vmatprep.subr.mxu0 0.0
        %2798 = vmatpush1.msra.mxu0 0.0
        %2799 = vmatprep.subr.mxu0 0.0
        %2800 = vmatpush1.msra.mxu0 0.0
        %2801 = vmatprep.subr.mxu0 0.0
        %2802 = vmatpush1.msra.mxu0 0.0
        %2803 = vmatprep.subr.mxu0 0.0
        %2804 = vmatpush1.msra.mxu0 0.0
        %2805 = vmatprep.subr.mxu0 0.0
        %2806 = vmatpush1.msra.mxu0 0.0
        %2807 = vmatprep.subr.mxu0 0.0
        %2808 = vmatpush1.msra.mxu0 0.0
        %2809 = vmatprep.subr.mxu0 0.0
        %2810 = vmatpush1.msra.mxu0 0.0
        %2811 = vmatprep.subr.mxu0 0.0
        %2812 = vmatpush1.msra.mxu0 0.0
        %2813 = vmatprep.subr.mxu0 0.0
        %2814 = vmatpush1.msra.mxu0 0.0
        %2815 = vmatprep.subr.mxu0 0.0
        %2816 = vmatpush1.msra.mxu0 0.0
        %2817 = vmatprep.subr.mxu0 0.0
        %2818 = vmatpush1.msra.mxu0 0.0
        %2819 = vmatprep.subr.mxu0 0.0
        %2820 = vmatpush1.msra.mxu0 0.0
        %2821 = vmatprep.subr.mxu0 0.0
        %2822 = vmatpush1.msra.mxu0 0.0
        %2823 = vmatprep.subr.mxu0 0.0
        %2824 = vmatpush1.msra.mxu0 0.0
        %2825 = vmatprep.subr.mxu0 0.0
        %2826 = vmatpush1.msra.mxu0 0.0
        %2827 = vmatprep.mubr.f32.mxu0 0.0
        %2828 = vmatmul.mubr.f32.gmra.mrb[0].mxu0 %v2522
        %v2829 = vpop.f32.mrb[0].mxu0
        %v2830 = vadd.f32 %v2745, %v2829
        %v2831 = vpop.f32.mrb[0].mxu0
        %2832 = vmatprep.mubr.f32.mxu0 0.0
        %2833 = vmatmul.mubr.f32.gmra.mrb[0].mxu0 %v2523
        %v2834 = vpop.f32.mrb[0].mxu0
        %v2835 = vadd.f32 %v2750, %v2834
        %v2836 = vpop.f32.mrb[0].mxu0
        %2837 = vmatprep.mubr.f32.mxu0 0.0
        %2838 = vmatmul.mubr.f32.gmra.mrb[0].mxu0 %v2524
        %v2839 = vpop.f32.mrb[0].mxu0
        %v2840 = vadd.f32 %v2755, %v2839
        %v2841 = vpop.f32.mrb[0].mxu0
        %2842 = vmatprep.mubr.f32.mxu0 0.0
        %2843 = vmatmul.mubr.f32.gmra.mrb[0].mxu0 %v2525
        %v2844 = vpop.f32.mrb[0].mxu0
        %v2845 = vadd.f32 %v2760, %v2844
        %v2846 = vpop.f32.mrb[0].mxu0
        %2847 = vdwg.mxu0
        %v2848 = vld [vmem:[%s570 + $0x100] sm:$0xff]
        %v2849 = vld [vmem:[%s570 + $0x108] sm:$0xff]
        %v2850 = vld [vmem:[%s570 + $0x110] sm:$0xff]
        %v2851 = vld [vmem:[%s570 + $0x118] sm:$0xff]
        %v2852 = vld [vmem:[%s570 + $0x120] sm:$0xff]
        %v2853 = vld [vmem:[%s570 + $0x128] sm:$0xff]
        %v2854 = vld [vmem:[%s570 + $0x130] sm:$0xff]
        %v2855 = vld [vmem:[%s570 + $0x138] sm:$0xff]
        %v2856 = vld [vmem:[%s570 + $0x140] sm:$0xff]
        %v2857 = vld [vmem:[%s570 + $0x148] sm:$0xff]
        %v2858 = vld [vmem:[%s570 + $0x150] sm:$0xff]
        %v2859 = vld [vmem:[%s570 + $0x158] sm:$0xff]
        %v2860 = vld [vmem:[%s570 + $0x160] sm:$0xff]
        %v2861 = vld [vmem:[%s570 + $0x168] sm:$0xff]
        %v2862 = vld [vmem:[%s570 + $0x170] sm:$0xff]
        %v2863 = vld [vmem:[%s570 + $0x178] sm:$0xff]
        %2864 = vmatprep.subr.mxu0 0.0
        %2865 = vmatpush1.msra.mxu0 %v2848
        %2866 = vmatprep.subr.mxu0 0.0
        %2867 = vmatpush1.msra.mxu0 %v2849
        %2868 = vmatprep.subr.mxu0 0.0
        %2869 = vmatpush1.msra.mxu0 %v2850
        %2870 = vmatprep.subr.mxu0 0.0
        %2871 = vmatpush1.msra.mxu0 %v2851
        %2872 = vmatprep.subr.mxu0 0.0
        %2873 = vmatpush1.msra.mxu0 %v2852
        %2874 = vmatprep.subr.mxu0 0.0
        %2875 = vmatpush1.msra.mxu0 %v2853
        %2876 = vmatprep.subr.mxu0 0.0
        %2877 = vmatpush1.msra.mxu0 %v2854
        %2878 = vmatprep.subr.mxu0 0.0
        %2879 = vmatpush1.msra.mxu0 %v2855
        %2880 = vmatprep.subr.mxu0 0.0
        %2881 = vmatpush1.msra.mxu0 %v2856
        %2882 = vmatprep.subr.mxu0 0.0
        %2883 = vmatpush1.msra.mxu0 %v2857
        %2884 = vmatprep.subr.mxu0 0.0
        %2885 = vmatpush1.msra.mxu0 %v2858
        %2886 = vmatprep.subr.mxu0 0.0
        %2887 = vmatpush1.msra.mxu0 %v2859
        %2888 = vmatprep.subr.mxu0 0.0
        %2889 = vmatpush1.msra.mxu0 %v2860
        %2890 = vmatprep.subr.mxu0 0.0
        %2891 = vmatpush1.msra.mxu0 %v2861
        %2892 = vmatprep.subr.mxu0 0.0
        %2893 = vmatpush1.msra.mxu0 %v2862
        %2894 = vmatprep.subr.mxu0 0.0
        %2895 = vmatpush1.msra.mxu0 %v2863
        %2896 = vmatprep.subr.mxu0 0.0
        %2897 = vmatpush1.msra.mxu0 0.0
        %2898 = vmatprep.subr.mxu0 0.0
        %2899 = vmatpush1.msra.mxu0 0.0
        %2900 = vmatprep.subr.mxu0 0.0
        %2901 = vmatpush1.msra.mxu0 0.0
        %2902 = vmatprep.subr.mxu0 0.0
        %2903 = vmatpush1.msra.mxu0 0.0
        %2904 = vmatprep.subr.mxu0 0.0
        %2905 = vmatpush1.msra.mxu0 0.0
        %2906 = vmatprep.subr.mxu0 0.0
        %2907 = vmatpush1.msra.mxu0 0.0
        %2908 = vmatprep.subr.mxu0 0.0
        %2909 = vmatpush1.msra.mxu0 0.0
        %2910 = vmatprep.subr.mxu0 0.0
        %2911 = vmatpush1.msra.mxu0 0.0
        %2912 = vmatprep.subr.mxu0 0.0
        %2913 = vmatpush1.msra.mxu0 0.0
        %2914 = vmatprep.subr.mxu0 0.0
        %2915 = vmatpush1.msra.mxu0 0.0
        %2916 = vmatprep.subr.mxu0 0.0
        %2917 = vmatpush1.msra.mxu0 0.0
        %2918 = vmatprep.subr.mxu0 0.0
        %2919 = vmatpush1.msra.mxu0 0.0
        %2920 = vmatprep.subr.mxu0 0.0
        %2921 = vmatpush1.msra.mxu0 0.0
        %2922 = vmatprep.subr.mxu0 0.0
        %2923 = vmatpush1.msra.mxu0 0.0
        %2924 = vmatprep.subr.mxu0 0.0
        %2925 = vmatpush1.msra.mxu0 0.0
        %2926 = vmatprep.subr.mxu0 0.0
        %2927 = vmatpush1.msra.mxu0 0.0
        %2928 = vmatprep.mubr.f32.mxu0 0.0
        %2929 = vmatmul.mubr.f32.gmra.mrb[0].mxu0 %v2498
        %v2930 = vpop.f32.mrb[0].mxu0
        %v2931 = vadd.f32 0.0, %v2930
        %v2932 = vpop.f32.mrb[0].mxu0
        %2933 = vmatprep.mubr.f32.mxu0 0.0
        %2934 = vmatmul.mubr.f32.gmra.mrb[0].mxu0 %v2499
        %v2935 = vpop.f32.mrb[0].mxu0
        %v2936 = vadd.f32 0.0, %v2935
        %v2937 = vpop.f32.mrb[0].mxu0
        %2938 = vmatprep.mubr.f32.mxu0 0.0
        %2939 = vmatmul.mubr.f32.gmra.mrb[0].mxu0 %v2500
        %v2940 = vpop.f32.mrb[0].mxu0
        %v2941 = vadd.f32 0.0, %v2940
        %v2942 = vpop.f32.mrb[0].mxu0
        %2943 = vmatprep.mubr.f32.mxu0 0.0
        %2944 = vmatmul.mubr.f32.gmra.mrb[0].mxu0 %v2501
        %v2945 = vpop.f32.mrb[0].mxu0
        %v2946 = vadd.f32 0.0, %v2945
        %v2947 = vpop.f32.mrb[0].mxu0
        %2948 = vdwg.mxu0
        %v2949 = vadd.f32 %v2830, %v2931
        %v2950 = vadd.f32 %v2835, %v2936
        %v2951 = vadd.f32 %v2840, %v2941
        %v2952 = vadd.f32 %v2845, %v2946
        %v2953 = vld [vmem:[%s570 + $0x180] sm:$0xff]
        %v2954 = vld [vmem:[%s570 + $0x188] sm:$0xff]
        %v2955 = vld [vmem:[%s570 + $0x190] sm:$0xff]
        %v2956 = vld [vmem:[%s570 + $0x198] sm:$0xff]
        %v2957 = vld [vmem:[%s570 + $0x1a0] sm:$0xff]
        %v2958 = vld [vmem:[%s570 + $0x1a8] sm:$0xff]
        %v2959 = vld [vmem:[%s570 + $0x1b0] sm:$0xff]
        %v2960 = vld [vmem:[%s570 + $0x1b8] sm:$0xff]
        %v2961 = vld [vmem:[%s570 + $0x1c0] sm:$0xff]
        %v2962 = vld [vmem:[%s570 + $0x1c8] sm:$0xff]
        %v2963 = vld [vmem:[%s570 + $0x1d0] sm:$0xff]
        %v2964 = vld [vmem:[%s570 + $0x1d8] sm:$0xff]
        %v2965 = vld [vmem:[%s570 + $0x1e0] sm:$0xff]
        %v2966 = vld [vmem:[%s570 + $0x1e8] sm:$0xff]
        %v2967 = vld [vmem:[%s570 + $0x1f0] sm:$0xff]
        %v2968 = vld [vmem:[%s570 + $0x1f8] sm:$0xff]
        %2969 = vmatprep.subr.mxu0 0.0
        %2970 = vmatpush1.msra.mxu0 %v2953
        %2971 = vmatprep.subr.mxu0 0.0
        %2972 = vmatpush1.msra.mxu0 %v2954
        %2973 = vmatprep.subr.mxu0 0.0
        %2974 = vmatpush1.msra.mxu0 %v2955
        %2975 = vmatprep.subr.mxu0 0.0
        %2976 = vmatpush1.msra.mxu0 %v2956
        %2977 = vmatprep.subr.mxu0 0.0
        %2978 = vmatpush1.msra.mxu0 %v2957
        %2979 = vmatprep.subr.mxu0 0.0
        %2980 = vmatpush1.msra.mxu0 %v2958
        %2981 = vmatprep.subr.mxu0 0.0
        %2982 = vmatpush1.msra.mxu0 %v2959
        %2983 = vmatprep.subr.mxu0 0.0
        %2984 = vmatpush1.msra.mxu0 %v2960
        %2985 = vmatprep.subr.mxu0 0.0
        %2986 = vmatpush1.msra.mxu0 %v2961
        %2987 = vmatprep.subr.mxu0 0.0
        %2988 = vmatpush1.msra.mxu0 %v2962
        %2989 = vmatprep.subr.mxu0 0.0
        %2990 = vmatpush1.msra.mxu0 %v2963
        %2991 = vmatprep.subr.mxu0 0.0
        %2992 = vmatpush1.msra.mxu0 %v2964
        %2993 = vmatprep.subr.mxu0 0.0
        %2994 = vmatpush1.msra.mxu0 %v2965
        %2995 = vmatprep.subr.mxu0 0.0
        %2996 = vmatpush1.msra.mxu0 %v2966
        %2997 = vmatprep.subr.mxu0 0.0
        %2998 = vmatpush1.msra.mxu0 %v2967
        %2999 = vmatprep.subr.mxu0 0.0
        %3000 = vmatpush1.msra.mxu0 %v2968
        %3001 = vmatprep.subr.mxu0 0.0
        %3002 = vmatpush1.msra.mxu0 0.0
        %3003 = vmatprep.subr.mxu0 0.0
        %3004 = vmatpush1.msra.mxu0 0.0
        %3005 = vmatprep.subr.mxu0 0.0
        %3006 = vmatpush1.msra.mxu0 0.0
        %3007 = vmatprep.subr.mxu0 0.0
        %3008 = vmatpush1.msra.mxu0 0.0
        %3009 = vmatprep.subr.mxu0 0.0
        %3010 = vmatpush1.msra.mxu0 0.0
        %3011 = vmatprep.subr.mxu0 0.0
        %3012 = vmatpush1.msra.mxu0 0.0
        %3013 = vmatprep.subr.mxu0 0.0
        %3014 = vmatpush1.msra.mxu0 0.0
        %3015 = vmatprep.subr.mxu0 0.0
        %3016 = vmatpush1.msra.mxu0 0.0
        %3017 = vmatprep.subr.mxu0 0.0
        %3018 = vmatpush1.msra.mxu0 0.0
        %3019 = vmatprep.subr.mxu0 0.0
        %3020 = vmatpush1.msra.mxu0 0.0
        %3021 = vmatprep.subr.mxu0 0.0
        %3022 = vmatpush1.msra.mxu0 0.0
        %3023 = vmatprep.subr.mxu0 0.0
        %3024 = vmatpush1.msra.mxu0 0.0
        %3025 = vmatprep.subr.mxu0 0.0
        %3026 = vmatpush1.msra.mxu0 0.0
        %3027 = vmatprep.subr.mxu0 0.0
        %3028 = vmatpush1.msra.mxu0 0.0
        %3029 = vmatprep.subr.mxu0 0.0
        %3030 = vmatpush1.msra.mxu0 0.0
        %3031 = vmatprep.subr.mxu0 0.0
        %3032 = vmatpush1.msra.mxu0 0.0
        %3033 = vmatprep.mubr.f32.mxu0 0.0
        %3034 = vmatmul.mubr.f32.gmra.mrb[0].mxu0 %v2552
        %v3035 = vpop.f32.mrb[0].mxu0
        %v3036 = vadd.f32 0.0, %v3035
        %v3037 = vpop.f32.mrb[0].mxu0
        %3038 = vmatprep.mubr.f32.mxu0 0.0
        %3039 = vmatmul.mubr.f32.gmra.mrb[0].mxu0 %v2559
        %v3040 = vpop.f32.mrb[0].mxu0
        %v3041 = vadd.f32 0.0, %v3040
        %v3042 = vpop.f32.mrb[0].mxu0
        %3043 = vmatprep.mubr.f32.mxu0 0.0
        %3044 = vmatmul.mubr.f32.gmra.mrb[0].mxu0 %v2566
        %v3045 = vpop.f32.mrb[0].mxu0
        %v3046 = vadd.f32 0.0, %v3045
        %v3047 = vpop.f32.mrb[0].mxu0
        %3048 = vmatprep.mubr.f32.mxu0 0.0
        %3049 = vmatmul.mubr.f32.gmra.mrb[0].mxu0 %v2573
        %v3050 = vpop.f32.mrb[0].mxu0
        %v3051 = vadd.f32 0.0, %v3050
        %v3052 = vpop.f32.mrb[0].mxu0
        %3053 = vdwg.mxu0
        %v3054 = vadd.f32 %v2949, %v3036
        %v3055 = vadd.f32 %v2950, %v3041
        %v3056 = vadd.f32 %v2951, %v3046
        %v3057 = vadd.f32 %v2952, %v3051
        %v3058 = vld [vmem:[%s570 + $0x200] sm:$0xff]
        %v3059 = vld [vmem:[%s570 + $0x208] sm:$0xff]
        %v3060 = vld [vmem:[%s570 + $0x210] sm:$0xff]
        %v3061 = vld [vmem:[%s570 + $0x218] sm:$0xff]
        %v3062 = vld [vmem:[%s570 + $0x220] sm:$0xff]
        %v3063 = vld [vmem:[%s570 + $0x228] sm:$0xff]
        %v3064 = vld [vmem:[%s570 + $0x230] sm:$0xff]
        %v3065 = vld [vmem:[%s570 + $0x238] sm:$0xff]
        %v3066 = vld [vmem:[%s570 + $0x240] sm:$0xff]
        %v3067 = vld [vmem:[%s570 + $0x248] sm:$0xff]
        %v3068 = vld [vmem:[%s570 + $0x250] sm:$0xff]
        %v3069 = vld [vmem:[%s570 + $0x258] sm:$0xff]
        %v3070 = vld [vmem:[%s570 + $0x260] sm:$0xff]
        %v3071 = vld [vmem:[%s570 + $0x268] sm:$0xff]
        %v3072 = vld [vmem:[%s570 + $0x270] sm:$0xff]
        %v3073 = vld [vmem:[%s570 + $0x278] sm:$0xff]
        %3074 = vmatprep.subr.mxu0 0.0
        %3075 = vmatpush1.msra.mxu0 %v3058
        %3076 = vmatprep.subr.mxu0 0.0
        %3077 = vmatpush1.msra.mxu0 %v3059
        %3078 = vmatprep.subr.mxu0 0.0
        %3079 = vmatpush1.msra.mxu0 %v3060
        %3080 = vmatprep.subr.mxu0 0.0
        %3081 = vmatpush1.msra.mxu0 %v3061
        %3082 = vmatprep.subr.mxu0 0.0
        %3083 = vmatpush1.msra.mxu0 %v3062
        %3084 = vmatprep.subr.mxu0 0.0
        %3085 = vmatpush1.msra.mxu0 %v3063
        %3086 = vmatprep.subr.mxu0 0.0
        %3087 = vmatpush1.msra.mxu0 %v3064
        %3088 = vmatprep.subr.mxu0 0.0
        %3089 = vmatpush1.msra.mxu0 %v3065
        %3090 = vmatprep.subr.mxu0 0.0
        %3091 = vmatpush1.msra.mxu0 %v3066
        %3092 = vmatprep.subr.mxu0 0.0
        %3093 = vmatpush1.msra.mxu0 %v3067
        %3094 = vmatprep.subr.mxu0 0.0
        %3095 = vmatpush1.msra.mxu0 %v3068
        %3096 = vmatprep.subr.mxu0 0.0
        %3097 = vmatpush1.msra.mxu0 %v3069
        %3098 = vmatprep.subr.mxu0 0.0
        %3099 = vmatpush1.msra.mxu0 %v3070
        %3100 = vmatprep.subr.mxu0 0.0
        %3101 = vmatpush1.msra.mxu0 %v3071
        %3102 = vmatprep.subr.mxu0 0.0
        %3103 = vmatpush1.msra.mxu0 %v3072
        %3104 = vmatprep.subr.mxu0 0.0
        %3105 = vmatpush1.msra.mxu0 %v3073
        %3106 = vmatprep.subr.mxu0 0.0
        %3107 = vmatpush1.msra.mxu0 0.0
        %3108 = vmatprep.subr.mxu0 0.0
        %3109 = vmatpush1.msra.mxu0 0.0
        %3110 = vmatprep.subr.mxu0 0.0
        %3111 = vmatpush1.msra.mxu0 0.0
        %3112 = vmatprep.subr.mxu0 0.0
        %3113 = vmatpush1.msra.mxu0 0.0
        %3114 = vmatprep.subr.mxu0 0.0
        %3115 = vmatpush1.msra.mxu0 0.0
        %3116 = vmatprep.subr.mxu0 0.0
        %3117 = vmatpush1.msra.mxu0 0.0
        %3118 = vmatprep.subr.mxu0 0.0
        %3119 = vmatpush1.msra.mxu0 0.0
        %3120 = vmatprep.subr.mxu0 0.0
        %3121 = vmatpush1.msra.mxu0 0.0
        %3122 = vmatprep.subr.mxu0 0.0
        %3123 = vmatpush1.msra.mxu0 0.0
        %3124 = vmatprep.subr.mxu0 0.0
        %3125 = vmatpush1.msra.mxu0 0.0
        %3126 = vmatprep.subr.mxu0 0.0
        %3127 = vmatpush1.msra.mxu0 0.0
        %3128 = vmatprep.subr.mxu0 0.0
        %3129 = vmatpush1.msra.mxu0 0.0
        %3130 = vmatprep.subr.mxu0 0.0
        %3131 = vmatpush1.msra.mxu0 0.0
        %3132 = vmatprep.subr.mxu0 0.0
        %3133 = vmatpush1.msra.mxu0 0.0
        %3134 = vmatprep.subr.mxu0 0.0
        %3135 = vmatpush1.msra.mxu0 0.0
        %3136 = vmatprep.subr.mxu0 0.0
        %3137 = vmatpush1.msra.mxu0 0.0
        %3138 = vmatprep.mubr.f32.mxu0 0.0
        %3139 = vmatmul.mubr.f32.gmra.mrb[0].mxu0 %v2594
        %v3140 = vpop.f32.mrb[0].mxu0
        %v3141 = vadd.f32 0.0, %v3140
        %v3142 = vpop.f32.mrb[0].mxu0
        %3143 = vmatprep.mubr.f32.mxu0 0.0
        %3144 = vmatmul.mubr.f32.gmra.mrb[0].mxu0 %v2595
        %v3145 = vpop.f32.mrb[0].mxu0
        %v3146 = vadd.f32 0.0, %v3145
        %v3147 = vpop.f32.mrb[0].mxu0
        %3148 = vmatprep.mubr.f32.mxu0 0.0
        %3149 = vmatmul.mubr.f32.gmra.mrb[0].mxu0 %v2596
        %v3150 = vpop.f32.mrb[0].mxu0
        %v3151 = vadd.f32 0.0, %v3150
        %v3152 = vpop.f32.mrb[0].mxu0
        %3153 = vmatprep.mubr.f32.mxu0 0.0
        %3154 = vmatmul.mubr.f32.gmra.mrb[0].mxu0 %v2597
        %v3155 = vpop.f32.mrb[0].mxu0
        %v3156 = vadd.f32 0.0, %v3155
        %v3157 = vpop.f32.mrb[0].mxu0
        %3158 = vdwg.mxu0
        %v3159 = vadd.f32 %v3054, %v3141
        %v3160 = vadd.f32 %v3055, %v3146
        %v3161 = vadd.f32 %v3056, %v3151
        %v3162 = vadd.f32 %v3057, %v3156
        %v3163 = vld [vmem:[%s570 + $0x280] sm:$0xff]
        %v3164 = vld [vmem:[%s570 + $0x288] sm:$0xff]
        %v3165 = vld [vmem:[%s570 + $0x290] sm:$0xff]
        %v3166 = vld [vmem:[%s570 + $0x298] sm:$0xff]
        %v3167 = vld [vmem:[%s570 + $0x2a0] sm:$0xff]
        %v3168 = vld [vmem:[%s570 + $0x2a8] sm:$0xff]
        %v3169 = vld [vmem:[%s570 + $0x2b0] sm:$0xff]
        %v3170 = vld [vmem:[%s570 + $0x2b8] sm:$0xff]
        %v3171 = vld [vmem:[%s570 + $0x2c0] sm:$0xff]
        %v3172 = vld [vmem:[%s570 + $0x2c8] sm:$0xff]
        %v3173 = vld [vmem:[%s570 + $0x2d0] sm:$0xff]
        %v3174 = vld [vmem:[%s570 + $0x2d8] sm:$0xff]
        %v3175 = vld [vmem:[%s570 + $0x2e0] sm:$0xff]
        %v3176 = vld [vmem:[%s570 + $0x2e8] sm:$0xff]
        %v3177 = vld [vmem:[%s570 + $0x2f0] sm:$0xff]
        %v3178 = vld [vmem:[%s570 + $0x2f8] sm:$0xff]
        %3179 = vmatprep.subr.mxu0 0.0
        %3180 = vmatpush1.msra.mxu0 %v3163
        %3181 = vmatprep.subr.mxu0 0.0
        %3182 = vmatpush1.msra.mxu0 %v3164
        %3183 = vmatprep.subr.mxu0 0.0
        %3184 = vmatpush1.msra.mxu0 %v3165
        %3185 = vmatprep.subr.mxu0 0.0
        %3186 = vmatpush1.msra.mxu0 %v3166
        %3187 = vmatprep.subr.mxu0 0.0
        %3188 = vmatpush1.msra.mxu0 %v3167
        %3189 = vmatprep.subr.mxu0 0.0
        %3190 = vmatpush1.msra.mxu0 %v3168
        %3191 = vmatprep.subr.mxu0 0.0
        %3192 = vmatpush1.msra.mxu0 %v3169
        %3193 = vmatprep.subr.mxu0 0.0
        %3194 = vmatpush1.msra.mxu0 %v3170
        %3195 = vmatprep.subr.mxu0 0.0
        %3196 = vmatpush1.msra.mxu0 %v3171
        %3197 = vmatprep.subr.mxu0 0.0
        %3198 = vmatpush1.msra.mxu0 %v3172
        %3199 = vmatprep.subr.mxu0 0.0
        %3200 = vmatpush1.msra.mxu0 %v3173
        %3201 = vmatprep.subr.mxu0 0.0
        %3202 = vmatpush1.msra.mxu0 %v3174
        %3203 = vmatprep.subr.mxu0 0.0
        %3204 = vmatpush1.msra.mxu0 %v3175
        %3205 = vmatprep.subr.mxu0 0.0
        %3206 = vmatpush1.msra.mxu0 %v3176
        %3207 = vmatprep.subr.mxu0 0.0
        %3208 = vmatpush1.msra.mxu0 %v3177
        %3209 = vmatprep.subr.mxu0 0.0
        %3210 = vmatpush1.msra.mxu0 %v3178
        %3211 = vmatprep.subr.mxu0 0.0
        %3212 = vmatpush1.msra.mxu0 0.0
        %3213 = vmatprep.subr.mxu0 0.0
        %3214 = vmatpush1.msra.mxu0 0.0
        %3215 = vmatprep.subr.mxu0 0.0
        %3216 = vmatpush1.msra.mxu0 0.0
        %3217 = vmatprep.subr.mxu0 0.0
        %3218 = vmatpush1.msra.mxu0 0.0
        %3219 = vmatprep.subr.mxu0 0.0
        %3220 = vmatpush1.msra.mxu0 0.0
        %3221 = vmatprep.subr.mxu0 0.0
        %3222 = vmatpush1.msra.mxu0 0.0
        %3223 = vmatprep.subr.mxu0 0.0
        %3224 = vmatpush1.msra.mxu0 0.0
        %3225 = vmatprep.subr.mxu0 0.0
        %3226 = vmatpush1.msra.mxu0 0.0
        %3227 = vmatprep.subr.mxu0 0.0
        %3228 = vmatpush1.msra.mxu0 0.0
        %3229 = vmatprep.subr.mxu0 0.0
        %3230 = vmatpush1.msra.mxu0 0.0
        %3231 = vmatprep.subr.mxu0 0.0
        %3232 = vmatpush1.msra.mxu0 0.0
        %3233 = vmatprep.subr.mxu0 0.0
        %3234 = vmatpush1.msra.mxu0 0.0
        %3235 = vmatprep.subr.mxu0 0.0
        %3236 = vmatpush1.msra.mxu0 0.0
        %3237 = vmatprep.subr.mxu0 0.0
        %3238 = vmatpush1.msra.mxu0 0.0
        %3239 = vmatprep.subr.mxu0 0.0
        %3240 = vmatpush1.msra.mxu0 0.0
        %3241 = vmatprep.subr.mxu0 0.0
        %3242 = vmatpush1.msra.mxu0 0.0
        %3243 = vmatprep.mubr.f32.mxu0 0.0
        %3244 = vmatmul.mubr.f32.gmra.mrb[0].mxu0 %v2598
        %v3245 = vpop.f32.mrb[0].mxu0
        %v3246 = vadd.f32 0.0, %v3245
        %v3247 = vpop.f32.mrb[0].mxu0
        %3248 = vmatprep.mubr.f32.mxu0 0.0
        %3249 = vmatmul.mubr.f32.gmra.mrb[0].mxu0 %v2599
        %v3250 = vpop.f32.mrb[0].mxu0
        %v3251 = vadd.f32 0.0, %v3250
        %v3252 = vpop.f32.mrb[0].mxu0
        %3253 = vmatprep.mubr.f32.mxu0 0.0
        %3254 = vmatmul.mubr.f32.gmra.mrb[0].mxu0 %v2600
        %v3255 = vpop.f32.mrb[0].mxu0
        %v3256 = vadd.f32 0.0, %v3255
        %v3257 = vpop.f32.mrb[0].mxu0
        %3258 = vmatprep.mubr.f32.mxu0 0.0
        %3259 = vmatmul.mubr.f32.gmra.mrb[0].mxu0 %v2601
        %v3260 = vpop.f32.mrb[0].mxu0
        %v3261 = vadd.f32 0.0, %v3260
        %v3262 = vpop.f32.mrb[0].mxu0
        %3263 = vdwg.mxu0
        %v3264 = vadd.f32 %v3159, %v3246
        %v3265 = vadd.f32 %v3160, %v3251
        %v3266 = vadd.f32 %v3161, %v3256
        %v3267 = vadd.f32 %v3162, %v3261
        %v3268 = vld [vmem:[%s570 + $0x300] sm:$0xff]
        %v3269 = vld [vmem:[%s570 + $0x308] sm:$0xff]
        %v3270 = vld [vmem:[%s570 + $0x310] sm:$0xff]
        %v3271 = vld [vmem:[%s570 + $0x318] sm:$0xff]
        %v3272 = vld [vmem:[%s570 + $0x320] sm:$0xff]
        %v3273 = vld [vmem:[%s570 + $0x328] sm:$0xff]
        %v3274 = vld [vmem:[%s570 + $0x330] sm:$0xff]
        %v3275 = vld [vmem:[%s570 + $0x338] sm:$0xff]
        %v3276 = vld [vmem:[%s570 + $0x340] sm:$0xff]
        %v3277 = vld [vmem:[%s570 + $0x348] sm:$0xff]
        %v3278 = vld [vmem:[%s570 + $0x350] sm:$0xff]
        %v3279 = vld [vmem:[%s570 + $0x358] sm:$0xff]
        %v3280 = vld [vmem:[%s570 + $0x360] sm:$0xff]
        %v3281 = vld [vmem:[%s570 + $0x368] sm:$0xff]
        %v3282 = vld [vmem:[%s570 + $0x370] sm:$0xff]
        %v3283 = vld [vmem:[%s570 + $0x378] sm:$0xff]
        %3284 = vmatprep.subr.mxu0 0.0
        %3285 = vmatpush1.msra.mxu0 %v3268
        %3286 = vmatprep.subr.mxu0 0.0
        %3287 = vmatpush1.msra.mxu0 %v3269
        %3288 = vmatprep.subr.mxu0 0.0
        %3289 = vmatpush1.msra.mxu0 %v3270
        %3290 = vmatprep.subr.mxu0 0.0
        %3291 = vmatpush1.msra.mxu0 %v3271
        %3292 = vmatprep.subr.mxu0 0.0
        %3293 = vmatpush1.msra.mxu0 %v3272
        %3294 = vmatprep.subr.mxu0 0.0
        %3295 = vmatpush1.msra.mxu0 %v3273
        %3296 = vmatprep.subr.mxu0 0.0
        %3297 = vmatpush1.msra.mxu0 %v3274
        %3298 = vmatprep.subr.mxu0 0.0
        %3299 = vmatpush1.msra.mxu0 %v3275
        %3300 = vmatprep.subr.mxu0 0.0
        %3301 = vmatpush1.msra.mxu0 %v3276
        %3302 = vmatprep.subr.mxu0 0.0
        %3303 = vmatpush1.msra.mxu0 %v3277
        %3304 = vmatprep.subr.mxu0 0.0
        %3305 = vmatpush1.msra.mxu0 %v3278
        %3306 = vmatprep.subr.mxu0 0.0
        %3307 = vmatpush1.msra.mxu0 %v3279
        %3308 = vmatprep.subr.mxu0 0.0
        %3309 = vmatpush1.msra.mxu0 %v3280
        %3310 = vmatprep.subr.mxu0 0.0
        %3311 = vmatpush1.msra.mxu0 %v3281
        %3312 = vmatprep.subr.mxu0 0.0
        %3313 = vmatpush1.msra.mxu0 %v3282
        %3314 = vmatprep.subr.mxu0 0.0
        %3315 = vmatpush1.msra.mxu0 %v3283
        %3316 = vmatprep.subr.mxu0 0.0
        %3317 = vmatpush1.msra.mxu0 0.0
        %3318 = vmatprep.subr.mxu0 0.0
        %3319 = vmatpush1.msra.mxu0 0.0
        %3320 = vmatprep.subr.mxu0 0.0
        %3321 = vmatpush1.msra.mxu0 0.0
        %3322 = vmatprep.subr.mxu0 0.0
        %3323 = vmatpush1.msra.mxu0 0.0
        %3324 = vmatprep.subr.mxu0 0.0
        %3325 = vmatpush1.msra.mxu0 0.0
        %3326 = vmatprep.subr.mxu0 0.0
        %3327 = vmatpush1.msra.mxu0 0.0
        %3328 = vmatprep.subr.mxu0 0.0
        %3329 = vmatpush1.msra.mxu0 0.0
        %3330 = vmatprep.subr.mxu0 0.0
        %3331 = vmatpush1.msra.mxu0 0.0
        %3332 = vmatprep.subr.mxu0 0.0
        %3333 = vmatpush1.msra.mxu0 0.0
        %3334 = vmatprep.subr.mxu0 0.0
        %3335 = vmatpush1.msra.mxu0 0.0
        %3336 = vmatprep.subr.mxu0 0.0
        %3337 = vmatpush1.msra.mxu0 0.0
        %3338 = vmatprep.subr.mxu0 0.0
        %3339 = vmatpush1.msra.mxu0 0.0
        %3340 = vmatprep.subr.mxu0 0.0
        %3341 = vmatpush1.msra.mxu0 0.0
        %3342 = vmatprep.subr.mxu0 0.0
        %3343 = vmatpush1.msra.mxu0 0.0
        %3344 = vmatprep.subr.mxu0 0.0
        %3345 = vmatpush1.msra.mxu0 0.0
        %3346 = vmatprep.subr.mxu0 0.0
        %3347 = vmatpush1.msra.mxu0 0.0
        %3348 = vmatprep.mubr.f32.mxu0 0.0
        %3349 = vmatmul.mubr.f32.gmra.mrb[0].mxu0 %v2602
        %v3350 = vpop.f32.mrb[0].mxu0
        %v3351 = vadd.f32 0.0, %v3350
        %v3352 = vpop.f32.mrb[0].mxu0
        %3353 = vmatprep.mubr.f32.mxu0 0.0
        %3354 = vmatmul.mubr.f32.gmra.mrb[0].mxu0 %v2603
        %v3355 = vpop.f32.mrb[0].mxu0
        %v3356 = vadd.f32 0.0, %v3355
        %v3357 = vpop.f32.mrb[0].mxu0
        %3358 = vmatprep.mubr.f32.mxu0 0.0
        %3359 = vmatmul.mubr.f32.gmra.mrb[0].mxu0 %v2604
        %v3360 = vpop.f32.mrb[0].mxu0
        %v3361 = vadd.f32 0.0, %v3360
        %v3362 = vpop.f32.mrb[0].mxu0
        %3363 = vmatprep.mubr.f32.mxu0 0.0
        %3364 = vmatmul.mubr.f32.gmra.mrb[0].mxu0 %v2605
        %v3365 = vpop.f32.mrb[0].mxu0
        %v3366 = vadd.f32 0.0, %v3365
        %v3367 = vpop.f32.mrb[0].mxu0
        %3368 = vdwg.mxu0
        %v3369 = vadd.f32 %v3264, %v3351
        %v3370 = vadd.f32 %v3265, %v3356
        %v3371 = vadd.f32 %v3266, %v3361
        %v3372 = vadd.f32 %v3267, %v3366
        %v3373 = vld [vmem:[%s570 + $0x380] sm:$0xff]
        %v3374 = vld [vmem:[%s570 + $0x388] sm:$0xff]
        %v3375 = vld [vmem:[%s570 + $0x390] sm:$0xff]
        %v3376 = vld [vmem:[%s570 + $0x398] sm:$0xff]
        %v3377 = vld [vmem:[%s570 + $0x3a0] sm:$0xff]
        %v3378 = vld [vmem:[%s570 + $0x3a8] sm:$0xff]
        %v3379 = vld [vmem:[%s570 + $0x3b0] sm:$0xff]
        %v3380 = vld [vmem:[%s570 + $0x3b8] sm:$0xff]
        %v3381 = vld [vmem:[%s570 + $0x3c0] sm:$0xff]
        %v3382 = vld [vmem:[%s570 + $0x3c8] sm:$0xff]
        %v3383 = vld [vmem:[%s570 + $0x3d0] sm:$0xff]
        %v3384 = vld [vmem:[%s570 + $0x3d8] sm:$0xff]
        %v3385 = vld [vmem:[%s570 + $0x3e0] sm:$0xff]
        %v3386 = vld [vmem:[%s570 + $0x3e8] sm:$0xff]
        %v3387 = vld [vmem:[%s570 + $0x3f0] sm:$0xff]
        %v3388 = vld [vmem:[%s570 + $0x3f8] sm:$0xff]
        %3389 = vmatprep.subr.mxu0 0.0
        %3390 = vmatpush1.msra.mxu0 %v3373
        %3391 = vmatprep.subr.mxu0 0.0
        %3392 = vmatpush1.msra.mxu0 %v3374
        %3393 = vmatprep.subr.mxu0 0.0
        %3394 = vmatpush1.msra.mxu0 %v3375
        %3395 = vmatprep.subr.mxu0 0.0
        %3396 = vmatpush1.msra.mxu0 %v3376
        %3397 = vmatprep.subr.mxu0 0.0
        %3398 = vmatpush1.msra.mxu0 %v3377
        %3399 = vmatprep.subr.mxu0 0.0
        %3400 = vmatpush1.msra.mxu0 %v3378
        %3401 = vmatprep.subr.mxu0 0.0
        %3402 = vmatpush1.msra.mxu0 %v3379
        %3403 = vmatprep.subr.mxu0 0.0
        %3404 = vmatpush1.msra.mxu0 %v3380
        %3405 = vmatprep.subr.mxu0 0.0
        %3406 = vmatpush1.msra.mxu0 %v3381
        %3407 = vmatprep.subr.mxu0 0.0
        %3408 = vmatpush1.msra.mxu0 %v3382
        %3409 = vmatprep.subr.mxu0 0.0
        %3410 = vmatpush1.msra.mxu0 %v3383
        %3411 = vmatprep.subr.mxu0 0.0
        %3412 = vmatpush1.msra.mxu0 %v3384
        %3413 = vmatprep.subr.mxu0 0.0
        %3414 = vmatpush1.msra.mxu0 %v3385
        %3415 = vmatprep.subr.mxu0 0.0
        %3416 = vmatpush1.msra.mxu0 %v3386
        %3417 = vmatprep.subr.mxu0 0.0
        %3418 = vmatpush1.msra.mxu0 %v3387
        %3419 = vmatprep.subr.mxu0 0.0
        %3420 = vmatpush1.msra.mxu0 %v3388
        %3421 = vmatprep.subr.mxu0 0.0
        %3422 = vmatpush1.msra.mxu0 0.0
        %3423 = vmatprep.subr.mxu0 0.0
        %3424 = vmatpush1.msra.mxu0 0.0
        %3425 = vmatprep.subr.mxu0 0.0
        %3426 = vmatpush1.msra.mxu0 0.0
        %3427 = vmatprep.subr.mxu0 0.0
        %3428 = vmatpush1.msra.mxu0 0.0
        %3429 = vmatprep.subr.mxu0 0.0
        %3430 = vmatpush1.msra.mxu0 0.0
        %3431 = vmatprep.subr.mxu0 0.0
        %3432 = vmatpush1.msra.mxu0 0.0
        %3433 = vmatprep.subr.mxu0 0.0
        %3434 = vmatpush1.msra.mxu0 0.0
        %3435 = vmatprep.subr.mxu0 0.0
        %3436 = vmatpush1.msra.mxu0 0.0
        %3437 = vmatprep.subr.mxu0 0.0
        %3438 = vmatpush1.msra.mxu0 0.0
        %3439 = vmatprep.subr.mxu0 0.0
        %3440 = vmatpush1.msra.mxu0 0.0
        %3441 = vmatprep.subr.mxu0 0.0
        %3442 = vmatpush1.msra.mxu0 0.0
        %3443 = vmatprep.subr.mxu0 0.0
        %3444 = vmatpush1.msra.mxu0 0.0
        %3445 = vmatprep.subr.mxu0 0.0
        %3446 = vmatpush1.msra.mxu0 0.0
        %3447 = vmatprep.subr.mxu0 0.0
        %3448 = vmatpush1.msra.mxu0 0.0
        %3449 = vmatprep.subr.mxu0 0.0
        %3450 = vmatpush1.msra.mxu0 0.0
        %3451 = vmatprep.subr.mxu0 0.0
        %3452 = vmatpush1.msra.mxu0 0.0
        %3453 = vmatprep.mubr.f32.mxu0 0.0
        %3454 = vmatmul.mubr.f32.gmra.mrb[0].mxu0 %v2606
        %v3455 = vpop.f32.mrb[0].mxu0
        %v3456 = vadd.f32 0.0, %v3455
        %v3457 = vpop.f32.mrb[0].mxu0
        %3458 = vmatprep.mubr.f32.mxu0 0.0
        %3459 = vmatmul.mubr.f32.gmra.mrb[0].mxu0 %v2607
        %v3460 = vpop.f32.mrb[0].mxu0
        %v3461 = vadd.f32 0.0, %v3460
        %v3462 = vpop.f32.mrb[0].mxu0
        %3463 = vmatprep.mubr.f32.mxu0 0.0
        %3464 = vmatmul.mubr.f32.gmra.mrb[0].mxu0 %v2608
        %v3465 = vpop.f32.mrb[0].mxu0
        %v3466 = vadd.f32 0.0, %v3465
        %v3467 = vpop.f32.mrb[0].mxu0
        %3468 = vmatprep.mubr.f32.mxu0 0.0
        %3469 = vmatmul.mubr.f32.gmra.mrb[0].mxu0 %v2609
        %v3470 = vpop.f32.mrb[0].mxu0
        %v3471 = vadd.f32 0.0, %v3470
        %v3472 = vpop.f32.mrb[0].mxu0
        %3473 = vdwg.mxu0
        %v3474 = vadd.f32 %v3369, %v3456
        %v3475 = vadd.f32 %v3370, %v3461
        %v3476 = vadd.f32 %v3371, %v3466
        %v3477 = vadd.f32 %v3372, %v3471
        %v3478 = vld [vmem:[%s570 + $0x400] sm:$0xff]
        %v3479 = vld [vmem:[%s570 + $0x408] sm:$0xff]
        %v3480 = vld [vmem:[%s570 + $0x410] sm:$0xff]
        %v3481 = vld [vmem:[%s570 + $0x418] sm:$0xff]
        %v3482 = vld [vmem:[%s570 + $0x420] sm:$0xff]
        %v3483 = vld [vmem:[%s570 + $0x428] sm:$0xff]
        %v3484 = vld [vmem:[%s570 + $0x430] sm:$0xff]
        %v3485 = vld [vmem:[%s570 + $0x438] sm:$0xff]
        %v3486 = vld [vmem:[%s570 + $0x440] sm:$0xff]
        %v3487 = vld [vmem:[%s570 + $0x448] sm:$0xff]
        %v3488 = vld [vmem:[%s570 + $0x450] sm:$0xff]
        %v3489 = vld [vmem:[%s570 + $0x458] sm:$0xff]
        %v3490 = vld [vmem:[%s570 + $0x460] sm:$0xff]
        %v3491 = vld [vmem:[%s570 + $0x468] sm:$0xff]
        %v3492 = vld [vmem:[%s570 + $0x470] sm:$0xff]
        %v3493 = vld [vmem:[%s570 + $0x478] sm:$0xff]
        %3494 = vmatprep.subr.mxu0 0.0
        %3495 = vmatpush1.msra.mxu0 %v3478
        %3496 = vmatprep.subr.mxu0 0.0
        %3497 = vmatpush1.msra.mxu0 %v3479
        %3498 = vmatprep.subr.mxu0 0.0
        %3499 = vmatpush1.msra.mxu0 %v3480
        %3500 = vmatprep.subr.mxu0 0.0
        %3501 = vmatpush1.msra.mxu0 %v3481
        %3502 = vmatprep.subr.mxu0 0.0
        %3503 = vmatpush1.msra.mxu0 %v3482
        %3504 = vmatprep.subr.mxu0 0.0
        %3505 = vmatpush1.msra.mxu0 %v3483
        %3506 = vmatprep.subr.mxu0 0.0
        %3507 = vmatpush1.msra.mxu0 %v3484
        %3508 = vmatprep.subr.mxu0 0.0
        %3509 = vmatpush1.msra.mxu0 %v3485
        %3510 = vmatprep.subr.mxu0 0.0
        %3511 = vmatpush1.msra.mxu0 %v3486
        %3512 = vmatprep.subr.mxu0 0.0
        %3513 = vmatpush1.msra.mxu0 %v3487
        %3514 = vmatprep.subr.mxu0 0.0
        %3515 = vmatpush1.msra.mxu0 %v3488
        %3516 = vmatprep.subr.mxu0 0.0
        %3517 = vmatpush1.msra.mxu0 %v3489
        %3518 = vmatprep.subr.mxu0 0.0
        %3519 = vmatpush1.msra.mxu0 %v3490
        %3520 = vmatprep.subr.mxu0 0.0
        %3521 = vmatpush1.msra.mxu0 %v3491
        %3522 = vmatprep.subr.mxu0 0.0
        %3523 = vmatpush1.msra.mxu0 %v3492
        %3524 = vmatprep.subr.mxu0 0.0
        %3525 = vmatpush1.msra.mxu0 %v3493
        %3526 = vmatprep.subr.mxu0 0.0
        %3527 = vmatpush1.msra.mxu0 0.0
        %3528 = vmatprep.subr.mxu0 0.0
        %3529 = vmatpush1.msra.mxu0 0.0
        %3530 = vmatprep.subr.mxu0 0.0
        %3531 = vmatpush1.msra.mxu0 0.0
        %3532 = vmatprep.subr.mxu0 0.0
        %3533 = vmatpush1.msra.mxu0 0.0
        %3534 = vmatprep.subr.mxu0 0.0
        %3535 = vmatpush1.msra.mxu0 0.0
        %3536 = vmatprep.subr.mxu0 0.0
        %3537 = vmatpush1.msra.mxu0 0.0
        %3538 = vmatprep.subr.mxu0 0.0
        %3539 = vmatpush1.msra.mxu0 0.0
        %3540 = vmatprep.subr.mxu0 0.0
        %3541 = vmatpush1.msra.mxu0 0.0
        %3542 = vmatprep.subr.mxu0 0.0
        %3543 = vmatpush1.msra.mxu0 0.0
        %3544 = vmatprep.subr.mxu0 0.0
        %3545 = vmatpush1.msra.mxu0 0.0
        %3546 = vmatprep.subr.mxu0 0.0
        %3547 = vmatpush1.msra.mxu0 0.0
        %3548 = vmatprep.subr.mxu0 0.0
        %3549 = vmatpush1.msra.mxu0 0.0
        %3550 = vmatprep.subr.mxu0 0.0
        %3551 = vmatpush1.msra.mxu0 0.0
        %3552 = vmatprep.subr.mxu0 0.0
        %3553 = vmatpush1.msra.mxu0 0.0
        %3554 = vmatprep.subr.mxu0 0.0
        %3555 = vmatpush1.msra.mxu0 0.0
        %3556 = vmatprep.subr.mxu0 0.0
        %3557 = vmatpush1.msra.mxu0 0.0
        %3558 = vmatprep.mubr.f32.mxu0 0.0
        %3559 = vmatmul.mubr.f32.gmra.mrb[0].mxu0 %v2630
        %v3560 = vpop.f32.mrb[0].mxu0
        %v3561 = vadd.f32 0.0, %v3560
        %v3562 = vpop.f32.mrb[0].mxu0
        %3563 = vmatprep.mubr.f32.mxu0 0.0
        %3564 = vmatmul.mubr.f32.gmra.mrb[0].mxu0 %v2631
        %v3565 = vpop.f32.mrb[0].mxu0
        %v3566 = vadd.f32 0.0, %v3565
        %v3567 = vpop.f32.mrb[0].mxu0
        %3568 = vmatprep.mubr.f32.mxu0 0.0
        %3569 = vmatmul.mubr.f32.gmra.mrb[0].mxu0 %v2632
        %v3570 = vpop.f32.mrb[0].mxu0
        %v3571 = vadd.f32 0.0, %v3570
        %v3572 = vpop.f32.mrb[0].mxu0
        %3573 = vmatprep.mubr.f32.mxu0 0.0
        %3574 = vmatmul.mubr.f32.gmra.mrb[0].mxu0 %v2633
        %v3575 = vpop.f32.mrb[0].mxu0
        %v3576 = vadd.f32 0.0, %v3575
        %v3577 = vpop.f32.mrb[0].mxu0
        %3578 = vdwg.mxu0
        %v3579 = vadd.f32 %v3474, %v3561
        %v3580 = vadd.f32 %v3475, %v3566
        %v3581 = vadd.f32 %v3476, %v3571
        %v3582 = vadd.f32 %v3477, %v3576
        %v3583 = vld [vmem:[%s570 + $0x480] sm:$0xff]
        %v3584 = vld [vmem:[%s570 + $0x488] sm:$0xff]
        %v3585 = vld [vmem:[%s570 + $0x490] sm:$0xff]
        %v3586 = vld [vmem:[%s570 + $0x498] sm:$0xff]
        %v3587 = vld [vmem:[%s570 + $0x4a0] sm:$0xff]
        %v3588 = vld [vmem:[%s570 + $0x4a8] sm:$0xff]
        %v3589 = vld [vmem:[%s570 + $0x4b0] sm:$0xff]
        %v3590 = vld [vmem:[%s570 + $0x4b8] sm:$0xff]
        %v3591 = vld [vmem:[%s570 + $0x4c0] sm:$0xff]
        %v3592 = vld [vmem:[%s570 + $0x4c8] sm:$0xff]
        %v3593 = vld [vmem:[%s570 + $0x4d0] sm:$0xff]
        %v3594 = vld [vmem:[%s570 + $0x4d8] sm:$0xff]
        %v3595 = vld [vmem:[%s570 + $0x4e0] sm:$0xff]
        %v3596 = vld [vmem:[%s570 + $0x4e8] sm:$0xff]
        %v3597 = vld [vmem:[%s570 + $0x4f0] sm:$0xff]
        %v3598 = vld [vmem:[%s570 + $0x4f8] sm:$0xff]
        %3599 = vmatprep.subr.mxu0 0.0
        %3600 = vmatpush1.msra.mxu0 %v3583
        %3601 = vmatprep.subr.mxu0 0.0
        %3602 = vmatpush1.msra.mxu0 %v3584
        %3603 = vmatprep.subr.mxu0 0.0
        %3604 = vmatpush1.msra.mxu0 %v3585
        %3605 = vmatprep.subr.mxu0 0.0
        %3606 = vmatpush1.msra.mxu0 %v3586
        %3607 = vmatprep.subr.mxu0 0.0
        %3608 = vmatpush1.msra.mxu0 %v3587
        %3609 = vmatprep.subr.mxu0 0.0
        %3610 = vmatpush1.msra.mxu0 %v3588
        %3611 = vmatprep.subr.mxu0 0.0
        %3612 = vmatpush1.msra.mxu0 %v3589
        %3613 = vmatprep.subr.mxu0 0.0
        %3614 = vmatpush1.msra.mxu0 %v3590
        %3615 = vmatprep.subr.mxu0 0.0
        %3616 = vmatpush1.msra.mxu0 %v3591
        %3617 = vmatprep.subr.mxu0 0.0
        %3618 = vmatpush1.msra.mxu0 %v3592
        %3619 = vmatprep.subr.mxu0 0.0
        %3620 = vmatpush1.msra.mxu0 %v3593
        %3621 = vmatprep.subr.mxu0 0.0
        %3622 = vmatpush1.msra.mxu0 %v3594
        %3623 = vmatprep.subr.mxu0 0.0
        %3624 = vmatpush1.msra.mxu0 %v3595
        %3625 = vmatprep.subr.mxu0 0.0
        %3626 = vmatpush1.msra.mxu0 %v3596
        %3627 = vmatprep.subr.mxu0 0.0
        %3628 = vmatpush1.msra.mxu0 %v3597
        %3629 = vmatprep.subr.mxu0 0.0
        %3630 = vmatpush1.msra.mxu0 %v3598
        %3631 = vmatprep.subr.mxu0 0.0
        %3632 = vmatpush1.msra.mxu0 0.0
        %3633 = vmatprep.subr.mxu0 0.0
        %3634 = vmatpush1.msra.mxu0 0.0
        %3635 = vmatprep.subr.mxu0 0.0
        %3636 = vmatpush1.msra.mxu0 0.0
        %3637 = vmatprep.subr.mxu0 0.0
        %3638 = vmatpush1.msra.mxu0 0.0
        %3639 = vmatprep.subr.mxu0 0.0
        %3640 = vmatpush1.msra.mxu0 0.0
        %3641 = vmatprep.subr.mxu0 0.0
        %3642 = vmatpush1.msra.mxu0 0.0
        %3643 = vmatprep.subr.mxu0 0.0
        %3644 = vmatpush1.msra.mxu0 0.0
        %3645 = vmatprep.subr.mxu0 0.0
        %3646 = vmatpush1.msra.mxu0 0.0
        %3647 = vmatprep.subr.mxu0 0.0
        %3648 = vmatpush1.msra.mxu0 0.0
        %3649 = vmatprep.subr.mxu0 0.0
        %3650 = vmatpush1.msra.mxu0 0.0
        %3651 = vmatprep.subr.mxu0 0.0
        %3652 = vmatpush1.msra.mxu0 0.0
        %3653 = vmatprep.subr.mxu0 0.0
        %3654 = vmatpush1.msra.mxu0 0.0
        %3655 = vmatprep.subr.mxu0 0.0
        %3656 = vmatpush1.msra.mxu0 0.0
        %3657 = vmatprep.subr.mxu0 0.0
        %3658 = vmatpush1.msra.mxu0 0.0
        %3659 = vmatprep.subr.mxu0 0.0
        %3660 = vmatpush1.msra.mxu0 0.0
        %3661 = vmatprep.subr.mxu0 0.0
        %3662 = vmatpush1.msra.mxu0 0.0
        %3663 = vmatprep.mubr.f32.mxu0 0.0
        %3664 = vmatmul.mubr.f32.gmra.mrb[0].mxu0 %v2634
        %v3665 = vpop.f32.mrb[0].mxu0
        %v3666 = vadd.f32 0.0, %v3665
        %v3667 = vpop.f32.mrb[0].mxu0
        %3668 = vmatprep.mubr.f32.mxu0 0.0
        %3669 = vmatmul.mubr.f32.gmra.mrb[0].mxu0 %v2635
        %v3670 = vpop.f32.mrb[0].mxu0
        %v3671 = vadd.f32 0.0, %v3670
        %v3672 = vpop.f32.mrb[0].mxu0
        %3673 = vmatprep.mubr.f32.mxu0 0.0
        %3674 = vmatmul.mubr.f32.gmra.mrb[0].mxu0 %v2636
        %v3675 = vpop.f32.mrb[0].mxu0
        %v3676 = vadd.f32 0.0, %v3675
        %v3677 = vpop.f32.mrb[0].mxu0
        %3678 = vmatprep.mubr.f32.mxu0 0.0
        %3679 = vmatmul.mubr.f32.gmra.mrb[0].mxu0 %v2637
        %v3680 = vpop.f32.mrb[0].mxu0
        %v3681 = vadd.f32 0.0, %v3680
        %v3682 = vpop.f32.mrb[0].mxu0
        %3683 = vdwg.mxu0
        %v3684 = vadd.f32 %v3579, %v3666
        %v3685 = vadd.f32 %v3580, %v3671
        %v3686 = vadd.f32 %v3581, %v3676
        %v3687 = vadd.f32 %v3582, %v3681
        %v3688 = vld [vmem:[%s570 + $0x500] sm:$0xff]
        %v3689 = vld [vmem:[%s570 + $0x508] sm:$0xff]
        %v3690 = vld [vmem:[%s570 + $0x510] sm:$0xff]
        %v3691 = vld [vmem:[%s570 + $0x518] sm:$0xff]
        %v3692 = vld [vmem:[%s570 + $0x520] sm:$0xff]
        %v3693 = vld [vmem:[%s570 + $0x528] sm:$0xff]
        %v3694 = vld [vmem:[%s570 + $0x530] sm:$0xff]
        %v3695 = vld [vmem:[%s570 + $0x538] sm:$0xff]
        %v3696 = vld [vmem:[%s570 + $0x540] sm:$0xff]
        %v3697 = vld [vmem:[%s570 + $0x548] sm:$0xff]
        %v3698 = vld [vmem:[%s570 + $0x550] sm:$0xff]
        %v3699 = vld [vmem:[%s570 + $0x558] sm:$0xff]
        %v3700 = vld [vmem:[%s570 + $0x560] sm:$0xff]
        %v3701 = vld [vmem:[%s570 + $0x568] sm:$0xff]
        %v3702 = vld [vmem:[%s570 + $0x570] sm:$0xff]
        %v3703 = vld [vmem:[%s570 + $0x578] sm:$0xff]
        %3704 = vmatprep.subr.mxu0 0.0
        %3705 = vmatpush1.msra.mxu0 %v3688
        %3706 = vmatprep.subr.mxu0 0.0
        %3707 = vmatpush1.msra.mxu0 %v3689
        %3708 = vmatprep.subr.mxu0 0.0
        %3709 = vmatpush1.msra.mxu0 %v3690
        %3710 = vmatprep.subr.mxu0 0.0
        %3711 = vmatpush1.msra.mxu0 %v3691
        %3712 = vmatprep.subr.mxu0 0.0
        %3713 = vmatpush1.msra.mxu0 %v3692
        %3714 = vmatprep.subr.mxu0 0.0
        %3715 = vmatpush1.msra.mxu0 %v3693
        %3716 = vmatprep.subr.mxu0 0.0
        %3717 = vmatpush1.msra.mxu0 %v3694
        %3718 = vmatprep.subr.mxu0 0.0
        %3719 = vmatpush1.msra.mxu0 %v3695
        %3720 = vmatprep.subr.mxu0 0.0
        %3721 = vmatpush1.msra.mxu0 %v3696
        %3722 = vmatprep.subr.mxu0 0.0
        %3723 = vmatpush1.msra.mxu0 %v3697
        %3724 = vmatprep.subr.mxu0 0.0
        %3725 = vmatpush1.msra.mxu0 %v3698
        %3726 = vmatprep.subr.mxu0 0.0
        %3727 = vmatpush1.msra.mxu0 %v3699
        %3728 = vmatprep.subr.mxu0 0.0
        %3729 = vmatpush1.msra.mxu0 %v3700
        %3730 = vmatprep.subr.mxu0 0.0
        %3731 = vmatpush1.msra.mxu0 %v3701
        %3732 = vmatprep.subr.mxu0 0.0
        %3733 = vmatpush1.msra.mxu0 %v3702
        %3734 = vmatprep.subr.mxu0 0.0
        %3735 = vmatpush1.msra.mxu0 %v3703
        %3736 = vmatprep.subr.mxu0 0.0
        %3737 = vmatpush1.msra.mxu0 0.0
        %3738 = vmatprep.subr.mxu0 0.0
        %3739 = vmatpush1.msra.mxu0 0.0
        %3740 = vmatprep.subr.mxu0 0.0
        %3741 = vmatpush1.msra.mxu0 0.0
        %3742 = vmatprep.subr.mxu0 0.0
        %3743 = vmatpush1.msra.mxu0 0.0
        %3744 = vmatprep.subr.mxu0 0.0
        %3745 = vmatpush1.msra.mxu0 0.0
        %3746 = vmatprep.subr.mxu0 0.0
        %3747 = vmatpush1.msra.mxu0 0.0
        %3748 = vmatprep.subr.mxu0 0.0
        %3749 = vmatpush1.msra.mxu0 0.0
        %3750 = vmatprep.subr.mxu0 0.0
        %3751 = vmatpush1.msra.mxu0 0.0
        %3752 = vmatprep.subr.mxu0 0.0
        %3753 = vmatpush1.msra.mxu0 0.0
        %3754 = vmatprep.subr.mxu0 0.0
        %3755 = vmatpush1.msra.mxu0 0.0
        %3756 = vmatprep.subr.mxu0 0.0
        %3757 = vmatpush1.msra.mxu0 0.0
        %3758 = vmatprep.subr.mxu0 0.0
        %3759 = vmatpush1.msra.mxu0 0.0
        %3760 = vmatprep.subr.mxu0 0.0
        %3761 = vmatpush1.msra.mxu0 0.0
        %3762 = vmatprep.subr.mxu0 0.0
        %3763 = vmatpush1.msra.mxu0 0.0
        %3764 = vmatprep.subr.mxu0 0.0
        %3765 = vmatpush1.msra.mxu0 0.0
        %3766 = vmatprep.subr.mxu0 0.0
        %3767 = vmatpush1.msra.mxu0 0.0
        %3768 = vmatprep.mubr.f32.mxu0 0.0
        %3769 = vmatmul.mubr.f32.gmra.mrb[0].mxu0 %v2638
        %v3770 = vpop.f32.mrb[0].mxu0
        %v3771 = vadd.f32 0.0, %v3770
        %v3772 = vpop.f32.mrb[0].mxu0
        %3773 = vmatprep.mubr.f32.mxu0 0.0
        %3774 = vmatmul.mubr.f32.gmra.mrb[0].mxu0 %v2639
        %v3775 = vpop.f32.mrb[0].mxu0
        %v3776 = vadd.f32 0.0, %v3775
        %v3777 = vpop.f32.mrb[0].mxu0
        %3778 = vmatprep.mubr.f32.mxu0 0.0
        %3779 = vmatmul.mubr.f32.gmra.mrb[0].mxu0 %v2640
        %v3780 = vpop.f32.mrb[0].mxu0
        %v3781 = vadd.f32 0.0, %v3780
        %v3782 = vpop.f32.mrb[0].mxu0
        %3783 = vmatprep.mubr.f32.mxu0 0.0
        %3784 = vmatmul.mubr.f32.gmra.mrb[0].mxu0 %v2641
        %v3785 = vpop.f32.mrb[0].mxu0
        %v3786 = vadd.f32 0.0, %v3785
        %v3787 = vpop.f32.mrb[0].mxu0
        %3788 = vdwg.mxu0
        %v3789 = vadd.f32 %v3684, %v3771
        %v3790 = vadd.f32 %v3685, %v3776
        %v3791 = vadd.f32 %v3686, %v3781
        %v3792 = vadd.f32 %v3687, %v3786
        %v3793 = vld [vmem:[%s570 + $0x580] sm:$0xff]
        %v3794 = vld [vmem:[%s570 + $0x588] sm:$0xff]
        %v3795 = vld [vmem:[%s570 + $0x590] sm:$0xff]
        %v3796 = vld [vmem:[%s570 + $0x598] sm:$0xff]
        %v3797 = vld [vmem:[%s570 + $0x5a0] sm:$0xff]
        %v3798 = vld [vmem:[%s570 + $0x5a8] sm:$0xff]
        %v3799 = vld [vmem:[%s570 + $0x5b0] sm:$0xff]
        %v3800 = vld [vmem:[%s570 + $0x5b8] sm:$0xff]
        %v3801 = vld [vmem:[%s570 + $0x5c0] sm:$0xff]
        %v3802 = vld [vmem:[%s570 + $0x5c8] sm:$0xff]
        %v3803 = vld [vmem:[%s570 + $0x5d0] sm:$0xff]
        %v3804 = vld [vmem:[%s570 + $0x5d8] sm:$0xff]
        %v3805 = vld [vmem:[%s570 + $0x5e0] sm:$0xff]
        %v3806 = vld [vmem:[%s570 + $0x5e8] sm:$0xff]
        %v3807 = vld [vmem:[%s570 + $0x5f0] sm:$0xff]
        %v3808 = vld [vmem:[%s570 + $0x5f8] sm:$0xff]
        %3809 = vmatprep.subr.mxu0 0.0
        %3810 = vmatpush1.msra.mxu0 %v3793
        %3811 = vmatprep.subr.mxu0 0.0
        %3812 = vmatpush1.msra.mxu0 %v3794
        %3813 = vmatprep.subr.mxu0 0.0
        %3814 = vmatpush1.msra.mxu0 %v3795
        %3815 = vmatprep.subr.mxu0 0.0
        %3816 = vmatpush1.msra.mxu0 %v3796
        %3817 = vmatprep.subr.mxu0 0.0
        %3818 = vmatpush1.msra.mxu0 %v3797
        %3819 = vmatprep.subr.mxu0 0.0
        %3820 = vmatpush1.msra.mxu0 %v3798
        %3821 = vmatprep.subr.mxu0 0.0
        %3822 = vmatpush1.msra.mxu0 %v3799
        %3823 = vmatprep.subr.mxu0 0.0
        %3824 = vmatpush1.msra.mxu0 %v3800
        %3825 = vmatprep.subr.mxu0 0.0
        %3826 = vmatpush1.msra.mxu0 %v3801
        %3827 = vmatprep.subr.mxu0 0.0
        %3828 = vmatpush1.msra.mxu0 %v3802
        %3829 = vmatprep.subr.mxu0 0.0
        %3830 = vmatpush1.msra.mxu0 %v3803
        %3831 = vmatprep.subr.mxu0 0.0
        %3832 = vmatpush1.msra.mxu0 %v3804
        %3833 = vmatprep.subr.mxu0 0.0
        %3834 = vmatpush1.msra.mxu0 %v3805
        %3835 = vmatprep.subr.mxu0 0.0
        %3836 = vmatpush1.msra.mxu0 %v3806
        %3837 = vmatprep.subr.mxu0 0.0
        %3838 = vmatpush1.msra.mxu0 %v3807
        %3839 = vmatprep.subr.mxu0 0.0
        %3840 = vmatpush1.msra.mxu0 %v3808
        %3841 = vmatprep.subr.mxu0 0.0
        %3842 = vmatpush1.msra.mxu0 0.0
        %3843 = vmatprep.subr.mxu0 0.0
        %3844 = vmatpush1.msra.mxu0 0.0
        %3845 = vmatprep.subr.mxu0 0.0
        %3846 = vmatpush1.msra.mxu0 0.0
        %3847 = vmatprep.subr.mxu0 0.0
        %3848 = vmatpush1.msra.mxu0 0.0
        %3849 = vmatprep.subr.mxu0 0.0
        %3850 = vmatpush1.msra.mxu0 0.0
        %3851 = vmatprep.subr.mxu0 0.0
        %3852 = vmatpush1.msra.mxu0 0.0
        %3853 = vmatprep.subr.mxu0 0.0
        %3854 = vmatpush1.msra.mxu0 0.0
        %3855 = vmatprep.subr.mxu0 0.0
        %3856 = vmatpush1.msra.mxu0 0.0
        %3857 = vmatprep.subr.mxu0 0.0
        %3858 = vmatpush1.msra.mxu0 0.0
        %3859 = vmatprep.subr.mxu0 0.0
        %3860 = vmatpush1.msra.mxu0 0.0
        %3861 = vmatprep.subr.mxu0 0.0
        %3862 = vmatpush1.msra.mxu0 0.0
        %3863 = vmatprep.subr.mxu0 0.0
        %3864 = vmatpush1.msra.mxu0 0.0
        %3865 = vmatprep.subr.mxu0 0.0
        %3866 = vmatpush1.msra.mxu0 0.0
        %3867 = vmatprep.subr.mxu0 0.0
        %3868 = vmatpush1.msra.mxu0 0.0
        %3869 = vmatprep.subr.mxu0 0.0
        %3870 = vmatpush1.msra.mxu0 0.0
        %3871 = vmatprep.subr.mxu0 0.0
        %3872 = vmatpush1.msra.mxu0 0.0
        %3873 = vmatprep.mubr.f32.mxu0 0.0
        %3874 = vmatmul.mubr.f32.gmra.mrb[0].mxu0 %v2642
        %v3875 = vpop.f32.mrb[0].mxu0
        %v3876 = vadd.f32 0.0, %v3875
        %v3877 = vpop.f32.mrb[0].mxu0
        %3878 = vmatprep.mubr.f32.mxu0 0.0
        %3879 = vmatmul.mubr.f32.gmra.mrb[0].mxu0 %v2643
        %v3880 = vpop.f32.mrb[0].mxu0
        %v3881 = vadd.f32 0.0, %v3880
        %v3882 = vpop.f32.mrb[0].mxu0
        %3883 = vmatprep.mubr.f32.mxu0 0.0
        %3884 = vmatmul.mubr.f32.gmra.mrb[0].mxu0 %v2644
        %v3885 = vpop.f32.mrb[0].mxu0
        %v3886 = vadd.f32 0.0, %v3885
        %v3887 = vpop.f32.mrb[0].mxu0
        %3888 = vmatprep.mubr.f32.mxu0 0.0
        %3889 = vmatmul.mubr.f32.gmra.mrb[0].mxu0 %v2645
        %v3890 = vpop.f32.mrb[0].mxu0
        %v3891 = vadd.f32 0.0, %v3890
        %v3892 = vpop.f32.mrb[0].mxu0
        %3893 = vdwg.mxu0
        %v3894 = vadd.f32 %v3789, %v3876
        %v3895 = vadd.f32 %v3790, %v3881
        %v3896 = vadd.f32 %v3791, %v3886
        %v3897 = vadd.f32 %v3792, %v3891
        %v3898 = vld [vmem:[%s578] sm:$0x1]
        %v3900 = vlaneseq
        %v3901 = vshrl.u32 %v3900, 7
        %v3902 = vsub.s32 0, %v3901
        %v3903 = vrot.slane %v3898, %v3902
        %v3905 = vadd.f32 %v3894, %v3903
        %v3906 = vadd.f32 %v3895, %v3903
        %v3907 = vadd.f32 %v3896, %v3903
        %v3908 = vadd.f32 %v3897, %v3903
        %v3909 = vmax.f32 %v3905, 0.0
        %v3910 = vmax.f32 %v3906, 0.0
        %v3911 = vmax.f32 %v3907, 0.0
        %v3912 = vmax.f32 %v3908, 0.0
        %v3913 = vadd.f32 %v3909, %v664
        %v3914 = vadd.f32 %v3910, %v665
        %v3915 = vadd.f32 %v3911, %v666
        %v3916 = vadd.f32 %v3912, %v667
        %3917 = vst [vmem:[#allocation2] sm:$0xff] %v3913
        %3918 = vst [vmem:[#allocation2 + $0x8] sm:$0xff] %v3914
        %3919 = vst [vmem:[#allocation2 + $0x10] sm:$0xff] %v3915
        %3920 = vst [vmem:[#allocation2 + $0x18] sm:$0xff] %v3916
        %p3921 = scmp.eq.s32.totalorder %s32, 3
        // Predicated region
        $region129: #{tpu_custom_call.1} parent=79 // pred_check
          %p3922 = pneg %p3921
        $region130: #{tpu_custom_call.1} parent=79 // pred_check_branch
          %3924 = sbr.rel (%p3922) target = $region132
        $region131: #{tpu_custom_call.1} parent=79 // pred_region
          %v3925 = vld [vmem:[#allocation2] sm:$0xff]
          %v3926 = vld [vmem:[#allocation2 + $0x8] sm:$0xff]
          %v3927 = vld [vmem:[#allocation2 + $0x10] sm:$0xff]
          %v3928 = vld [vmem:[#allocation2 + $0x18] sm:$0xff]
          %v3929 = vld [vmem:[#allocation10] sm:$0xf]
          %v3931 = vsel %vm688, %v3929, 0
          %3933 = vmatprep.subr.mxu0 0.0
          %3934 = vmatpush1.msra.mxu0 %v3925
          %3935 = vmatprep.subr.mxu0 0.0
          %3936 = vmatpush1.msra.mxu0 %v3926
          %3937 = vmatprep.subr.mxu0 0.0
          %3938 = vmatpush1.msra.mxu0 %v3927
          %3939 = vmatprep.subr.mxu0 0.0
          %3940 = vmatpush1.msra.mxu0 %v3928
          %3941 = vmatprep.subr.mxu0 0.0
          %3942 = vmatpush1.msra.mxu0 0.0
          %3943 = vmatprep.subr.mxu0 0.0
          %3944 = vmatpush1.msra.mxu0 0.0
          %3945 = vmatprep.subr.mxu0 0.0
          %3946 = vmatpush1.msra.mxu0 0.0
          %3947 = vmatprep.subr.mxu0 0.0
          %3948 = vmatpush1.msra.mxu0 0.0
          %3949 = vmatprep.subr.mxu0 0.0
          %3950 = vmatpush1.msra.mxu0 0.0
          %3951 = vmatprep.subr.mxu0 0.0
          %3952 = vmatpush1.msra.mxu0 0.0
          %3953 = vmatprep.subr.mxu0 0.0
          %3954 = vmatpush1.msra.mxu0 0.0
          %3955 = vmatprep.subr.mxu0 0.0
          %3956 = vmatpush1.msra.mxu0 0.0
          %3957 = vmatprep.subr.mxu0 0.0
          %3958 = vmatpush1.msra.mxu0 0.0
          %3959 = vmatprep.subr.mxu0 0.0
          %3960 = vmatpush1.msra.mxu0 0.0
          %3961 = vmatprep.subr.mxu0 0.0
          %3962 = vmatpush1.msra.mxu0 0.0
          %3963 = vmatprep.subr.mxu0 0.0
          %3964 = vmatpush1.msra.mxu0 0.0
          %3965 = vmatprep.subr.mxu0 0.0
          %3966 = vmatpush1.msra.mxu0 0.0
          %3967 = vmatprep.subr.mxu0 0.0
          %3968 = vmatpush1.msra.mxu0 0.0
          %3969 = vmatprep.subr.mxu0 0.0
          %3970 = vmatpush1.msra.mxu0 0.0
          %3971 = vmatprep.subr.mxu0 0.0
          %3972 = vmatpush1.msra.mxu0 0.0
          %3973 = vmatprep.subr.mxu0 0.0
          %3974 = vmatpush1.msra.mxu0 0.0
          %3975 = vmatprep.subr.mxu0 0.0
          %3976 = vmatpush1.msra.mxu0 0.0
          %3977 = vmatprep.subr.mxu0 0.0
          %3978 = vmatpush1.msra.mxu0 0.0
          %3979 = vmatprep.subr.mxu0 0.0
          %3980 = vmatpush1.msra.mxu0 0.0
          %3981 = vmatprep.subr.mxu0 0.0
          %3982 = vmatpush1.msra.mxu0 0.0
          %3983 = vmatprep.subr.mxu0 0.0
          %3984 = vmatpush1.msra.mxu0 0.0
          %3985 = vmatprep.subr.mxu0 0.0
          %3986 = vmatpush1.msra.mxu0 0.0
          %3987 = vmatprep.subr.mxu0 0.0
          %3988 = vmatpush1.msra.mxu0 0.0
          %3989 = vmatprep.subr.mxu0 0.0
          %3990 = vmatpush1.msra.mxu0 0.0
          %3991 = vmatprep.subr.mxu0 0.0
          %3992 = vmatpush1.msra.mxu0 0.0
          %3993 = vmatprep.subr.mxu0 0.0
          %3994 = vmatpush1.msra.mxu0 0.0
          %3995 = vmatprep.subr.mxu0 0.0
          %3996 = vmatpush1.msra.mxu0 0.0
          %3997 = vmatprep.mubr.f32.mxu0 0.0
          %3998 = vmatmul.mubr.f32.gmra.mrb[0].mxu0 %v3931
          %v3999 = vpop.f32.mrb[0].mxu0
          %v4000 = vadd.f32 0.0, %v3999
          %v4001 = vpop.f32.mrb[0].mxu0
          %4002 = vdwg.mxu0
          %v4003 = vld [vmem:[#allocation11] sm:$0xff]
          %v4004 = vld [vmem:[#allocation11 + $0x8] sm:$0xff]
          %v4005 = vld [vmem:[#allocation11 + $0x10] sm:$0xff]
          %v4006 = vld [vmem:[#allocation11 + $0x18] sm:$0xff]
          %v4007 = vld [vmem:[#allocation11 + $0x20] sm:$0xff]
          %v4008 = vld [vmem:[#allocation11 + $0x28] sm:$0xff]
          %v4009 = vld [vmem:[#allocation11 + $0x30] sm:$0xff]
          %v4010 = vld [vmem:[#allocation11 + $0x38] sm:$0xff]
          %v4011 = vld [vmem:[#allocation11 + $0x40] sm:$0xff]
          %v4012 = vld [vmem:[#allocation11 + $0x48] sm:$0xff]
          %v4013 = vld [vmem:[#allocation11 + $0x50] sm:$0xff]
          %v4014 = vld [vmem:[#allocation11 + $0x58] sm:$0xff]
          %v4015 = vld [vmem:[#allocation11 + $0x60] sm:$0xff]
          %v4016 = vld [vmem:[#allocation11 + $0x68] sm:$0xff]
          %v4017 = vld [vmem:[#allocation11 + $0x70] sm:$0xff]
          %v4018 = vld [vmem:[#allocation11 + $0x78] sm:$0xff]
          %v4019 = vld [vmem:[#allocation13] sm:$0x1]
          %v4021 = vlaneseq
          %v4022 = vshrl.u32 %v4021, 7
          %v4023 = vsub.s32 0, %v4022
          %v4024 = vrot.slane %v4019, %v4023
          %4026 = vmatprep.subr.mxu0 0.0
          %4027 = vmatpush1.msra.mxu0 %v4003
          %4028 = vmatprep.subr.mxu0 0.0
          %4029 = vmatpush1.msra.mxu0 %v4004
          %4030 = vmatprep.subr.mxu0 0.0
          %4031 = vmatpush1.msra.mxu0 %v4005
          %4032 = vmatprep.subr.mxu0 0.0
          %4033 = vmatpush1.msra.mxu0 %v4006
          %4034 = vmatprep.subr.mxu0 0.0
          %4035 = vmatpush1.msra.mxu0 %v4007
          %4036 = vmatprep.subr.mxu0 0.0
          %4037 = vmatpush1.msra.mxu0 %v4008
          %4038 = vmatprep.subr.mxu0 0.0
          %4039 = vmatpush1.msra.mxu0 %v4009
          %4040 = vmatprep.subr.mxu0 0.0
          %4041 = vmatpush1.msra.mxu0 %v4010
          %4042 = vmatprep.subr.mxu0 0.0
          %4043 = vmatpush1.msra.mxu0 %v4011
          %4044 = vmatprep.subr.mxu0 0.0
          %4045 = vmatpush1.msra.mxu0 %v4012
          %4046 = vmatprep.subr.mxu0 0.0
          %4047 = vmatpush1.msra.mxu0 %v4013
          %4048 = vmatprep.subr.mxu0 0.0
          %4049 = vmatpush1.msra.mxu0 %v4014
          %4050 = vmatprep.subr.mxu0 0.0
          %4051 = vmatpush1.msra.mxu0 %v4015
          %4052 = vmatprep.subr.mxu0 0.0
          %4053 = vmatpush1.msra.mxu0 %v4016
          %4054 = vmatprep.subr.mxu0 0.0
          %4055 = vmatpush1.msra.mxu0 %v4017
          %4056 = vmatprep.subr.mxu0 0.0
          %4057 = vmatpush1.msra.mxu0 %v4018
          %4058 = vmatprep.subr.mxu0 0.0
          %4059 = vmatpush1.msra.mxu0 0.0
          %4060 = vmatprep.subr.mxu0 0.0
          %4061 = vmatpush1.msra.mxu0 0.0
          %4062 = vmatprep.subr.mxu0 0.0
          %4063 = vmatpush1.msra.mxu0 0.0
          %4064 = vmatprep.subr.mxu0 0.0
          %4065 = vmatpush1.msra.mxu0 0.0
          %4066 = vmatprep.subr.mxu0 0.0
          %4067 = vmatpush1.msra.mxu0 0.0
          %4068 = vmatprep.subr.mxu0 0.0
          %4069 = vmatpush1.msra.mxu0 0.0
          %4070 = vmatprep.subr.mxu0 0.0
          %4071 = vmatpush1.msra.mxu0 0.0
          %4072 = vmatprep.subr.mxu0 0.0
          %4073 = vmatpush1.msra.mxu0 0.0
          %4074 = vmatprep.subr.mxu0 0.0
          %4075 = vmatpush1.msra.mxu0 0.0
          %4076 = vmatprep.subr.mxu0 0.0
          %4077 = vmatpush1.msra.mxu0 0.0
          %4078 = vmatprep.subr.mxu0 0.0
          %4079 = vmatpush1.msra.mxu0 0.0
          %4080 = vmatprep.subr.mxu0 0.0
          %4081 = vmatpush1.msra.mxu0 0.0
          %4082 = vmatprep.subr.mxu0 0.0
          %4083 = vmatpush1.msra.mxu0 0.0
          %4084 = vmatprep.subr.mxu0 0.0
          %4085 = vmatpush1.msra.mxu0 0.0
          %4086 = vmatprep.subr.mxu0 0.0
          %4087 = vmatpush1.msra.mxu0 0.0
          %4088 = vmatprep.subr.mxu0 0.0
          %4089 = vmatpush1.msra.mxu0 0.0
          %4090 = vmatprep.mubr.f32.mxu0 0.0
          %4091 = vmatmul.mubr.f32.gmra.mrb[0].mxu0 %v4000
          %v4092 = vpop.f32.mrb[0].mxu0
          %v4093 = vadd.f32 %v4024, %v4092
          %v4094 = vpop.f32.mrb[0].mxu0
          %4095 = vdwg.mxu0
          %v4096 = vmax.f32 %v4093, 0.0
          %v4097 = vld [vmem:[#allocation14] sm:$0xff]
          %v4098 = vld [vmem:[#allocation14 + $0x8] sm:$0xff]
          %v4099 = vld [vmem:[#allocation14 + $0x10] sm:$0xff]
          %v4100 = vld [vmem:[#allocation14 + $0x18] sm:$0xff]
          %v4101 = vld [vmem:[#allocation14 + $0x20] sm:$0xff]
          %v4102 = vld [vmem:[#allocation14 + $0x28] sm:$0xff]
          %v4103 = vld [vmem:[#allocation14 + $0x30] sm:$0xff]
          %v4104 = vld [vmem:[#allocation14 + $0x38] sm:$0xff]
          %v4105 = vld [vmem:[#allocation14 + $0x40] sm:$0xff]
          %v4106 = vld [vmem:[#allocation14 + $0x48] sm:$0xff]
          %v4107 = vld [vmem:[#allocation14 + $0x50] sm:$0xff]
          %v4108 = vld [vmem:[#allocation14 + $0x58] sm:$0xff]
          %v4109 = vld [vmem:[#allocation14 + $0x60] sm:$0xff]
          %v4110 = vld [vmem:[#allocation14 + $0x68] sm:$0xff]
          %v4111 = vld [vmem:[#allocation14 + $0x70] sm:$0xff]
          %v4112 = vld [vmem:[#allocation14 + $0x78] sm:$0xff]
          %v4113 = vld [vmem:[#allocation16] sm:$0x1]
          %v4115 = vlaneseq
          %v4116 = vshrl.u32 %v4115, 7
          %v4117 = vsub.s32 0, %v4116
          %v4118 = vrot.slane %v4113, %v4117
          %4120 = vmatprep.subr.mxu0 0.0
          %4121 = vmatpush1.msra.mxu0 %v4097
          %4122 = vmatprep.subr.mxu0 0.0
          %4123 = vmatpush1.msra.mxu0 %v4098
          %4124 = vmatprep.subr.mxu0 0.0
          %4125 = vmatpush1.msra.mxu0 %v4099
          %4126 = vmatprep.subr.mxu0 0.0
          %4127 = vmatpush1.msra.mxu0 %v4100
          %4128 = vmatprep.subr.mxu0 0.0
          %4129 = vmatpush1.msra.mxu0 %v4101
          %4130 = vmatprep.subr.mxu0 0.0
          %4131 = vmatpush1.msra.mxu0 %v4102
          %4132 = vmatprep.subr.mxu0 0.0
          %4133 = vmatpush1.msra.mxu0 %v4103
          %4134 = vmatprep.subr.mxu0 0.0
          %4135 = vmatpush1.msra.mxu0 %v4104
          %4136 = vmatprep.subr.mxu0 0.0
          %4137 = vmatpush1.msra.mxu0 %v4105
          %4138 = vmatprep.subr.mxu0 0.0
          %4139 = vmatpush1.msra.mxu0 %v4106
          %4140 = vmatprep.subr.mxu0 0.0
          %4141 = vmatpush1.msra.mxu0 %v4107
          %4142 = vmatprep.subr.mxu0 0.0
          %4143 = vmatpush1.msra.mxu0 %v4108
          %4144 = vmatprep.subr.mxu0 0.0
          %4145 = vmatpush1.msra.mxu0 %v4109
          %4146 = vmatprep.subr.mxu0 0.0
          %4147 = vmatpush1.msra.mxu0 %v4110
          %4148 = vmatprep.subr.mxu0 0.0
          %4149 = vmatpush1.msra.mxu0 %v4111
          %4150 = vmatprep.subr.mxu0 0.0
          %4151 = vmatpush1.msra.mxu0 %v4112
          %4152 = vmatprep.subr.mxu0 0.0
          %4153 = vmatpush1.msra.mxu0 0.0
          %4154 = vmatprep.subr.mxu0 0.0
          %4155 = vmatpush1.msra.mxu0 0.0
          %4156 = vmatprep.subr.mxu0 0.0
          %4157 = vmatpush1.msra.mxu0 0.0
          %4158 = vmatprep.subr.mxu0 0.0
          %4159 = vmatpush1.msra.mxu0 0.0
          %4160 = vmatprep.subr.mxu0 0.0
          %4161 = vmatpush1.msra.mxu0 0.0
          %4162 = vmatprep.subr.mxu0 0.0
          %4163 = vmatpush1.msra.mxu0 0.0
          %4164 = vmatprep.subr.mxu0 0.0
          %4165 = vmatpush1.msra.mxu0 0.0
          %4166 = vmatprep.subr.mxu0 0.0
          %4167 = vmatpush1.msra.mxu0 0.0
          %4168 = vmatprep.subr.mxu0 0.0
          %4169 = vmatpush1.msra.mxu0 0.0
          %4170 = vmatprep.subr.mxu0 0.0
          %4171 = vmatpush1.msra.mxu0 0.0
          %4172 = vmatprep.subr.mxu0 0.0
          %4173 = vmatpush1.msra.mxu0 0.0
          %4174 = vmatprep.subr.mxu0 0.0
          %4175 = vmatpush1.msra.mxu0 0.0
          %4176 = vmatprep.subr.mxu0 0.0
          %4177 = vmatpush1.msra.mxu0 0.0
          %4178 = vmatprep.subr.mxu0 0.0
          %4179 = vmatpush1.msra.mxu0 0.0
          %4180 = vmatprep.subr.mxu0 0.0
          %4181 = vmatpush1.msra.mxu0 0.0
          %4182 = vmatprep.subr.mxu0 0.0
          %4183 = vmatpush1.msra.mxu0 0.0
          %4184 = vmatprep.mubr.f32.mxu0 0.0
          %4185 = vmatmul.mubr.f32.gmra.mrb[0].mxu0 %v4096
          %v4186 = vpop.f32.mrb[0].mxu0
          %v4187 = vadd.f32 %v4118, %v4186
          %v4188 = vpop.f32.mrb[0].mxu0
          %4189 = vdwg.mxu0
          %v4190 = vmax.f32 %v4187, 0.0
          %v4191 = vld [vmem:[#allocation17] sm:$0xff]
          %v4192 = vld [vmem:[#allocation17 + $0x8] sm:$0xff]
          %v4193 = vld [vmem:[#allocation17 + $0x10] sm:$0xff]
          %v4194 = vld [vmem:[#allocation17 + $0x18] sm:$0xff]
          %v4195 = vld [vmem:[#allocation17 + $0x20] sm:$0xff]
          %v4196 = vld [vmem:[#allocation17 + $0x28] sm:$0xff]
          %v4197 = vld [vmem:[#allocation17 + $0x30] sm:$0xff]
          %v4198 = vld [vmem:[#allocation17 + $0x38] sm:$0xff]
          %v4199 = vld [vmem:[#allocation17 + $0x40] sm:$0xff]
          %v4200 = vld [vmem:[#allocation17 + $0x48] sm:$0xff]
          %v4201 = vld [vmem:[#allocation17 + $0x50] sm:$0xff]
          %v4202 = vld [vmem:[#allocation17 + $0x58] sm:$0xff]
          %v4203 = vld [vmem:[#allocation17 + $0x60] sm:$0xff]
          %v4204 = vld [vmem:[#allocation17 + $0x68] sm:$0xff]
          %v4205 = vld [vmem:[#allocation17 + $0x70] sm:$0xff]
          %v4206 = vld [vmem:[#allocation17 + $0x78] sm:$0xff]
          %v4207 = vld [vmem:[#allocation19] sm:$0x1]
          %v4209 = vlaneseq
          %v4210 = vshrl.u32 %v4209, 7
          %v4211 = vsub.s32 0, %v4210
          %v4212 = vrot.slane %v4207, %v4211
          %4214 = vmatprep.subr.mxu0 0.0
          %4215 = vmatpush1.msra.mxu0 %v4191
          %4216 = vmatprep.subr.mxu0 0.0
          %4217 = vmatpush1.msra.mxu0 %v4192
          %4218 = vmatprep.subr.mxu0 0.0
          %4219 = vmatpush1.msra.mxu0 %v4193
          %4220 = vmatprep.subr.mxu0 0.0
          %4221 = vmatpush1.msra.mxu0 %v4194
          %4222 = vmatprep.subr.mxu0 0.0
          %4223 = vmatpush1.msra.mxu0 %v4195
          %4224 = vmatprep.subr.mxu0 0.0
          %4225 = vmatpush1.msra.mxu0 %v4196
          %4226 = vmatprep.subr.mxu0 0.0
          %4227 = vmatpush1.msra.mxu0 %v4197
          %4228 = vmatprep.subr.mxu0 0.0
          %4229 = vmatpush1.msra.mxu0 %v4198
          %4230 = vmatprep.subr.mxu0 0.0
          %4231 = vmatpush1.msra.mxu0 %v4199
          %4232 = vmatprep.subr.mxu0 0.0
          %4233 = vmatpush1.msra.mxu0 %v4200
          %4234 = vmatprep.subr.mxu0 0.0
          %4235 = vmatpush1.msra.mxu0 %v4201
          %4236 = vmatprep.subr.mxu0 0.0
          %4237 = vmatpush1.msra.mxu0 %v4202
          %4238 = vmatprep.subr.mxu0 0.0
          %4239 = vmatpush1.msra.mxu0 %v4203
          %4240 = vmatprep.subr.mxu0 0.0
          %4241 = vmatpush1.msra.mxu0 %v4204
          %4242 = vmatprep.subr.mxu0 0.0
          %4243 = vmatpush1.msra.mxu0 %v4205
          %4244 = vmatprep.subr.mxu0 0.0
          %4245 = vmatpush1.msra.mxu0 %v4206
          %4246 = vmatprep.subr.mxu0 0.0
          %4247 = vmatpush1.msra.mxu0 0.0
          %4248 = vmatprep.subr.mxu0 0.0
          %4249 = vmatpush1.msra.mxu0 0.0
          %4250 = vmatprep.subr.mxu0 0.0
          %4251 = vmatpush1.msra.mxu0 0.0
          %4252 = vmatprep.subr.mxu0 0.0
          %4253 = vmatpush1.msra.mxu0 0.0
          %4254 = vmatprep.subr.mxu0 0.0
          %4255 = vmatpush1.msra.mxu0 0.0
          %4256 = vmatprep.subr.mxu0 0.0
          %4257 = vmatpush1.msra.mxu0 0.0
          %4258 = vmatprep.subr.mxu0 0.0
          %4259 = vmatpush1.msra.mxu0 0.0
          %4260 = vmatprep.subr.mxu0 0.0
          %4261 = vmatpush1.msra.mxu0 0.0
          %4262 = vmatprep.subr.mxu0 0.0
          %4263 = vmatpush1.msra.mxu0 0.0
          %4264 = vmatprep.subr.mxu0 0.0
          %4265 = vmatpush1.msra.mxu0 0.0
          %4266 = vmatprep.subr.mxu0 0.0
          %4267 = vmatpush1.msra.mxu0 0.0
          %4268 = vmatprep.subr.mxu0 0.0
          %4269 = vmatpush1.msra.mxu0 0.0
          %4270 = vmatprep.subr.mxu0 0.0
          %4271 = vmatpush1.msra.mxu0 0.0
          %4272 = vmatprep.subr.mxu0 0.0
          %4273 = vmatpush1.msra.mxu0 0.0
          %4274 = vmatprep.subr.mxu0 0.0
          %4275 = vmatpush1.msra.mxu0 0.0
          %4276 = vmatprep.subr.mxu0 0.0
          %4277 = vmatpush1.msra.mxu0 0.0
          %4278 = vmatprep.mubr.f32.mxu0 0.0
          %4279 = vmatmul.mubr.f32.gmra.mrb[0].mxu0 %v4190
          %v4280 = vpop.f32.mrb[0].mxu0
          %v4281 = vadd.f32 %v4212, %v4280
          %v4282 = vpop.f32.mrb[0].mxu0
          %4283 = vdwg.mxu0
          %4284 = vst [vmem:[#allocation20] sm:$0xf] %v4281
        $region132: #{tpu_custom_call.1} parent=79 // pred_fallthru
          _
        // Predicated region
        $region133: #{tpu_custom_call.1} parent=79 // pred_check
          %p4285 = pneg %p370
        $region134: #{tpu_custom_call.1} parent=79 // pred_check_branch
          %4287 = sbr.rel (%p4285) target = $region136
        $region135: #{tpu_custom_call.1} parent=79 // pred_region
          %s4289 = ssub.s32 64, 64
          %4290 = vsyncadd [#allocation5], %s4289
          %s4292 = sshll.u32 [#allocation20], 4
          %s4293 = int_to_ptr.vmem [resolvable:$true] %s4292
          %4295 = dma.vmem_to_hbm [thread:$0]  %s4293, 64, %s15, [#allocation5]
        $region136: #{tpu_custom_call.1} parent=79 // pred_fallthru
          _
        // Predicated region
        $region137: #{tpu_custom_call.1} parent=79 // pred_check
          %p4296 = pneg %p370
        $region138: #{tpu_custom_call.1} parent=79 // pred_check_branch
          %4298 = sbr.rel (%p4296) target = $region140
        $region139: #{tpu_custom_call.1} parent=79 // pred_region
          %4299 = dma.done [#allocation5], 64
        $region140: #{tpu_custom_call.1} parent=79 // pred_fallthru
          _
      $region80: #{tpu_custom_call.1} parent=5 // pred_fallthru
        _
      %p4300 = scmp.le.s32.totalorder 2, %s27
      // Predicated region
      $region141: #{tpu_custom_call.1} parent=5 // pred_check
        %p4301 = pneg %p4300
      $region142: #{tpu_custom_call.1} parent=5 // pred_check_branch
        %4303 = sbr.rel (%p4301) target = $region144
      $region143: #{tpu_custom_call.1} parent=5 // pred_region
        %s4304 = ssub.s32 %s27, 2
      $region144: #{tpu_custom_call.1} parent=5 // pred_fallthru
        _
    $region6: #{tpu_custom_call.1} parent=1 // loop_footer
      %s31 = sadd.s32 1, %s27
    $region7: #{tpu_custom_call.1} parent=1 // loop_footer_branch
      %26 = sbr.rel target = $region3
    $region8: #{tpu_custom_call.1} parent=1 // loop_exit
      _
    %4305 = vsyncpa [#allocation4], 1
    %s4306 = scalar_lea.sflag [#allocation4], 1
    %4307 = vsyncpa %s4306, 1
    %4308 = vsyncpa [#allocation7], 1
    %4309 = vsyncpa [#allocation12], 1
    %4310 = vsyncpa [#allocation15], 1
    %4311 = vsyncpa [#allocation18], 1
    %4312 = vsyncpa [#allocation5], 1
    %s4313 = scalar_lea.sflag [#allocation5], 1
    %4314 = vsyncpa %s4313, 1

</llo_original>
